<compile_context>
chip_gen: v7x
topology: tpu7x:2x2x1
jax: 0.10.0
libtpu: 0.0.40
codegen_flags: <defaults>
</compile_context>

<pallas_src>
import math
from functools import partial

import numpy as np
import jax
import jax.numpy as jnp
from jax.experimental import pallas as pl
from jax.experimental.pallas import tpu as pltpu

_EPS = 1e-5


def _num_groups(c):
    return math.gcd(c, 32)


# ----------------------- in-kernel fused GroupNorm(+ReLU) ------------------------

def _gn_relu(y, gn_ref, groups, eps=_EPS, relu=True):
    """GroupNorm(+ReLU) for one image's rows.  y: (M, C) f32, gn_ref: (2, C) f32.

    The stat reduction is commuted: sublane reduce to (1, C) first, then a cheap
    per-group combine -- no (M,C)x(C,C) matmul and no per-step gmask build.
    """
    gamma = gn_ref[0:1, :]
    beta = gn_ref[1:2, :]
    m, c = y.shape
    cg = c // groups
    s1 = jnp.sum(y, axis=0, keepdims=True)                  # (1, C)
    s2 = jnp.sum(y * y, axis=0, keepdims=True)              # (1, C)
    if groups == 1:                       # single group: finish with a lane reduce
        s1 = jnp.sum(s1, axis=1, keepdims=True)             # (1, 1)
        s2 = jnp.sum(s2, axis=1, keepdims=True)
        cnt = m * c
    elif cg == 1:                         # one channel per group: already done
        cnt = m
    elif cg == 2:                         # pair-sum across adjacent channels (XLU rolls)
        lane = jax.lax.broadcasted_iota(jnp.int32, (1, c), 1)
        even = (lane & 1) == 0
        s1 = s1 + jnp.where(even, pltpu.roll(s1, shift=c - 1, axis=1),
                            pltpu.roll(s1, shift=1, axis=1))
        s2 = s2 + jnp.where(even, pltpu.roll(s2, shift=c - 1, axis=1),
                            pltpu.roll(s2, shift=1, axis=1))
        cnt = m * 2
    else:
        # TODO(synk): general group size would use a precomputed (C,C) group-mask dot
        # on the (1,C) sums; not needed for this model's channel counts.
        raise NotImplementedError("unsupported group size")
    inv = 1.0 / float(cnt)
    mean = s1 * inv
    var = s2 * inv - mean * mean
    scale = jax.lax.rsqrt(var + eps) * gamma
    shift = beta - mean * scale
    out = y * scale + shift
    if relu:
        out = jnp.maximum(out, 0.0)
    return out


# ---------------- in-kernel tap slab for a 3x3 / stride-2 / pad-1 conv -----------

def _stride2_tap_slab(y, ho, wo):
    """Phase-ordered activation (4*ho*wo, C) -> (ho*wo, 9*C) tap slab.

    Rows of `y` are grouped by spatial phase p = 2*(i%2) + (j%2); within a phase they
    are row-major over the (ho, wo) output grid.  Tap (di, dj) then comes from one
    phase block shifted by {0, 1, wo, wo+1} rows (pltpu.roll) with boundary masking,
    so the whole conv is a single K=9*C GEMM.
    """
    mo = ho * wo
    c = y.shape[1]
    assert wo & (wo - 1) == 0, "wo must be a power of two"
    ph = [y[p * mo:(p + 1) * mo, :] for p in range(4)]
    idx = jax.lax.broadcasted_iota(jnp.int32, (mo, c), 0)
    row_ok = idx >= wo                    # output row >= 1 (needed by di == 0 taps)
    col_ok = (idx & (wo - 1)) != 0        # output col >= 1 (needed by dj == 0 taps)
    zero = jnp.zeros((mo, c), y.dtype)
    taps = []
    for di in range(3):
        for dj in range(3):
            p = 2 * ((di + 1) % 2) + ((dj + 1) % 2)
            shift = (wo if di == 0 else 0) + (1 if dj == 0 else 0)
            t = ph[p] if shift == 0 else pltpu.roll(ph[p], shift=shift, axis=0)
            if di == 0 and dj == 0:
                t = jnp.where(jnp.logical_and(row_ok, col_ok), t, zero)
            elif di == 0:
                t = jnp.where(row_ok, t, zero)
            elif dj == 0:
                t = jnp.where(col_ok, t, zero)
            taps.append(t)
    return jnp.concatenate(taps, axis=-1)


# ----------------------- pre-act ResNetV2 bottleneck (traced) --------------------

def _bottleneck(x, gn1_ref, w1_ref, gn2_ref, w2_ref, gn3_ref, w3_ref, wdn_ref, ho, wo):
    """Stride-2 pre-activation bottleneck on one frame's phase-ordered rows."""
    mo = ho * wo
    mid = w1_ref.shape[1]
    # pre-activation GN + ReLU (fused with whatever produced x)
    xa = _gn_relu(x, gn1_ref, _num_groups(x.shape[1]))
    xa_bf = xa.astype(jnp.bfloat16)
    # projection shortcut: 1x1/s2 conv on the pre-activated input.  Stride-2 spatial
    # sampling == phase (0, 0) == the first ho*wo rows of the phase-ordered layout.
    sc = jnp.dot(xa_bf[0:mo, :], wdn_ref[...], preferred_element_type=jnp.float32)
    # 1x1 conv + GN + ReLU
    y = jnp.dot(xa_bf, w1_ref[...], preferred_element_type=jnp.float32)
    y = _gn_relu(y, gn2_ref, _num_groups(mid))
    # 3x3/s2/p1 conv as one K=9*mid GEMM over the in-VMEM tap slab, + GN + ReLU
    slab = _stride2_tap_slab(y, ho, wo).astype(jnp.bfloat16)
    y = jnp.dot(slab, w2_ref[...], preferred_element_type=jnp.float32)
    y = _gn_relu(y, gn3_ref, _num_groups(mid))
    # 1x1 conv + residual add (f32)
    return jnp.dot(y.astype(jnp.bfloat16), w3_ref[...],
                   preferred_element_type=jnp.float32) + sc


# --------------------------------- fused kernel ----------------------------------

def _intra_kernel(xcol_ref, hpfw_ref, hpfb_ref,
                  gn1a_ref, w1a_ref, gn2a_ref, w2a_ref, gn3a_ref, w3a_ref, wdna_ref,
                  perm_ref,
                  gn1b_ref, w1b_ref, gn2b_ref, w2b_ref, gn3b_ref, w3b_ref, wdnb_ref,
                  out_ref, *, h, w):
    # HPF 3x3/s1/p1 conv: one K=27 GEMM over the wrapper-built phase-ordered im2col.
    hpf = jnp.dot(xcol_ref[...], hpfw_ref[...],
                  preferred_element_type=jnp.float32) + hpfb_ref[...]
    # bottleneck 1 (9 -> 64, stride 2); output rows are row-major over (h/2, w/2)
    x1 = _bottleneck(hpf, gn1a_ref, w1a_ref, gn2a_ref, w2a_ref, gn3a_ref, w3a_ref,
                     wdna_ref, h // 2, w // 2)
    # re-phase rows for bottleneck 2 with one tiny permutation matmul (exact)
    x1 = jnp.dot(perm_ref[...], x1.astype(jnp.bfloat16),
                 preferred_element_type=jnp.float32)
    # bottleneck 2 (64 -> 128, stride 2); rows come out row-major over (h/4, w/4)
    x2 = _bottleneck(x1, gn1b_ref, w1b_ref, gn2b_ref, w2b_ref, gn3b_ref, w3b_ref,
                     wdnb_ref, h // 4, w // 4)
    out_ref[...] = x2.astype(out_ref.dtype)


# ------------------------------ wrapper-side helpers -----------------------------

def _phase_order_rows(x):
    """(N, H, W, C) -> (N, H*W, C), rows grouped by phase (i%2, j%2), row-major inside."""
    n, h, w, c = x.shape
    x = x.reshape(n, h // 2, 2, w // 2, 2, c)
    x = x.transpose(0, 2, 4, 1, 3, 5)
    return x.reshape(n, h * w, c)


def _hpf_im2col(x):
    """3x3/pad-1 im2col of the raw 3-channel input (tiny, done once in the wrapper)."""
    n, h, w, c = x.shape
    xp = jnp.pad(x, ((0, 0), (1, 1), (1, 1), (0, 0)))
    cols = [xp[:, di:di + h, dj:dj + w, :] for di in range(3) for dj in range(3)]
    return _phase_order_rows(jnp.concatenate(cols, axis=-1))


def _phase_perm_matrix(h, w):
    """(h*w, h*w) 0/1 matrix mapping row-major rows -> phase-ordered rows."""
    m = h * w
    perm = np.zeros((m, m), np.float32)
    row = 0
    for pi in range(2):
        for pj in range(2):
            for r in range(h // 2):
                for cc in range(w // 2):
                    perm[row, (2 * r + pi) * w + (2 * cc + pj)] = 1.0
                    row += 1
    return perm


# ------------------------------------ forward ------------------------------------

def intra_frame_residual(x_nchw, params):
    """IntraFrameResidual: drop first/last frame, HPF conv, two bottlenecks (1 kernel)."""
    x = jnp.transpose(x_nchw[1:-1], (0, 2, 3, 1))            # (N, H, W, 3)
    n, h, w, cin = x.shape
    b1, b2 = params["block1"], params["block2"]
    chpf = params["hpf_w"].shape[-1]
    m1, m2 = b1["w1"].shape[-1], b2["w1"].shape[-1]
    c2 = b2["w3"].shape[-1]

    bf = lambda a: a.astype(jnp.bfloat16)
    gn = lambda g, b: jnp.stack([g, b]).astype(jnp.float32)  # (2, C)

    xcol = _hpf_im2col(x).astype(jnp.bfloat16)               # (N, H*W, 27)
    hpf_w = bf(params["hpf_w"].reshape(9 * cin, chpf))
    hpf_b = params["hpf_b"].reshape(1, chpf).astype(jnp.float32)
    perm = jnp.asarray(_phase_perm_matrix(h // 2, w // 2), jnp.bfloat16)

    operands = (
        xcol, hpf_w, hpf_b,
        gn(b1["gn1_g"], b1["gn1_b"]), bf(b1["w1"]),
        gn(b1["gn2_g"], b1["gn2_b"]), bf(b1["w2"].reshape(9 * m1, m1)),
        gn(b1["gn3_g"], b1["gn3_b"]), bf(b1["w3"]), bf(b1["w_down"]),
        perm,
        gn(b2["gn1_g"], b2["gn1_b"]), bf(b2["w1"]),
        gn(b2["gn2_g"], b2["gn2_b"]), bf(b2["w2"].reshape(9 * m2, m2)),
        gn(b2["gn3_g"], b2["gn3_b"]), bf(b2["w3"]), bf(b2["w_down"]),
    )

    def full2d(a):
        return pl.BlockSpec(a.shape, lambda i: (0, 0))

    in_specs = [pl.BlockSpec((None, h * w, 9 * cin), lambda i: (i, 0, 0))]
    in_specs += [full2d(a) for a in operands[1:]]

    mo = (h // 4) * (w // 4)
    out = pl.pallas_call(
        partial(_intra_kernel, h=h, w=w),
        grid=(n,),
        in_specs=in_specs,
        out_specs=pl.BlockSpec((None, mo, c2), lambda i: (i, 0, 0)),
        out_shape=jax.ShapeDtypeStruct((n, mo, c2), jnp.float32),
        compiler_params=pltpu.CompilerParams(
            dimension_semantics=("parallel",),
            vmem_limit_bytes=32 * 1024 * 1024),
    )(*operands)

    out = out.reshape(n, h // 4, w // 4, c2)
    return jnp.transpose(out, (0, 3, 1, 2))                  # NHWC -> NCHW


# ----------------------------------- parameters ----------------------------------

def conv_weight(key, kh, kw, cin, cout, xavier=False):
    fan_in, fan_out = kh * kw * cin, kh * kw * cout
    std = math.sqrt(2.0 / (fan_in + fan_out)) if xavier else math.sqrt(2.0 / fan_in)
    return std * jax.random.normal(key, (kh, kw, cin, cout), jnp.float32)


def make_bottleneck_params(key, cin, cout, mid):
    ks = jax.random.split(key, 4)
    return dict(
        gn1_g=jnp.ones((cin,), jnp.float32), gn1_b=jnp.zeros((cin,), jnp.float32),
        w_down=conv_weight(ks[0], 1, 1, cin, cout)[0, 0],    # (cin, cout)
        w1=conv_weight(ks[1], 1, 1, cin, mid)[0, 0],         # (cin, mid)
        gn2_g=jnp.ones((mid,), jnp.float32), gn2_b=jnp.zeros((mid,), jnp.float32),
        w2=conv_weight(ks[2], 3, 3, mid, mid),               # (3, 3, mid, mid)
        gn3_g=jnp.ones((mid,), jnp.float32), gn3_b=jnp.zeros((mid,), jnp.float32),
        w3=conv_weight(ks[3], 1, 1, mid, cout)[0, 0],        # (mid, cout)
    )


# -------------------------------------- main --------------------------------------

if __name__ == "__main__":
    key = jax.random.PRNGKey(0)
    kx, kh, k1, k2 = jax.random.split(key, 4)

    B, C, H, W = 4, 3, 16, 16
    x = jax.random.normal(kx, (B, C, H, W), jnp.float32)

    params = {
        "hpf_w": conv_weight(kh, 3, 3, 3, 9, xavier=True),   # xavier_normal_
        "hpf_b": jnp.zeros((9,), jnp.float32),                # zeros_
        "block1": make_bottleneck_params(k1, 9, 64, 16),      # mid = 64 * 0.25
        "block2": make_bottleneck_params(k2, 64, 128, 32),    # mid = 128 * 0.25
    }

    out = jax.jit(intra_frame_residual)(x, params)
    jax.block_until_ready(out)
    assert out.shape == (B - 2, 128, H // 4, W // 4), out.shape
    print("KERNEL_OK")
</pallas_src>

<mosaic_0001>
module attributes {stable_mosaic.version = 11 : i64} {
  func.func @_intra_kernel(%arg0: i32, %arg1: memref<1x256x27xbf16, #tpu.memory_space<vmem>>, %arg2: memref<27x9xbf16, #tpu.memory_space<vmem>>, %arg3: memref<1x9xf32, #tpu.memory_space<vmem>>, %arg4: memref<2x9xf32, #tpu.memory_space<vmem>>, %arg5: memref<9x16xbf16, #tpu.memory_space<vmem>>, %arg6: memref<2x16xf32, #tpu.memory_space<vmem>>, %arg7: memref<144x16xbf16, #tpu.memory_space<vmem>>, %arg8: memref<2x16xf32, #tpu.memory_space<vmem>>, %arg9: memref<16x64xbf16, #tpu.memory_space<vmem>>, %arg10: memref<9x64xbf16, #tpu.memory_space<vmem>>, %arg11: memref<64x64xbf16, #tpu.memory_space<vmem>>, %arg12: memref<2x64xf32, #tpu.memory_space<vmem>>, %arg13: memref<64x32xbf16, #tpu.memory_space<vmem>>, %arg14: memref<2x32xf32, #tpu.memory_space<vmem>>, %arg15: memref<288x32xbf16, #tpu.memory_space<vmem>>, %arg16: memref<2x32xf32, #tpu.memory_space<vmem>>, %arg17: memref<32x128xbf16, #tpu.memory_space<vmem>>, %arg18: memref<64x128xbf16, #tpu.memory_space<vmem>>, %arg19: memref<1x16x128xf32, #tpu.memory_space<vmem>>) attributes {dimension_semantics = [#tpu.dimension_semantics<parallel>], iteration_bounds = array<i64: 2>, scalar_prefetch = 0 : i64, scratch_operands = 0 : i64, tpu.core_type = #tpu.core_type<tc>, window_params = [{transform_indices = @transform_0, window_bounds = array<i64: 1, 256, 27>}, {pipeline_mode = #tpu.pipeline_mode<synchronous>, transform_indices = @transform_1, window_bounds = array<i64: 27, 9>}, {pipeline_mode = #tpu.pipeline_mode<synchronous>, transform_indices = @transform_2, window_bounds = array<i64: 1, 9>}, {pipeline_mode = #tpu.pipeline_mode<synchronous>, transform_indices = @transform_3, window_bounds = array<i64: 2, 9>}, {pipeline_mode = #tpu.pipeline_mode<synchronous>, transform_indices = @transform_4, window_bounds = array<i64: 9, 16>}, {pipeline_mode = #tpu.pipeline_mode<synchronous>, transform_indices = @transform_5, window_bounds = array<i64: 2, 16>}, {pipeline_mode = #tpu.pipeline_mode<synchronous>, transform_indices = @transform_6, window_bounds = array<i64: 144, 16>}, {pipeline_mode = #tpu.pipeline_mode<synchronous>, transform_indices = @transform_7, window_bounds = array<i64: 2, 16>}, {pipeline_mode = #tpu.pipeline_mode<synchronous>, transform_indices = @transform_8, window_bounds = array<i64: 16, 64>}, {pipeline_mode = #tpu.pipeline_mode<synchronous>, transform_indices = @transform_9, window_bounds = array<i64: 9, 64>}, {pipeline_mode = #tpu.pipeline_mode<synchronous>, transform_indices = @transform_10, window_bounds = array<i64: 64, 64>}, {pipeline_mode = #tpu.pipeline_mode<synchronous>, transform_indices = @transform_11, window_bounds = array<i64: 2, 64>}, {pipeline_mode = #tpu.pipeline_mode<synchronous>, transform_indices = @transform_12, window_bounds = array<i64: 64, 32>}, {pipeline_mode = #tpu.pipeline_mode<synchronous>, transform_indices = @transform_13, window_bounds = array<i64: 2, 32>}, {pipeline_mode = #tpu.pipeline_mode<synchronous>, transform_indices = @transform_14, window_bounds = array<i64: 288, 32>}, {pipeline_mode = #tpu.pipeline_mode<synchronous>, transform_indices = @transform_15, window_bounds = array<i64: 2, 32>}, {pipeline_mode = #tpu.pipeline_mode<synchronous>, transform_indices = @transform_16, window_bounds = array<i64: 32, 128>}, {pipeline_mode = #tpu.pipeline_mode<synchronous>, transform_indices = @transform_17, window_bounds = array<i64: 64, 128>}, {transform_indices = @transform_18, window_bounds = array<i64: 1, 16, 128>}]} {
    %c0 = arith.constant 0 : index
    %c0_0 = arith.constant 0 : index
    %c0_1 = arith.constant 0 : index
    %0 = vector.load %arg1[%c0, %c0_0, %c0_1] : memref<1x256x27xbf16, #tpu.memory_space<vmem>>, vector<1x256x27xbf16>
    %1 = vector.shape_cast %0 : vector<1x256x27xbf16> to vector<256x27xbf16>
    %c0_2 = arith.constant 0 : index
    %c0_3 = arith.constant 0 : index
    %2 = vector.load %arg2[%c0_2, %c0_3] : memref<27x9xbf16, #tpu.memory_space<vmem>>, vector<27x9xbf16>
    %cst = arith.constant dense<0.000000e+00> : vector<256x9xf32>
    %3 = tpu.matmul %1, %2, %cst {dimension_numbers = #tpu.dot_dimension_numbers<[1], [0], [0], [1], [0, 0, 1, 1], [], []>} : vector<256x27xbf16>, vector<27x9xbf16>, vector<256x9xf32> -> vector<256x9xf32>
    %c0_4 = arith.constant 0 : index
    %c0_5 = arith.constant 0 : index
    %4 = vector.load %arg3[%c0_4, %c0_5] : memref<1x9xf32, #tpu.memory_space<vmem>>, vector<1x9xf32>
    %5 = vector.broadcast %4 : vector<1x9xf32> to vector<256x9xf32>
    %6 = arith.addf %3, %5 : vector<256x9xf32>
    %c0_6 = arith.constant 0 : index
    %c0_7 = arith.constant 0 : index
    %7 = vector.load %arg4[%c0_6, %c0_7] : memref<2x9xf32, #tpu.memory_space<vmem>>, vector<1x9xf32>
    %c1 = arith.constant 1 : index
    %c0_8 = arith.constant 0 : index
    %8 = vector.load %arg4[%c1, %c0_8] : memref<2x9xf32, #tpu.memory_space<vmem>>, vector<1x9xf32>
    %cst_9 = arith.constant dense<0.000000e+00> : vector<9xf32>
    %9 = vector.multi_reduction <add>, %6, %cst_9 [0] : vector<256x9xf32> to vector<9xf32>
    %10 = vector.shape_cast %9 : vector<9xf32> to vector<1x9xf32>
    %11 = arith.mulf %6, %6 : vector<256x9xf32>
    %cst_10 = arith.constant dense<0.000000e+00> : vector<9xf32>
    %12 = vector.multi_reduction <add>, %11, %cst_10 [0] : vector<256x9xf32> to vector<9xf32>
    %13 = vector.shape_cast %12 : vector<9xf32> to vector<1x9xf32>
    %cst_11 = arith.constant dense<0.000000e+00> : vector<1xf32>
    %14 = vector.multi_reduction <add>, %10, %cst_11 [1] : vector<1x9xf32> to vector<1xf32>
    %15 = vector.shape_cast %14 : vector<1xf32> to vector<1x1xf32>
    %cst_12 = arith.constant dense<0.000000e+00> : vector<1xf32>
    %16 = vector.multi_reduction <add>, %13, %cst_12 [1] : vector<1x9xf32> to vector<1xf32>
    %17 = vector.shape_cast %16 : vector<1xf32> to vector<1x1xf32>
    %cst_13 = arith.constant 4.34027781E-4 : f32
    %18 = vector.broadcast %cst_13 : f32 to vector<1x1xf32>
    %19 = arith.mulf %15, %18 : vector<1x1xf32>
    %cst_14 = arith.constant 4.34027781E-4 : f32
    %20 = vector.broadcast %cst_14 : f32 to vector<1x1xf32>
    %21 = arith.mulf %17, %20 : vector<1x1xf32>
    %22 = arith.mulf %19, %19 : vector<1x1xf32>
    %23 = arith.subf %21, %22 : vector<1x1xf32>
    %cst_15 = arith.constant 9.99999974E-6 : f32
    %24 = vector.broadcast %cst_15 : f32 to vector<1x1xf32>
    %25 = arith.addf %23, %24 : vector<1x1xf32>
    %26 = math.rsqrt %25 : vector<1x1xf32>
    %27 = vector.broadcast %26 : vector<1x1xf32> to vector<1x9xf32>
    %28 = arith.mulf %27, %7 : vector<1x9xf32>
    %29 = vector.broadcast %19 : vector<1x1xf32> to vector<1x9xf32>
    %30 = arith.mulf %29, %28 : vector<1x9xf32>
    %31 = arith.subf %8, %30 : vector<1x9xf32>
    %32 = vector.broadcast %28 : vector<1x9xf32> to vector<256x9xf32>
    %33 = arith.mulf %6, %32 : vector<256x9xf32>
    %34 = vector.broadcast %31 : vector<1x9xf32> to vector<256x9xf32>
    %35 = arith.addf %33, %34 : vector<256x9xf32>
    %cst_16 = arith.constant 0.000000e+00 : f32
    %36 = vector.broadcast %cst_16 : f32 to vector<256x9xf32>
    %37 = arith.maximumf %35, %36 : vector<256x9xf32>
    %38 = arith.truncf %37 : vector<256x9xf32> to vector<256x9xbf16>
    %39 = vector.extract_strided_slice %38 {offsets = [0, 0], sizes = [64, 9], strides = [1, 1]} : vector<256x9xbf16> to vector<64x9xbf16>
    %c0_17 = arith.constant 0 : index
    %c0_18 = arith.constant 0 : index
    %40 = vector.load %arg10[%c0_17, %c0_18] : memref<9x64xbf16, #tpu.memory_space<vmem>>, vector<9x64xbf16>
    %cst_19 = arith.constant dense<0.000000e+00> : vector<64x64xf32>
    %41 = tpu.matmul %39, %40, %cst_19 {dimension_numbers = #tpu.dot_dimension_numbers<[1], [0], [0], [1], [0, 0, 1, 1], [], []>} : vector<64x9xbf16>, vector<9x64xbf16>, vector<64x64xf32> -> vector<64x64xf32>
    %c0_20 = arith.constant 0 : index
    %c0_21 = arith.constant 0 : index
    %42 = vector.load %arg5[%c0_20, %c0_21] : memref<9x16xbf16, #tpu.memory_space<vmem>>, vector<9x16xbf16>
    %cst_22 = arith.constant dense<0.000000e+00> : vector<256x16xf32>
    %43 = tpu.matmul %38, %42, %cst_22 {dimension_numbers = #tpu.dot_dimension_numbers<[1], [0], [0], [1], [0, 0, 1, 1], [], []>} : vector<256x9xbf16>, vector<9x16xbf16>, vector<256x16xf32> -> vector<256x16xf32>
    %c0_23 = arith.constant 0 : index
    %c0_24 = arith.constant 0 : index
    %44 = vector.load %arg6[%c0_23, %c0_24] : memref<2x16xf32, #tpu.memory_space<vmem>>, vector<1x16xf32>
    %c1_25 = arith.constant 1 : index
    %c0_26 = arith.constant 0 : index
    %45 = vector.load %arg6[%c1_25, %c0_26] : memref<2x16xf32, #tpu.memory_space<vmem>>, vector<1x16xf32>
    %cst_27 = arith.constant dense<0.000000e+00> : vector<16xf32>
    %46 = vector.multi_reduction <add>, %43, %cst_27 [0] : vector<256x16xf32> to vector<16xf32>
    %47 = vector.shape_cast %46 : vector<16xf32> to vector<1x16xf32>
    %48 = arith.mulf %43, %43 : vector<256x16xf32>
    %cst_28 = arith.constant dense<0.000000e+00> : vector<16xf32>
    %49 = vector.multi_reduction <add>, %48, %cst_28 [0] : vector<256x16xf32> to vector<16xf32>
    %50 = vector.shape_cast %49 : vector<16xf32> to vector<1x16xf32>
    %cst_29 = arith.constant 3.906250e-03 : f32
    %51 = vector.broadcast %cst_29 : f32 to vector<1x16xf32>
    %52 = arith.mulf %47, %51 : vector<1x16xf32>
    %cst_30 = arith.constant 3.906250e-03 : f32
    %53 = vector.broadcast %cst_30 : f32 to vector<1x16xf32>
    %54 = arith.mulf %50, %53 : vector<1x16xf32>
    %55 = arith.mulf %52, %52 : vector<1x16xf32>
    %56 = arith.subf %54, %55 : vector<1x16xf32>
    %cst_31 = arith.constant 9.99999974E-6 : f32
    %57 = vector.broadcast %cst_31 : f32 to vector<1x16xf32>
    %58 = arith.addf %56, %57 : vector<1x16xf32>
    %59 = math.rsqrt %58 : vector<1x16xf32>
    %60 = arith.mulf %59, %44 : vector<1x16xf32>
    %61 = arith.mulf %52, %60 : vector<1x16xf32>
    %62 = arith.subf %45, %61 : vector<1x16xf32>
    %63 = vector.broadcast %60 : vector<1x16xf32> to vector<256x16xf32>
    %64 = arith.mulf %43, %63 : vector<256x16xf32>
    %65 = vector.broadcast %62 : vector<1x16xf32> to vector<256x16xf32>
    %66 = arith.addf %64, %65 : vector<256x16xf32>
    %cst_32 = arith.constant 0.000000e+00 : f32
    %67 = vector.broadcast %cst_32 : f32 to vector<256x16xf32>
    %68 = arith.maximumf %66, %67 : vector<256x16xf32>
    %69 = vector.extract_strided_slice %68 {offsets = [0, 0], sizes = [64, 16], strides = [1, 1]} : vector<256x16xf32> to vector<64x16xf32>
    %70 = vector.extract_strided_slice %68 {offsets = [64, 0], sizes = [64, 16], strides = [1, 1]} : vector<256x16xf32> to vector<64x16xf32>
    %71 = vector.extract_strided_slice %68 {offsets = [128, 0], sizes = [64, 16], strides = [1, 1]} : vector<256x16xf32> to vector<64x16xf32>
    %72 = vector.extract_strided_slice %68 {offsets = [192, 0], sizes = [64, 16], strides = [1, 1]} : vector<256x16xf32> to vector<64x16xf32>
    %73 = tpu.iota {dimensions = array<i32: 0>} : vector<64x16xi32>
    %c8_i32 = arith.constant 8 : i32
    %74 = vector.broadcast %c8_i32 : i32 to vector<64x16xi32>
    %75 = arith.cmpi sge, %73, %74 : vector<64x16xi32>
    %c7_i32 = arith.constant 7 : i32
    %76 = vector.broadcast %c7_i32 : i32 to vector<64x16xi32>
    %77 = arith.andi %73, %76 : vector<64x16xi32>
    %c0_i32 = arith.constant 0 : i32
    %78 = vector.broadcast %c0_i32 : i32 to vector<64x16xi32>
    %79 = arith.cmpi ne, %77, %78 : vector<64x16xi32>
    %cst_33 = arith.constant 0.000000e+00 : f32
    %80 = vector.broadcast %cst_33 : f32 to vector<64x16xf32>
    %c9_i32 = arith.constant 9 : i32
    %81 = tpu.dynamic_rotate %72 by %c9_i32 dim 0 : vector<64x16xf32>, i32 -> vector<64x16xf32>
    %82 = arith.andi %75, %79 : vector<64x16xi1>
    %83 = arith.select %82, %81, %80 : vector<64x16xi1>, vector<64x16xf32>
    %c8_i32_34 = arith.constant 8 : i32
    %84 = tpu.dynamic_rotate %71 by %c8_i32_34 dim 0 : vector<64x16xf32>, i32 -> vector<64x16xf32>
    %85 = arith.select %75, %84, %80 : vector<64x16xi1>, vector<64x16xf32>
    %c8_i32_35 = arith.constant 8 : i32
    %86 = tpu.dynamic_rotate %72 by %c8_i32_35 dim 0 : vector<64x16xf32>, i32 -> vector<64x16xf32>
    %87 = arith.select %75, %86, %80 : vector<64x16xi1>, vector<64x16xf32>
    %c1_i32 = arith.constant 1 : i32
    %88 = tpu.dynamic_rotate %70 by %c1_i32 dim 0 : vector<64x16xf32>, i32 -> vector<64x16xf32>
    %89 = arith.select %79, %88, %80 : vector<64x16xi1>, vector<64x16xf32>
    %c1_i32_36 = arith.constant 1 : i32
    %90 = tpu.dynamic_rotate %72 by %c1_i32_36 dim 0 : vector<64x16xf32>, i32 -> vector<64x16xf32>
    %91 = arith.select %79, %90, %80 : vector<64x16xi1>, vector<64x16xf32>
    %92 = tpu.concatenate %83, %85, %87, %89, %69, %70, %91, %71, %72 in 1 : vector<64x16xf32>, vector<64x16xf32>, vector<64x16xf32>, vector<64x16xf32>, vector<64x16xf32>, vector<64x16xf32>, vector<64x16xf32>, vector<64x16xf32>, vector<64x16xf32> -> vector<64x144xf32>
    %93 = arith.truncf %92 : vector<64x144xf32> to vector<64x144xbf16>
    %c0_37 = arith.constant 0 : index
    %c0_38 = arith.constant 0 : index
    %94 = vector.load %arg7[%c0_37, %c0_38] : memref<144x16xbf16, #tpu.memory_space<vmem>>, vector<144x16xbf16>
    %cst_39 = arith.constant dense<0.000000e+00> : vector<64x16xf32>
    %95 = tpu.matmul %93, %94, %cst_39 {dimension_numbers = #tpu.dot_dimension_numbers<[1], [0], [0], [1], [0, 0, 1, 1], [], []>} : vector<64x144xbf16>, vector<144x16xbf16>, vector<64x16xf32> -> vector<64x16xf32>
    %c0_40 = arith.constant 0 : index
    %c0_41 = arith.constant 0 : index
    %96 = vector.load %arg8[%c0_40, %c0_41] : memref<2x16xf32, #tpu.memory_space<vmem>>, vector<1x16xf32>
    %c1_42 = arith.constant 1 : index
    %c0_43 = arith.constant 0 : index
    %97 = vector.load %arg8[%c1_42, %c0_43] : memref<2x16xf32, #tpu.memory_space<vmem>>, vector<1x16xf32>
    %cst_44 = arith.constant dense<0.000000e+00> : vector<16xf32>
    %98 = vector.multi_reduction <add>, %95, %cst_44 [0] : vector<64x16xf32> to vector<16xf32>
    %99 = vector.shape_cast %98 : vector<16xf32> to vector<1x16xf32>
    %100 = arith.mulf %95, %95 : vector<64x16xf32>
    %cst_45 = arith.constant dense<0.000000e+00> : vector<16xf32>
    %101 = vector.multi_reduction <add>, %100, %cst_45 [0] : vector<64x16xf32> to vector<16xf32>
    %102 = vector.shape_cast %101 : vector<16xf32> to vector<1x16xf32>
    %cst_46 = arith.constant 1.562500e-02 : f32
    %103 = vector.broadcast %cst_46 : f32 to vector<1x16xf32>
    %104 = arith.mulf %99, %103 : vector<1x16xf32>
    %cst_47 = arith.constant 1.562500e-02 : f32
    %105 = vector.broadcast %cst_47 : f32 to vector<1x16xf32>
    %106 = arith.mulf %102, %105 : vector<1x16xf32>
    %107 = arith.mulf %104, %104 : vector<1x16xf32>
    %108 = arith.subf %106, %107 : vector<1x16xf32>
    %cst_48 = arith.constant 9.99999974E-6 : f32
    %109 = vector.broadcast %cst_48 : f32 to vector<1x16xf32>
    %110 = arith.addf %108, %109 : vector<1x16xf32>
    %111 = math.rsqrt %110 : vector<1x16xf32>
    %112 = arith.mulf %111, %96 : vector<1x16xf32>
    %113 = arith.mulf %104, %112 : vector<1x16xf32>
    %114 = arith.subf %97, %113 : vector<1x16xf32>
    %115 = vector.broadcast %112 : vector<1x16xf32> to vector<64x16xf32>
    %116 = arith.mulf %95, %115 : vector<64x16xf32>
    %117 = vector.broadcast %114 : vector<1x16xf32> to vector<64x16xf32>
    %118 = arith.addf %116, %117 : vector<64x16xf32>
    %cst_49 = arith.constant 0.000000e+00 : f32
    %119 = vector.broadcast %cst_49 : f32 to vector<64x16xf32>
    %120 = arith.maximumf %118, %119 : vector<64x16xf32>
    %121 = arith.truncf %120 : vector<64x16xf32> to vector<64x16xbf16>
    %c0_50 = arith.constant 0 : index
    %c0_51 = arith.constant 0 : index
    %122 = vector.load %arg9[%c0_50, %c0_51] : memref<16x64xbf16, #tpu.memory_space<vmem>>, vector<16x64xbf16>
    %cst_52 = arith.constant dense<0.000000e+00> : vector<64x64xf32>
    %123 = tpu.matmul %121, %122, %cst_52 {dimension_numbers = #tpu.dot_dimension_numbers<[1], [0], [0], [1], [0, 0, 1, 1], [], []>} : vector<64x16xbf16>, vector<16x64xbf16>, vector<64x64xf32> -> vector<64x64xf32>
    %124 = arith.addf %123, %41 : vector<64x64xf32>
    %c0_53 = arith.constant 0 : index
    %c0_54 = arith.constant 0 : index
    %125 = vector.load %arg11[%c0_53, %c0_54] : memref<64x64xbf16, #tpu.memory_space<vmem>>, vector<64x64xbf16>
    %126 = arith.truncf %124 : vector<64x64xf32> to vector<64x64xbf16>
    %cst_55 = arith.constant dense<0.000000e+00> : vector<64x64xf32>
    %127 = tpu.matmul %125, %126, %cst_55 {dimension_numbers = #tpu.dot_dimension_numbers<[1], [0], [0], [1], [0, 0, 1, 1], [], []>} : vector<64x64xbf16>, vector<64x64xbf16>, vector<64x64xf32> -> vector<64x64xf32>
    %c0_56 = arith.constant 0 : index
    %c0_57 = arith.constant 0 : index
    %128 = vector.load %arg12[%c0_56, %c0_57] : memref<2x64xf32, #tpu.memory_space<vmem>>, vector<1x64xf32>
    %c1_58 = arith.constant 1 : index
    %c0_59 = arith.constant 0 : index
    %129 = vector.load %arg12[%c1_58, %c0_59] : memref<2x64xf32, #tpu.memory_space<vmem>>, vector<1x64xf32>
    %cst_60 = arith.constant dense<0.000000e+00> : vector<64xf32>
    %130 = vector.multi_reduction <add>, %127, %cst_60 [0] : vector<64x64xf32> to vector<64xf32>
    %131 = vector.shape_cast %130 : vector<64xf32> to vector<1x64xf32>
    %132 = arith.mulf %127, %127 : vector<64x64xf32>
    %cst_61 = arith.constant dense<0.000000e+00> : vector<64xf32>
    %133 = vector.multi_reduction <add>, %132, %cst_61 [0] : vector<64x64xf32> to vector<64xf32>
    %134 = vector.shape_cast %133 : vector<64xf32> to vector<1x64xf32>
    %135 = tpu.iota {dimensions = array<i32: 1>} : vector<1x64xi32>
    %c1_i32_62 = arith.constant 1 : i32
    %136 = vector.broadcast %c1_i32_62 : i32 to vector<1x64xi32>
    %137 = arith.andi %135, %136 : vector<1x64xi32>
    %c0_i32_63 = arith.constant 0 : i32
    %138 = vector.broadcast %c0_i32_63 : i32 to vector<1x64xi32>
    %139 = arith.cmpi eq, %137, %138 : vector<1x64xi32>
    %c63_i32 = arith.constant 63 : i32
    %140 = tpu.dynamic_rotate %131 by %c63_i32 dim 1 : vector<1x64xf32>, i32 -> vector<1x64xf32>
    %c1_i32_64 = arith.constant 1 : i32
    %141 = tpu.dynamic_rotate %131 by %c1_i32_64 dim 1 : vector<1x64xf32>, i32 -> vector<1x64xf32>
    %142 = arith.select %139, %140, %141 : vector<1x64xi1>, vector<1x64xf32>
    %143 = arith.addf %131, %142 : vector<1x64xf32>
    %c63_i32_65 = arith.constant 63 : i32
    %144 = tpu.dynamic_rotate %134 by %c63_i32_65 dim 1 : vector<1x64xf32>, i32 -> vector<1x64xf32>
    %c1_i32_66 = arith.constant 1 : i32
    %145 = tpu.dynamic_rotate %134 by %c1_i32_66 dim 1 : vector<1x64xf32>, i32 -> vector<1x64xf32>
    %146 = arith.select %139, %144, %145 : vector<1x64xi1>, vector<1x64xf32>
    %147 = arith.addf %134, %146 : vector<1x64xf32>
    %cst_67 = arith.constant 7.812500e-03 : f32
    %148 = vector.broadcast %cst_67 : f32 to vector<1x64xf32>
    %149 = arith.mulf %143, %148 : vector<1x64xf32>
    %cst_68 = arith.constant 7.812500e-03 : f32
    %150 = vector.broadcast %cst_68 : f32 to vector<1x64xf32>
    %151 = arith.mulf %147, %150 : vector<1x64xf32>
    %152 = arith.mulf %149, %149 : vector<1x64xf32>
    %153 = arith.subf %151, %152 : vector<1x64xf32>
    %cst_69 = arith.constant 9.99999974E-6 : f32
    %154 = vector.broadcast %cst_69 : f32 to vector<1x64xf32>
    %155 = arith.addf %153, %154 : vector<1x64xf32>
    %156 = math.rsqrt %155 : vector<1x64xf32>
    %157 = arith.mulf %156, %128 : vector<1x64xf32>
    %158 = arith.mulf %149, %157 : vector<1x64xf32>
    %159 = arith.subf %129, %158 : vector<1x64xf32>
    %160 = vector.broadcast %157 : vector<1x64xf32> to vector<64x64xf32>
    %161 = arith.mulf %127, %160 : vector<64x64xf32>
    %162 = vector.broadcast %159 : vector<1x64xf32> to vector<64x64xf32>
    %163 = arith.addf %161, %162 : vector<64x64xf32>
    %cst_70 = arith.constant 0.000000e+00 : f32
    %164 = vector.broadcast %cst_70 : f32 to vector<64x64xf32>
    %165 = arith.maximumf %163, %164 : vector<64x64xf32>
    %166 = arith.truncf %165 : vector<64x64xf32> to vector<64x64xbf16>
    %167 = vector.extract_strided_slice %166 {offsets = [0, 0], sizes = [16, 64], strides = [1, 1]} : vector<64x64xbf16> to vector<16x64xbf16>
    %c0_71 = arith.constant 0 : index
    %c0_72 = arith.constant 0 : index
    %168 = vector.load %arg18[%c0_71, %c0_72] : memref<64x128xbf16, #tpu.memory_space<vmem>>, vector<64x128xbf16>
    %cst_73 = arith.constant dense<0.000000e+00> : vector<16x128xf32>
    %169 = tpu.matmul %167, %168, %cst_73 {dimension_numbers = #tpu.dot_dimension_numbers<[1], [0], [0], [1], [0, 0, 1, 1], [], []>} : vector<16x64xbf16>, vector<64x128xbf16>, vector<16x128xf32> -> vector<16x128xf32>
    %c0_74 = arith.constant 0 : index
    %c0_75 = arith.constant 0 : index
    %170 = vector.load %arg13[%c0_74, %c0_75] : memref<64x32xbf16, #tpu.memory_space<vmem>>, vector<64x32xbf16>
    %cst_76 = arith.constant dense<0.000000e+00> : vector<64x32xf32>
    %171 = tpu.matmul %166, %170, %cst_76 {dimension_numbers = #tpu.dot_dimension_numbers<[1], [0], [0], [1], [0, 0, 1, 1], [], []>} : vector<64x64xbf16>, vector<64x32xbf16>, vector<64x32xf32> -> vector<64x32xf32>
    %c0_77 = arith.constant 0 : index
    %c0_78 = arith.constant 0 : index
    %172 = vector.load %arg14[%c0_77, %c0_78] : memref<2x32xf32, #tpu.memory_space<vmem>>, vector<1x32xf32>
    %c1_79 = arith.constant 1 : index
    %c0_80 = arith.constant 0 : index
    %173 = vector.load %arg14[%c1_79, %c0_80] : memref<2x32xf32, #tpu.memory_space<vmem>>, vector<1x32xf32>
    %cst_81 = arith.constant dense<0.000000e+00> : vector<32xf32>
    %174 = vector.multi_reduction <add>, %171, %cst_81 [0] : vector<64x32xf32> to vector<32xf32>
    %175 = vector.shape_cast %174 : vector<32xf32> to vector<1x32xf32>
    %176 = arith.mulf %171, %171 : vector<64x32xf32>
    %cst_82 = arith.constant dense<0.000000e+00> : vector<32xf32>
    %177 = vector.multi_reduction <add>, %176, %cst_82 [0] : vector<64x32xf32> to vector<32xf32>
    %178 = vector.shape_cast %177 : vector<32xf32> to vector<1x32xf32>
    %cst_83 = arith.constant 1.562500e-02 : f32
    %179 = vector.broadcast %cst_83 : f32 to vector<1x32xf32>
    %180 = arith.mulf %175, %179 : vector<1x32xf32>
    %cst_84 = arith.constant 1.562500e-02 : f32
    %181 = vector.broadcast %cst_84 : f32 to vector<1x32xf32>
    %182 = arith.mulf %178, %181 : vector<1x32xf32>
    %183 = arith.mulf %180, %180 : vector<1x32xf32>
    %184 = arith.subf %182, %183 : vector<1x32xf32>
    %cst_85 = arith.constant 9.99999974E-6 : f32
    %185 = vector.broadcast %cst_85 : f32 to vector<1x32xf32>
    %186 = arith.addf %184, %185 : vector<1x32xf32>
    %187 = math.rsqrt %186 : vector<1x32xf32>
    %188 = arith.mulf %187, %172 : vector<1x32xf32>
    %189 = arith.mulf %180, %188 : vector<1x32xf32>
    %190 = arith.subf %173, %189 : vector<1x32xf32>
    %191 = vector.broadcast %188 : vector<1x32xf32> to vector<64x32xf32>
    %192 = arith.mulf %171, %191 : vector<64x32xf32>
    %193 = vector.broadcast %190 : vector<1x32xf32> to vector<64x32xf32>
    %194 = arith.addf %192, %193 : vector<64x32xf32>
    %cst_86 = arith.constant 0.000000e+00 : f32
    %195 = vector.broadcast %cst_86 : f32 to vector<64x32xf32>
    %196 = arith.maximumf %194, %195 : vector<64x32xf32>
    %197 = vector.extract_strided_slice %196 {offsets = [0, 0], sizes = [16, 32], strides = [1, 1]} : vector<64x32xf32> to vector<16x32xf32>
    %198 = vector.extract_strided_slice %196 {offsets = [16, 0], sizes = [16, 32], strides = [1, 1]} : vector<64x32xf32> to vector<16x32xf32>
    %199 = vector.extract_strided_slice %196 {offsets = [32, 0], sizes = [16, 32], strides = [1, 1]} : vector<64x32xf32> to vector<16x32xf32>
    %200 = vector.extract_strided_slice %196 {offsets = [48, 0], sizes = [16, 32], strides = [1, 1]} : vector<64x32xf32> to vector<16x32xf32>
    %201 = tpu.iota {dimensions = array<i32: 0>} : vector<16x32xi32>
    %c4_i32 = arith.constant 4 : i32
    %202 = vector.broadcast %c4_i32 : i32 to vector<16x32xi32>
    %203 = arith.cmpi sge, %201, %202 : vector<16x32xi32>
    %c3_i32 = arith.constant 3 : i32
    %204 = vector.broadcast %c3_i32 : i32 to vector<16x32xi32>
    %205 = arith.andi %201, %204 : vector<16x32xi32>
    %c0_i32_87 = arith.constant 0 : i32
    %206 = vector.broadcast %c0_i32_87 : i32 to vector<16x32xi32>
    %207 = arith.cmpi ne, %205, %206 : vector<16x32xi32>
    %cst_88 = arith.constant 0.000000e+00 : f32
    %208 = vector.broadcast %cst_88 : f32 to vector<16x32xf32>
    %c5_i32 = arith.constant 5 : i32
    %209 = tpu.dynamic_rotate %200 by %c5_i32 dim 0 : vector<16x32xf32>, i32 -> vector<16x32xf32>
    %210 = arith.andi %203, %207 : vector<16x32xi1>
    %211 = arith.select %210, %209, %208 : vector<16x32xi1>, vector<16x32xf32>
    %c4_i32_89 = arith.constant 4 : i32
    %212 = tpu.dynamic_rotate %199 by %c4_i32_89 dim 0 : vector<16x32xf32>, i32 -> vector<16x32xf32>
    %213 = arith.select %203, %212, %208 : vector<16x32xi1>, vector<16x32xf32>
    %c4_i32_90 = arith.constant 4 : i32
    %214 = tpu.dynamic_rotate %200 by %c4_i32_90 dim 0 : vector<16x32xf32>, i32 -> vector<16x32xf32>
    %215 = arith.select %203, %214, %208 : vector<16x32xi1>, vector<16x32xf32>
    %c1_i32_91 = arith.constant 1 : i32
    %216 = tpu.dynamic_rotate %198 by %c1_i32_91 dim 0 : vector<16x32xf32>, i32 -> vector<16x32xf32>
    %217 = arith.select %207, %216, %208 : vector<16x32xi1>, vector<16x32xf32>
    %c1_i32_92 = arith.constant 1 : i32
    %218 = tpu.dynamic_rotate %200 by %c1_i32_92 dim 0 : vector<16x32xf32>, i32 -> vector<16x32xf32>
    %219 = arith.select %207, %218, %208 : vector<16x32xi1>, vector<16x32xf32>
    %220 = tpu.concatenate %211, %213, %215, %217, %197, %198, %219, %199, %200 in 1 : vector<16x32xf32>, vector<16x32xf32>, vector<16x32xf32>, vector<16x32xf32>, vector<16x32xf32>, vector<16x32xf32>, vector<16x32xf32>, vector<16x32xf32>, vector<16x32xf32> -> vector<16x288xf32>
    %221 = arith.truncf %220 : vector<16x288xf32> to vector<16x288xbf16>
    %c0_93 = arith.constant 0 : index
    %c0_94 = arith.constant 0 : index
    %222 = vector.load %arg15[%c0_93, %c0_94] : memref<288x32xbf16, #tpu.memory_space<vmem>>, vector<288x32xbf16>
    %cst_95 = arith.constant dense<0.000000e+00> : vector<16x32xf32>
    %223 = tpu.matmul %221, %222, %cst_95 {dimension_numbers = #tpu.dot_dimension_numbers<[1], [0], [0], [1], [0, 0, 1, 1], [], []>} : vector<16x288xbf16>, vector<288x32xbf16>, vector<16x32xf32> -> vector<16x32xf32>
    %c0_96 = arith.constant 0 : index
    %c0_97 = arith.constant 0 : index
    %224 = vector.load %arg16[%c0_96, %c0_97] : memref<2x32xf32, #tpu.memory_space<vmem>>, vector<1x32xf32>
    %c1_98 = arith.constant 1 : index
    %c0_99 = arith.constant 0 : index
    %225 = vector.load %arg16[%c1_98, %c0_99] : memref<2x32xf32, #tpu.memory_space<vmem>>, vector<1x32xf32>
    %cst_100 = arith.constant dense<0.000000e+00> : vector<32xf32>
    %226 = vector.multi_reduction <add>, %223, %cst_100 [0] : vector<16x32xf32> to vector<32xf32>
    %227 = vector.shape_cast %226 : vector<32xf32> to vector<1x32xf32>
    %228 = arith.mulf %223, %223 : vector<16x32xf32>
    %cst_101 = arith.constant dense<0.000000e+00> : vector<32xf32>
    %229 = vector.multi_reduction <add>, %228, %cst_101 [0] : vector<16x32xf32> to vector<32xf32>
    %230 = vector.shape_cast %229 : vector<32xf32> to vector<1x32xf32>
    %cst_102 = arith.constant 6.250000e-02 : f32
    %231 = vector.broadcast %cst_102 : f32 to vector<1x32xf32>
    %232 = arith.mulf %227, %231 : vector<1x32xf32>
    %cst_103 = arith.constant 6.250000e-02 : f32
    %233 = vector.broadcast %cst_103 : f32 to vector<1x32xf32>
    %234 = arith.mulf %230, %233 : vector<1x32xf32>
    %235 = arith.mulf %232, %232 : vector<1x32xf32>
    %236 = arith.subf %234, %235 : vector<1x32xf32>
    %cst_104 = arith.constant 9.99999974E-6 : f32
    %237 = vector.broadcast %cst_104 : f32 to vector<1x32xf32>
    %238 = arith.addf %236, %237 : vector<1x32xf32>
    %239 = math.rsqrt %238 : vector<1x32xf32>
    %240 = arith.mulf %239, %224 : vector<1x32xf32>
    %241 = arith.mulf %232, %240 : vector<1x32xf32>
    %242 = arith.subf %225, %241 : vector<1x32xf32>
    %243 = vector.broadcast %240 : vector<1x32xf32> to vector<16x32xf32>
    %244 = arith.mulf %223, %243 : vector<16x32xf32>
    %245 = vector.broadcast %242 : vector<1x32xf32> to vector<16x32xf32>
    %246 = arith.addf %244, %245 : vector<16x32xf32>
    %cst_105 = arith.constant 0.000000e+00 : f32
    %247 = vector.broadcast %cst_105 : f32 to vector<16x32xf32>
    %248 = arith.maximumf %246, %247 : vector<16x32xf32>
    %249 = arith.truncf %248 : vector<16x32xf32> to vector<16x32xbf16>
    %c0_106 = arith.constant 0 : index
    %c0_107 = arith.constant 0 : index
    %250 = vector.load %arg17[%c0_106, %c0_107] : memref<32x128xbf16, #tpu.memory_space<vmem>>, vector<32x128xbf16>
    %cst_108 = arith.constant dense<0.000000e+00> : vector<16x128xf32>
    %251 = tpu.matmul %249, %250, %cst_108 {dimension_numbers = #tpu.dot_dimension_numbers<[1], [0], [0], [1], [0, 0, 1, 1], [], []>} : vector<16x32xbf16>, vector<32x128xbf16>, vector<16x128xf32> -> vector<16x128xf32>
    %252 = arith.addf %251, %169 : vector<16x128xf32>
    %c0_109 = arith.constant 0 : index
    %c0_110 = arith.constant 0 : index
    %c0_111 = arith.constant 0 : index
    %253 = vector.load %arg19[%c0_109, %c0_110, %c0_111] : memref<1x16x128xf32, #tpu.memory_space<vmem>>, vector<1x16x128xf32>
    %254 = vector.shape_cast %253 : vector<1x16x128xf32> to vector<16x128xf32>
    %255 = vector.shape_cast %252 : vector<16x128xf32> to vector<1x16x128xf32>
    tpu.vector_store %arg19[%c0_109, %c0_110, %c0_111], %255 {strides = array<i32>} : memref<1x16x128xf32, #tpu.memory_space<vmem>>, vector<1x16x128xf32>,
    return
  }
  func.func @transform_0(%arg0: i32) -> (i32, i32, i32) {
    %c0_i32 = arith.constant 0 : i32
    %c0_i32_0 = arith.constant 0 : i32
    %c0_i32_1 = arith.constant 0 : i32
    return %arg0, %c0_i32, %c0_i32_0 : i32, i32, i32
  }
  func.func @transform_1(%arg0: i32) -> (i32, i32) {
    %c0_i32 = arith.constant 0 : i32
    %c0_i32_0 = arith.constant 0 : i32
    %c0_i32_1 = arith.constant 0 : i32
    return %c0_i32, %c0_i32_0 : i32, i32
  }
  func.func @transform_2(%arg0: i32) -> (i32, i32) {
    %c0_i32 = arith.constant 0 : i32
    %c0_i32_0 = arith.constant 0 : i32
    %c0_i32_1 = arith.constant 0 : i32
    return %c0_i32, %c0_i32_0 : i32, i32
  }
  func.func @transform_3(%arg0: i32) -> (i32, i32) {
    %c0_i32 = arith.constant 0 : i32
    %c0_i32_0 = arith.constant 0 : i32
    %c0_i32_1 = arith.constant 0 : i32
    return %c0_i32, %c0_i32_0 : i32, i32
  }
  func.func @transform_4(%arg0: i32) -> (i32, i32) {
    %c0_i32 = arith.constant 0 : i32
    %c0_i32_0 = arith.constant 0 : i32
    %c0_i32_1 = arith.constant 0 : i32
    return %c0_i32, %c0_i32_0 : i32, i32
  }
  func.func @transform_5(%arg0: i32) -> (i32, i32) {
    %c0_i32 = arith.constant 0 : i32
    %c0_i32_0 = arith.constant 0 : i32
    %c0_i32_1 = arith.constant 0 : i32
    return %c0_i32, %c0_i32_0 : i32, i32
  }
  func.func @transform_6(%arg0: i32) -> (i32, i32) {
    %c0_i32 = arith.constant 0 : i32
    %c0_i32_0 = arith.constant 0 : i32
    %c0_i32_1 = arith.constant 0 : i32
    return %c0_i32, %c0_i32_0 : i32, i32
  }
  func.func @transform_7(%arg0: i32) -> (i32, i32) {
    %c0_i32 = arith.constant 0 : i32
    %c0_i32_0 = arith.constant 0 : i32
    %c0_i32_1 = arith.constant 0 : i32
    return %c0_i32, %c0_i32_0 : i32, i32
  }
  func.func @transform_8(%arg0: i32) -> (i32, i32) {
    %c0_i32 = arith.constant 0 : i32
    %c0_i32_0 = arith.constant 0 : i32
    %c0_i32_1 = arith.constant 0 : i32
    return %c0_i32, %c0_i32_0 : i32, i32
  }
  func.func @transform_9(%arg0: i32) -> (i32, i32) {
    %c0_i32 = arith.constant 0 : i32
    %c0_i32_0 = arith.constant 0 : i32
    %c0_i32_1 = arith.constant 0 : i32
    return %c0_i32, %c0_i32_0 : i32, i32
  }
  func.func @transform_10(%arg0: i32) -> (i32, i32) {
    %c0_i32 = arith.constant 0 : i32
    %c0_i32_0 = arith.constant 0 : i32
    %c0_i32_1 = arith.constant 0 : i32
    return %c0_i32, %c0_i32_0 : i32, i32
  }
  func.func @transform_11(%arg0: i32) -> (i32, i32) {
    %c0_i32 = arith.constant 0 : i32
    %c0_i32_0 = arith.constant 0 : i32
    %c0_i32_1 = arith.constant 0 : i32
    return %c0_i32, %c0_i32_0 : i32, i32
  }
  func.func @transform_12(%arg0: i32) -> (i32, i32) {
    %c0_i32 = arith.constant 0 : i32
    %c0_i32_0 = arith.constant 0 : i32
    %c0_i32_1 = arith.constant 0 : i32
    return %c0_i32, %c0_i32_0 : i32, i32
  }
  func.func @transform_13(%arg0: i32) -> (i32, i32) {
    %c0_i32 = arith.constant 0 : i32
    %c0_i32_0 = arith.constant 0 : i32
    %c0_i32_1 = arith.constant 0 : i32
    return %c0_i32, %c0_i32_0 : i32, i32
  }
  func.func @transform_14(%arg0: i32) -> (i32, i32) {
    %c0_i32 = arith.constant 0 : i32
    %c0_i32_0 = arith.constant 0 : i32
    %c0_i32_1 = arith.constant 0 : i32
    return %c0_i32, %c0_i32_0 : i32, i32
  }
  func.func @transform_15(%arg0: i32) -> (i32, i32) {
    %c0_i32 = arith.constant 0 : i32
    %c0_i32_0 = arith.constant 0 : i32
    %c0_i32_1 = arith.constant 0 : i32
    return %c0_i32, %c0_i32_0 : i32, i32
  }
  func.func @transform_16(%arg0: i32) -> (i32, i32) {
    %c0_i32 = arith.constant 0 : i32
    %c0_i32_0 = arith.constant 0 : i32
    %c0_i32_1 = arith.constant 0 : i32
    return %c0_i32, %c0_i32_0 : i32, i32
  }
  func.func @transform_17(%arg0: i32) -> (i32, i32) {
    %c0_i32 = arith.constant 0 : i32
    %c0_i32_0 = arith.constant 0 : i32
    %c0_i32_1 = arith.constant 0 : i32
    return %c0_i32, %c0_i32_0 : i32, i32
  }
  func.func @transform_18(%arg0: i32) -> (i32, i32, i32) {
    %c0_i32 = arith.constant 0 : i32
    %c0_i32_0 = arith.constant 0 : i32
    %c0_i32_1 = arith.constant 0 : i32
    return %arg0, %c0_i32, %c0_i32_0 : i32, i32, i32
  }
}

</mosaic_0001>

<llo_original>
// kernel: intra_frame_residual.1
$region0: #{intra_frame_residual.1}
  #allocation0 [shape = 'u32[]', space=smem, size = 0x4, offset = 0x4, fixed_abs, tag = 'smem constant byte address 0x4 - core index']
  #allocation1 [shape = 'u32[144,128]{1,0:T(1,128)}', space=vmem, size = 0x12000, scoped, tag = 'internal scratch']
  %s0 = inlined_call_operand.vmem [shape: bf16[2,256,27], index: 0, kind: input, shape index: {}]
  %s1 = inlined_call_operand.vmem [shape: bf16[27,9], index: 1, kind: input, shape index: {}]
  %s2 = inlined_call_operand.vmem [shape: f32[1,9], index: 2, kind: input, shape index: {}]
  %s3 = inlined_call_operand.vmem [shape: f32[2,9], index: 3, kind: input, shape index: {}]
  %s4 = inlined_call_operand.vmem [shape: bf16[9,16], index: 4, kind: input, shape index: {}]
  %s5 = inlined_call_operand.vmem [shape: f32[2,16], index: 5, kind: input, shape index: {}]
  %s6 = inlined_call_operand.vmem [shape: bf16[144,16], index: 6, kind: input, shape index: {}]
  %s7 = inlined_call_operand.vmem [shape: f32[2,16], index: 7, kind: input, shape index: {}]
  %s8 = inlined_call_operand.vmem [shape: bf16[16,64], index: 8, kind: input, shape index: {}]
  %s9 = inlined_call_operand.vmem [shape: bf16[9,64], index: 9, kind: input, shape index: {}]
  %s10 = inlined_call_operand.vmem [shape: bf16[64,64], index: 10, kind: input, shape index: {}]
  %s11 = inlined_call_operand.vmem [shape: f32[2,64], index: 11, kind: input, shape index: {}]
  %s12 = inlined_call_operand.vmem [shape: bf16[64,32], index: 12, kind: input, shape index: {}]
  %s13 = inlined_call_operand.vmem [shape: f32[2,32], index: 13, kind: input, shape index: {}]
  %s14 = inlined_call_operand.vmem [shape: bf16[288,32], index: 14, kind: input, shape index: {}]
  %s15 = inlined_call_operand.vmem [shape: f32[2,32], index: 15, kind: input, shape index: {}]
  %s16 = inlined_call_operand.vmem [shape: bf16[32,128], index: 16, kind: input, shape index: {}]
  %s17 = inlined_call_operand.vmem [shape: bf16[64,128], index: 17, kind: input, shape index: {}]
  %s18 = inlined_call_operand.hbm [shape: f32[2,16,128], index: 18, kind: output, shape index: {}]
  %s19 = sld [smem:[#allocation0]]
  $region105: #{intra_frame_residual.1} parent=0
    _
  %s21 = ssub.s32 1, %s19
  %s22 = scalar_select 0, %s21, %s19
  $region1: #{intra_frame_residual.1} parent=0
    #allocation2 [shape = 'u8[16384]{0}', space=vmem, size = 0x4000, scoped, tag = 'output window, operand 0']
    #allocation3 [shape = 's32[2]{0}', space=sflag, size = 0x8, scoped, tag = 'scoped memory for intra_frame_residual.1']
    %23 = vsyncpa [#allocation3], 0
    %s24 = scalar_lea.sflag [#allocation3], 1
    %25 = vsyncpa %s24, 0
    loop: start=0, step=1, limit=4
    $region2: #{intra_frame_residual.1} parent=1 // loop_pre_header
      _
    $region3: #{intra_frame_residual.1} parent=1 // loop_header
      %s27 = sphi 0, %s31
      %p28 = scmp.ge.s32.totalorder %s27, 4
      %s37 = sphi 0, %s39
      %s40 = sphi 0, %s37
      %s41 = sphi 0, %s40
      %s57 = sphi 0, %s41
      %s61 = sphi 0, %s61
      %s63 = sphi 0, %s61
      %s64 = sphi 0, %s63
      %s78 = sphi 0, %s64
      %s82 = sphi 0, %s82
      %s84 = sphi 0, %s82
      %s85 = sphi 0, %s84
      %s99 = sphi 0, %s85
      %s103 = sphi 0, %s103
      %s105 = sphi 0, %s103
      %s106 = sphi 0, %s105
      %s120 = sphi 0, %s106
      %s124 = sphi 0, %s124
      %s126 = sphi 0, %s124
      %s127 = sphi 0, %s126
      %s141 = sphi 0, %s127
      %s145 = sphi 0, %s145
      %s147 = sphi 0, %s145
      %s148 = sphi 0, %s147
      %s162 = sphi 0, %s148
      %s166 = sphi 0, %s166
      %s168 = sphi 0, %s166
      %s169 = sphi 0, %s168
      %s183 = sphi 0, %s169
      %s187 = sphi 0, %s187
      %s189 = sphi 0, %s187
      %s190 = sphi 0, %s189
      %s204 = sphi 0, %s190
      %s208 = sphi 0, %s208
      %s210 = sphi 0, %s208
      %s211 = sphi 0, %s210
      %s225 = sphi 0, %s211
      %s229 = sphi 0, %s229
      %s231 = sphi 0, %s229
      %s232 = sphi 0, %s231
      %s246 = sphi 0, %s232
      %s250 = sphi 0, %s250
      %s252 = sphi 0, %s250
      %s253 = sphi 0, %s252
      %s267 = sphi 0, %s253
      %s271 = sphi 0, %s271
      %s273 = sphi 0, %s271
      %s274 = sphi 0, %s273
      %s288 = sphi 0, %s274
      %s292 = sphi 0, %s292
      %s294 = sphi 0, %s292
      %s295 = sphi 0, %s294
      %s309 = sphi 0, %s295
      %s313 = sphi 0, %s313
      %s315 = sphi 0, %s313
      %s316 = sphi 0, %s315
      %s330 = sphi 0, %s316
      %s334 = sphi 0, %s334
      %s336 = sphi 0, %s334
      %s337 = sphi 0, %s336
      %s351 = sphi 0, %s337
      %s355 = sphi 0, %s355
      %s357 = sphi 0, %s355
      %s358 = sphi 0, %s357
      %s372 = sphi 0, %s358
      %s376 = sphi 0, %s376
      %s378 = sphi 0, %s376
      %s379 = sphi 0, %s378
      %s393 = sphi 0, %s379
      %s397 = sphi 0, %s397
      %s399 = sphi 0, %s397
      %s400 = sphi 0, %s399
      %s414 = sphi 0, %s400
      %s420 = sphi 0, %s422
      %s423 = sphi 0, %s420
      %s424 = sphi 0, %s423
      %s440 = sphi 0, %s424
    $region4: #{intra_frame_residual.1} parent=1 // loop_header_branch
      %30 = sbr.rel (%p28) target = $region8
    $region5: #{intra_frame_residual.1} parent=1 // loop_body
      %s32 = ssub.s32 %s27, 1
      %s33 = ssub.s32 %s27, 2
      %s34 = sadd.s32 %s27, 1
      %s35 = ssub.s32 %s27, %s34
      %p36 = scmp.eq.s32.totalorder %s35, 0
      %s38 = sadd.s32 %s37, 1
      %s39 = scalar_select %p36, %s37, %s38
      %p42 = pneg %p36
      %p43 = scmp.eq.s32.totalorder %s27, 1
      %p44 = por %p42, %p43
      %p45 = scmp.ne.s32.totalorder %s37, %s40
      %p46 = scmp.eq.s32.totalorder %s27, 0
      %p47 = por %p45, %p46
      %p48 = scmp.ne.s32.totalorder %s37, %s40
      %p49 = scmp.eq.s32.totalorder %s32, 1
      %p50 = por %p48, %p49
      %p51 = scmp.ne.s32.totalorder %s40, %s41
      %p52 = scmp.eq.s32.totalorder %s32, 0
      %p53 = por %p51, %p52
      %p54 = scmp.ne.s32.totalorder %s40, %s41
      %p55 = scmp.eq.s32.totalorder %s33, 1
      %p56 = por %p54, %p55
      %p58 = scmp.ne.s32.totalorder %s41, %s57
      %p59 = scmp.eq.s32.totalorder %s33, 0
      %p60 = por %p58, %p59
      %s62 = sadd.s32 %s61, 1
      %p65 = scmp.eq.s32.totalorder %s27, 1
      %p66 = scmp.ne.s32.totalorder %s61, %s63
      %p67 = scmp.eq.s32.totalorder %s27, 0
      %p68 = por %p66, %p67
      %p69 = scmp.ne.s32.totalorder %s61, %s63
      %p70 = scmp.eq.s32.totalorder %s32, 1
      %p71 = por %p69, %p70
      %p72 = scmp.ne.s32.totalorder %s63, %s64
      %p73 = scmp.eq.s32.totalorder %s32, 0
      %p74 = por %p72, %p73
      %p75 = scmp.ne.s32.totalorder %s63, %s64
      %p76 = scmp.eq.s32.totalorder %s33, 1
      %p77 = por %p75, %p76
      %p79 = scmp.ne.s32.totalorder %s64, %s78
      %p80 = scmp.eq.s32.totalorder %s33, 0
      %p81 = por %p79, %p80
      %s83 = sadd.s32 %s82, 1
      %p86 = scmp.eq.s32.totalorder %s27, 1
      %p87 = scmp.ne.s32.totalorder %s82, %s84
      %p88 = scmp.eq.s32.totalorder %s27, 0
      %p89 = por %p87, %p88
      %p90 = scmp.ne.s32.totalorder %s82, %s84
      %p91 = scmp.eq.s32.totalorder %s32, 1
      %p92 = por %p90, %p91
      %p93 = scmp.ne.s32.totalorder %s84, %s85
      %p94 = scmp.eq.s32.totalorder %s32, 0
      %p95 = por %p93, %p94
      %p96 = scmp.ne.s32.totalorder %s84, %s85
      %p97 = scmp.eq.s32.totalorder %s33, 1
      %p98 = por %p96, %p97
      %p100 = scmp.ne.s32.totalorder %s85, %s99
      %p101 = scmp.eq.s32.totalorder %s33, 0
      %p102 = por %p100, %p101
      %s104 = sadd.s32 %s103, 1
      %p107 = scmp.eq.s32.totalorder %s27, 1
      %p108 = scmp.ne.s32.totalorder %s103, %s105
      %p109 = scmp.eq.s32.totalorder %s27, 0
      %p110 = por %p108, %p109
      %p111 = scmp.ne.s32.totalorder %s103, %s105
      %p112 = scmp.eq.s32.totalorder %s32, 1
      %p113 = por %p111, %p112
      %p114 = scmp.ne.s32.totalorder %s105, %s106
      %p115 = scmp.eq.s32.totalorder %s32, 0
      %p116 = por %p114, %p115
      %p117 = scmp.ne.s32.totalorder %s105, %s106
      %p118 = scmp.eq.s32.totalorder %s33, 1
      %p119 = por %p117, %p118
      %p121 = scmp.ne.s32.totalorder %s106, %s120
      %p122 = scmp.eq.s32.totalorder %s33, 0
      %p123 = por %p121, %p122
      %s125 = sadd.s32 %s124, 1
      %p128 = scmp.eq.s32.totalorder %s27, 1
      %p129 = scmp.ne.s32.totalorder %s124, %s126
      %p130 = scmp.eq.s32.totalorder %s27, 0
      %p131 = por %p129, %p130
      %p132 = scmp.ne.s32.totalorder %s124, %s126
      %p133 = scmp.eq.s32.totalorder %s32, 1
      %p134 = por %p132, %p133
      %p135 = scmp.ne.s32.totalorder %s126, %s127
      %p136 = scmp.eq.s32.totalorder %s32, 0
      %p137 = por %p135, %p136
      %p138 = scmp.ne.s32.totalorder %s126, %s127
      %p139 = scmp.eq.s32.totalorder %s33, 1
      %p140 = por %p138, %p139
      %p142 = scmp.ne.s32.totalorder %s127, %s141
      %p143 = scmp.eq.s32.totalorder %s33, 0
      %p144 = por %p142, %p143
      %s146 = sadd.s32 %s145, 1
      %p149 = scmp.eq.s32.totalorder %s27, 1
      %p150 = scmp.ne.s32.totalorder %s145, %s147
      %p151 = scmp.eq.s32.totalorder %s27, 0
      %p152 = por %p150, %p151
      %p153 = scmp.ne.s32.totalorder %s145, %s147
      %p154 = scmp.eq.s32.totalorder %s32, 1
      %p155 = por %p153, %p154
      %p156 = scmp.ne.s32.totalorder %s147, %s148
      %p157 = scmp.eq.s32.totalorder %s32, 0
      %p158 = por %p156, %p157
      %p159 = scmp.ne.s32.totalorder %s147, %s148
      %p160 = scmp.eq.s32.totalorder %s33, 1
      %p161 = por %p159, %p160
      %p163 = scmp.ne.s32.totalorder %s148, %s162
      %p164 = scmp.eq.s32.totalorder %s33, 0
      %p165 = por %p163, %p164
      %s167 = sadd.s32 %s166, 1
      %p170 = scmp.eq.s32.totalorder %s27, 1
      %p171 = scmp.ne.s32.totalorder %s166, %s168
      %p172 = scmp.eq.s32.totalorder %s27, 0
      %p173 = por %p171, %p172
      %p174 = scmp.ne.s32.totalorder %s166, %s168
      %p175 = scmp.eq.s32.totalorder %s32, 1
      %p176 = por %p174, %p175
      %p177 = scmp.ne.s32.totalorder %s168, %s169
      %p178 = scmp.eq.s32.totalorder %s32, 0
      %p179 = por %p177, %p178
      %p180 = scmp.ne.s32.totalorder %s168, %s169
      %p181 = scmp.eq.s32.totalorder %s33, 1
      %p182 = por %p180, %p181
      %p184 = scmp.ne.s32.totalorder %s169, %s183
      %p185 = scmp.eq.s32.totalorder %s33, 0
      %p186 = por %p184, %p185
      %s188 = sadd.s32 %s187, 1
      %p191 = scmp.eq.s32.totalorder %s27, 1
      %p192 = scmp.ne.s32.totalorder %s187, %s189
      %p193 = scmp.eq.s32.totalorder %s27, 0
      %p194 = por %p192, %p193
      %p195 = scmp.ne.s32.totalorder %s187, %s189
      %p196 = scmp.eq.s32.totalorder %s32, 1
      %p197 = por %p195, %p196
      %p198 = scmp.ne.s32.totalorder %s189, %s190
      %p199 = scmp.eq.s32.totalorder %s32, 0
      %p200 = por %p198, %p199
      %p201 = scmp.ne.s32.totalorder %s189, %s190
      %p202 = scmp.eq.s32.totalorder %s33, 1
      %p203 = por %p201, %p202
      %p205 = scmp.ne.s32.totalorder %s190, %s204
      %p206 = scmp.eq.s32.totalorder %s33, 0
      %p207 = por %p205, %p206
      %s209 = sadd.s32 %s208, 1
      %p212 = scmp.eq.s32.totalorder %s27, 1
      %p213 = scmp.ne.s32.totalorder %s208, %s210
      %p214 = scmp.eq.s32.totalorder %s27, 0
      %p215 = por %p213, %p214
      %p216 = scmp.ne.s32.totalorder %s208, %s210
      %p217 = scmp.eq.s32.totalorder %s32, 1
      %p218 = por %p216, %p217
      %p219 = scmp.ne.s32.totalorder %s210, %s211
      %p220 = scmp.eq.s32.totalorder %s32, 0
      %p221 = por %p219, %p220
      %p222 = scmp.ne.s32.totalorder %s210, %s211
      %p223 = scmp.eq.s32.totalorder %s33, 1
      %p224 = por %p222, %p223
      %p226 = scmp.ne.s32.totalorder %s211, %s225
      %p227 = scmp.eq.s32.totalorder %s33, 0
      %p228 = por %p226, %p227
      %s230 = sadd.s32 %s229, 1
      %p233 = scmp.eq.s32.totalorder %s27, 1
      %p234 = scmp.ne.s32.totalorder %s229, %s231
      %p235 = scmp.eq.s32.totalorder %s27, 0
      %p236 = por %p234, %p235
      %p237 = scmp.ne.s32.totalorder %s229, %s231
      %p238 = scmp.eq.s32.totalorder %s32, 1
      %p239 = por %p237, %p238
      %p240 = scmp.ne.s32.totalorder %s231, %s232
      %p241 = scmp.eq.s32.totalorder %s32, 0
      %p242 = por %p240, %p241
      %p243 = scmp.ne.s32.totalorder %s231, %s232
      %p244 = scmp.eq.s32.totalorder %s33, 1
      %p245 = por %p243, %p244
      %p247 = scmp.ne.s32.totalorder %s232, %s246
      %p248 = scmp.eq.s32.totalorder %s33, 0
      %p249 = por %p247, %p248
      %s251 = sadd.s32 %s250, 1
      %p254 = scmp.eq.s32.totalorder %s27, 1
      %p255 = scmp.ne.s32.totalorder %s250, %s252
      %p256 = scmp.eq.s32.totalorder %s27, 0
      %p257 = por %p255, %p256
      %p258 = scmp.ne.s32.totalorder %s250, %s252
      %p259 = scmp.eq.s32.totalorder %s32, 1
      %p260 = por %p258, %p259
      %p261 = scmp.ne.s32.totalorder %s252, %s253
      %p262 = scmp.eq.s32.totalorder %s32, 0
      %p263 = por %p261, %p262
      %p264 = scmp.ne.s32.totalorder %s252, %s253
      %p265 = scmp.eq.s32.totalorder %s33, 1
      %p266 = por %p264, %p265
      %p268 = scmp.ne.s32.totalorder %s253, %s267
      %p269 = scmp.eq.s32.totalorder %s33, 0
      %p270 = por %p268, %p269
      %s272 = sadd.s32 %s271, 1
      %p275 = scmp.eq.s32.totalorder %s27, 1
      %p276 = scmp.ne.s32.totalorder %s271, %s273
      %p277 = scmp.eq.s32.totalorder %s27, 0
      %p278 = por %p276, %p277
      %p279 = scmp.ne.s32.totalorder %s271, %s273
      %p280 = scmp.eq.s32.totalorder %s32, 1
      %p281 = por %p279, %p280
      %p282 = scmp.ne.s32.totalorder %s273, %s274
      %p283 = scmp.eq.s32.totalorder %s32, 0
      %p284 = por %p282, %p283
      %p285 = scmp.ne.s32.totalorder %s273, %s274
      %p286 = scmp.eq.s32.totalorder %s33, 1
      %p287 = por %p285, %p286
      %p289 = scmp.ne.s32.totalorder %s274, %s288
      %p290 = scmp.eq.s32.totalorder %s33, 0
      %p291 = por %p289, %p290
      %s293 = sadd.s32 %s292, 1
      %p296 = scmp.eq.s32.totalorder %s27, 1
      %p297 = scmp.ne.s32.totalorder %s292, %s294
      %p298 = scmp.eq.s32.totalorder %s27, 0
      %p299 = por %p297, %p298
      %p300 = scmp.ne.s32.totalorder %s292, %s294
      %p301 = scmp.eq.s32.totalorder %s32, 1
      %p302 = por %p300, %p301
      %p303 = scmp.ne.s32.totalorder %s294, %s295
      %p304 = scmp.eq.s32.totalorder %s32, 0
      %p305 = por %p303, %p304
      %p306 = scmp.ne.s32.totalorder %s294, %s295
      %p307 = scmp.eq.s32.totalorder %s33, 1
      %p308 = por %p306, %p307
      %p310 = scmp.ne.s32.totalorder %s295, %s309
      %p311 = scmp.eq.s32.totalorder %s33, 0
      %p312 = por %p310, %p311
      %s314 = sadd.s32 %s313, 1
      %p317 = scmp.eq.s32.totalorder %s27, 1
      %p318 = scmp.ne.s32.totalorder %s313, %s315
      %p319 = scmp.eq.s32.totalorder %s27, 0
      %p320 = por %p318, %p319
      %p321 = scmp.ne.s32.totalorder %s313, %s315
      %p322 = scmp.eq.s32.totalorder %s32, 1
      %p323 = por %p321, %p322
      %p324 = scmp.ne.s32.totalorder %s315, %s316
      %p325 = scmp.eq.s32.totalorder %s32, 0
      %p326 = por %p324, %p325
      %p327 = scmp.ne.s32.totalorder %s315, %s316
      %p328 = scmp.eq.s32.totalorder %s33, 1
      %p329 = por %p327, %p328
      %p331 = scmp.ne.s32.totalorder %s316, %s330
      %p332 = scmp.eq.s32.totalorder %s33, 0
      %p333 = por %p331, %p332
      %s335 = sadd.s32 %s334, 1
      %p338 = scmp.eq.s32.totalorder %s27, 1
      %p339 = scmp.ne.s32.totalorder %s334, %s336
      %p340 = scmp.eq.s32.totalorder %s27, 0
      %p341 = por %p339, %p340
      %p342 = scmp.ne.s32.totalorder %s334, %s336
      %p343 = scmp.eq.s32.totalorder %s32, 1
      %p344 = por %p342, %p343
      %p345 = scmp.ne.s32.totalorder %s336, %s337
      %p346 = scmp.eq.s32.totalorder %s32, 0
      %p347 = por %p345, %p346
      %p348 = scmp.ne.s32.totalorder %s336, %s337
      %p349 = scmp.eq.s32.totalorder %s33, 1
      %p350 = por %p348, %p349
      %p352 = scmp.ne.s32.totalorder %s337, %s351
      %p353 = scmp.eq.s32.totalorder %s33, 0
      %p354 = por %p352, %p353
      %s356 = sadd.s32 %s355, 1
      %p359 = scmp.eq.s32.totalorder %s27, 1
      %p360 = scmp.ne.s32.totalorder %s355, %s357
      %p361 = scmp.eq.s32.totalorder %s27, 0
      %p362 = por %p360, %p361
      %p363 = scmp.ne.s32.totalorder %s355, %s357
      %p364 = scmp.eq.s32.totalorder %s32, 1
      %p365 = por %p363, %p364
      %p366 = scmp.ne.s32.totalorder %s357, %s358
      %p367 = scmp.eq.s32.totalorder %s32, 0
      %p368 = por %p366, %p367
      %p369 = scmp.ne.s32.totalorder %s357, %s358
      %p370 = scmp.eq.s32.totalorder %s33, 1
      %p371 = por %p369, %p370
      %p373 = scmp.ne.s32.totalorder %s358, %s372
      %p374 = scmp.eq.s32.totalorder %s33, 0
      %p375 = por %p373, %p374
      %s377 = sadd.s32 %s376, 1
      %p380 = scmp.eq.s32.totalorder %s27, 1
      %p381 = scmp.ne.s32.totalorder %s376, %s378
      %p382 = scmp.eq.s32.totalorder %s27, 0
      %p383 = por %p381, %p382
      %p384 = scmp.ne.s32.totalorder %s376, %s378
      %p385 = scmp.eq.s32.totalorder %s32, 1
      %p386 = por %p384, %p385
      %p387 = scmp.ne.s32.totalorder %s378, %s379
      %p388 = scmp.eq.s32.totalorder %s32, 0
      %p389 = por %p387, %p388
      %p390 = scmp.ne.s32.totalorder %s378, %s379
      %p391 = scmp.eq.s32.totalorder %s33, 1
      %p392 = por %p390, %p391
      %p394 = scmp.ne.s32.totalorder %s379, %s393
      %p395 = scmp.eq.s32.totalorder %s33, 0
      %p396 = por %p394, %p395
      %s398 = sadd.s32 %s397, 1
      %p401 = scmp.eq.s32.totalorder %s27, 1
      %p402 = scmp.ne.s32.totalorder %s397, %s399
      %p403 = scmp.eq.s32.totalorder %s27, 0
      %p404 = por %p402, %p403
      %p405 = scmp.ne.s32.totalorder %s397, %s399
      %p406 = scmp.eq.s32.totalorder %s32, 1
      %p407 = por %p405, %p406
      %p408 = scmp.ne.s32.totalorder %s399, %s400
      %p409 = scmp.eq.s32.totalorder %s32, 0
      %p410 = por %p408, %p409
      %p411 = scmp.ne.s32.totalorder %s399, %s400
      %p412 = scmp.eq.s32.totalorder %s33, 1
      %p413 = por %p411, %p412
      %p415 = scmp.ne.s32.totalorder %s400, %s414
      %p416 = scmp.eq.s32.totalorder %s33, 0
      %p417 = por %p415, %p416
      %s418 = ssub.s32 %s27, %s34
      %p419 = scmp.eq.s32.totalorder %s418, 0
      %s421 = sadd.s32 %s420, 1
      %s422 = scalar_select %p419, %s420, %s421
      %p425 = pneg %p419
      %p426 = scmp.eq.s32.totalorder %s27, 1
      %p427 = por %p425, %p426
      %p428 = scmp.ne.s32.totalorder %s420, %s423
      %p429 = scmp.eq.s32.totalorder %s27, 0
      %p430 = por %p428, %p429
      %p431 = scmp.ne.s32.totalorder %s420, %s423
      %p432 = scmp.eq.s32.totalorder %s32, 1
      %p433 = por %p431, %p432
      %p434 = scmp.ne.s32.totalorder %s423, %s424
      %p435 = scmp.eq.s32.totalorder %s32, 0
      %p436 = por %p434, %p435
      %p437 = scmp.ne.s32.totalorder %s423, %s424
      %p438 = scmp.eq.s32.totalorder %s33, 1
      %p439 = por %p437, %p438
      %p441 = scmp.ne.s32.totalorder %s424, %s440
      %p442 = scmp.eq.s32.totalorder %s33, 0
      %p443 = por %p441, %p442
      %p444 = scmp.le.s32.totalorder 1, %s27
      %p445 = scmp.lt.s32.totalorder %s27, 3
      %p446 = pnand %p444, %p445
      %p447 = pneg %p446
      // Predicated region
      $region9: #{intra_frame_residual.1} parent=5 // pred_check
        _
      $region10: #{intra_frame_residual.1} parent=5 // pred_check_branch
        %449 = sbr.rel (%p446) target = $region12
      $region11: #{intra_frame_residual.1} parent=5 // pred_region
        %s450 = ssub.s32 %s27, 1
        // Predicated region
        $region13: #{intra_frame_residual.1} parent=11 // pred_check
          %p451 = pneg %p74
        $region14: #{intra_frame_residual.1} parent=11 // pred_check_branch
          %453 = sbr.rel (%p451) target = $region16
        $region15: #{intra_frame_residual.1} parent=11 // pred_region
          _
        $region16: #{intra_frame_residual.1} parent=11 // pred_fallthru
          _
        // Predicated region
        $region17: #{intra_frame_residual.1} parent=11 // pred_check
          %p454 = pneg %p95
        $region18: #{intra_frame_residual.1} parent=11 // pred_check_branch
          %456 = sbr.rel (%p454) target = $region20
        $region19: #{intra_frame_residual.1} parent=11 // pred_region
          _
        $region20: #{intra_frame_residual.1} parent=11 // pred_fallthru
          _
        // Predicated region
        $region21: #{intra_frame_residual.1} parent=11 // pred_check
          %p457 = pneg %p116
        $region22: #{intra_frame_residual.1} parent=11 // pred_check_branch
          %459 = sbr.rel (%p457) target = $region24
        $region23: #{intra_frame_residual.1} parent=11 // pred_region
          _
        $region24: #{intra_frame_residual.1} parent=11 // pred_fallthru
          _
        // Predicated region
        $region25: #{intra_frame_residual.1} parent=11 // pred_check
          %p460 = pneg %p137
        $region26: #{intra_frame_residual.1} parent=11 // pred_check_branch
          %462 = sbr.rel (%p460) target = $region28
        $region27: #{intra_frame_residual.1} parent=11 // pred_region
          _
        $region28: #{intra_frame_residual.1} parent=11 // pred_fallthru
          _
        // Predicated region
        $region29: #{intra_frame_residual.1} parent=11 // pred_check
          %p463 = pneg %p158
        $region30: #{intra_frame_residual.1} parent=11 // pred_check_branch
          %465 = sbr.rel (%p463) target = $region32
        $region31: #{intra_frame_residual.1} parent=11 // pred_region
          _
        $region32: #{intra_frame_residual.1} parent=11 // pred_fallthru
          _
        // Predicated region
        $region33: #{intra_frame_residual.1} parent=11 // pred_check
          %p466 = pneg %p179
        $region34: #{intra_frame_residual.1} parent=11 // pred_check_branch
          %468 = sbr.rel (%p466) target = $region36
        $region35: #{intra_frame_residual.1} parent=11 // pred_region
          _
        $region36: #{intra_frame_residual.1} parent=11 // pred_fallthru
          _
        // Predicated region
        $region37: #{intra_frame_residual.1} parent=11 // pred_check
          %p469 = pneg %p200
        $region38: #{intra_frame_residual.1} parent=11 // pred_check_branch
          %471 = sbr.rel (%p469) target = $region40
        $region39: #{intra_frame_residual.1} parent=11 // pred_region
          _
        $region40: #{intra_frame_residual.1} parent=11 // pred_fallthru
          _
        // Predicated region
        $region41: #{intra_frame_residual.1} parent=11 // pred_check
          %p472 = pneg %p221
        $region42: #{intra_frame_residual.1} parent=11 // pred_check_branch
          %474 = sbr.rel (%p472) target = $region44
        $region43: #{intra_frame_residual.1} parent=11 // pred_region
          _
        $region44: #{intra_frame_residual.1} parent=11 // pred_fallthru
          _
        // Predicated region
        $region45: #{intra_frame_residual.1} parent=11 // pred_check
          %p475 = pneg %p242
        $region46: #{intra_frame_residual.1} parent=11 // pred_check_branch
          %477 = sbr.rel (%p475) target = $region48
        $region47: #{intra_frame_residual.1} parent=11 // pred_region
          _
        $region48: #{intra_frame_residual.1} parent=11 // pred_fallthru
          _
        // Predicated region
        $region49: #{intra_frame_residual.1} parent=11 // pred_check
          %p478 = pneg %p263
        $region50: #{intra_frame_residual.1} parent=11 // pred_check_branch
          %480 = sbr.rel (%p478) target = $region52
        $region51: #{intra_frame_residual.1} parent=11 // pred_region
          _
        $region52: #{intra_frame_residual.1} parent=11 // pred_fallthru
          _
        // Predicated region
        $region53: #{intra_frame_residual.1} parent=11 // pred_check
          %p481 = pneg %p284
        $region54: #{intra_frame_residual.1} parent=11 // pred_check_branch
          %483 = sbr.rel (%p481) target = $region56
        $region55: #{intra_frame_residual.1} parent=11 // pred_region
          _
        $region56: #{intra_frame_residual.1} parent=11 // pred_fallthru
          _
        // Predicated region
        $region57: #{intra_frame_residual.1} parent=11 // pred_check
          %p484 = pneg %p305
        $region58: #{intra_frame_residual.1} parent=11 // pred_check_branch
          %486 = sbr.rel (%p484) target = $region60
        $region59: #{intra_frame_residual.1} parent=11 // pred_region
          _
        $region60: #{intra_frame_residual.1} parent=11 // pred_fallthru
          _
        // Predicated region
        $region61: #{intra_frame_residual.1} parent=11 // pred_check
          %p487 = pneg %p326
        $region62: #{intra_frame_residual.1} parent=11 // pred_check_branch
          %489 = sbr.rel (%p487) target = $region64
        $region63: #{intra_frame_residual.1} parent=11 // pred_region
          _
        $region64: #{intra_frame_residual.1} parent=11 // pred_fallthru
          _
        // Predicated region
        $region65: #{intra_frame_residual.1} parent=11 // pred_check
          %p490 = pneg %p347
        $region66: #{intra_frame_residual.1} parent=11 // pred_check_branch
          %492 = sbr.rel (%p490) target = $region68
        $region67: #{intra_frame_residual.1} parent=11 // pred_region
          _
        $region68: #{intra_frame_residual.1} parent=11 // pred_fallthru
          _
        // Predicated region
        $region69: #{intra_frame_residual.1} parent=11 // pred_check
          %p493 = pneg %p368
        $region70: #{intra_frame_residual.1} parent=11 // pred_check_branch
          %495 = sbr.rel (%p493) target = $region72
        $region71: #{intra_frame_residual.1} parent=11 // pred_region
          _
        $region72: #{intra_frame_residual.1} parent=11 // pred_fallthru
          _
        // Predicated region
        $region73: #{intra_frame_residual.1} parent=11 // pred_check
          %p496 = pneg %p389
        $region74: #{intra_frame_residual.1} parent=11 // pred_check_branch
          %498 = sbr.rel (%p496) target = $region76
        $region75: #{intra_frame_residual.1} parent=11 // pred_region
          _
        $region76: #{intra_frame_residual.1} parent=11 // pred_fallthru
          _
        // Predicated region
        $region77: #{intra_frame_residual.1} parent=11 // pred_check
          %p499 = pneg %p410
        $region78: #{intra_frame_residual.1} parent=11 // pred_check_branch
          %501 = sbr.rel (%p499) target = $region80
        $region79: #{intra_frame_residual.1} parent=11 // pred_region
          _
        $region80: #{intra_frame_residual.1} parent=11 // pred_fallthru
          _
      $region12: #{intra_frame_residual.1} parent=5 // pred_fallthru
        _
      %p502 = scmp.lt.s32.totalorder %s27, 2
      // Predicated region
      $region81: #{intra_frame_residual.1} parent=5 // pred_check
        %p503 = pneg %p502
      $region82: #{intra_frame_residual.1} parent=5 // pred_check_branch
        %505 = sbr.rel (%p503) target = $region84
      $region83: #{intra_frame_residual.1} parent=5 // pred_region
        // Predicated region
        $region85: #{intra_frame_residual.1} parent=83 // pred_check
          %p506 = pneg %p47
        $region86: #{intra_frame_residual.1} parent=83 // pred_check_branch
          %508 = sbr.rel (%p506) target = $region88
        $region87: #{intra_frame_residual.1} parent=83 // pred_region
          %p509 = scmp.lt.s32.totalorder %s27, 1
          %s510 = scalar_select %p509, %s27, 1
          %s511 = smul.addr %s510, 32
          %s512 = smul.addr %s511, 4
          %s513 = scalar_lea.vmem %s0, %s512
        $region88: #{intra_frame_residual.1} parent=83 // pred_fallthru
          _
      $region84: #{intra_frame_residual.1} parent=5 // pred_fallthru
        _
      %p514 = scmp.le.s32.totalorder 1, %s27
      %p515 = scmp.lt.s32.totalorder %s27, 3
      %p516 = pnand %p514, %p515
      %p517 = pneg %p516
      // Predicated region
      $region89: #{intra_frame_residual.1} parent=5 // pred_check
        _
      $region90: #{intra_frame_residual.1} parent=5 // pred_check_branch
        %519 = sbr.rel (%p516) target = $region92
      $region91: #{intra_frame_residual.1} parent=5 // pred_region
        %s520 = ssub.s32 %s27, 1
        %p521 = scmp.lt.s32.totalorder %s32, 1
        %s522 = scalar_select %p521, %s32, 1
        %s523 = smul.addr %s522, 32
        %s524 = smul.addr %s523, 4
        %s525 = scalar_lea.vmem %s0, %s524
        %p526 = pneg %p53
        %p527 = pneg %p50
        %p528 = pneg %p74
        %p529 = pneg %p71
        %p530 = pneg %p95
        %p531 = pneg %p92
        %p532 = pneg %p116
        %p533 = pneg %p113
        %p534 = pneg %p137
        %p535 = pneg %p134
        %p536 = pneg %p158
        %p537 = pneg %p155
        %p538 = pneg %p179
        %p539 = pneg %p176
        %p540 = pneg %p200
        %p541 = pneg %p197
        %p542 = pneg %p221
        %p543 = pneg %p218
        %p544 = pneg %p242
        %p545 = pneg %p239
        %p546 = pneg %p263
        %p547 = pneg %p260
        %p548 = pneg %p284
        %p549 = pneg %p281
        %p550 = pneg %p305
        %p551 = pneg %p302
        %p552 = pneg %p326
        %p553 = pneg %p323
        %p554 = pneg %p347
        %p555 = pneg %p344
        %p556 = pneg %p368
        %p557 = pneg %p365
        %p558 = pneg %p389
        %p559 = pneg %p386
        %p560 = pneg %p410
        %p561 = pneg %p407
        %p562 = pneg %p436
        %p563 = pneg %p433
        %s564 = sand.u32 %s423, 1
        %s565 = scalar_lea.sflag [#allocation3], %s564
        %s566 = sand.u32 %s423, 1
        %s567 = smul.addr %s566, 16
        %s568 = scalar_lea.vmem [#allocation2], %s567
        %p569 = scmp.lt.s32.totalorder %s32, 1
        %s570 = scalar_select %p569, %s32, 1
        %s571 = smul.addr %s570, 32
        %s572 = smul.addr %s571, 4
        %s573 = scalar_lea.vmem %s0, %s572
        %v575 = vld [vmem:[%s573] sm:$0xf]
        %v576 = vld [vmem:[%s573 + $0x4] sm:$0xf]
        %v577 = vld [vmem:[%s573 + $0x8] sm:$0xf]
        %v578 = vld [vmem:[%s573 + $0xc] sm:$0xf]
        %v579 = vld [vmem:[%s573 + $0x10] sm:$0xf]
        %v580 = vld [vmem:[%s573 + $0x14] sm:$0xf]
        %v581 = vld [vmem:[%s573 + $0x18] sm:$0xf]
        %v582 = vld [vmem:[%s573 + $0x1c] sm:$0xf]
        %v583 = vld [vmem:[%s573 + $0x20] sm:$0xf]
        %v584 = vld [vmem:[%s573 + $0x24] sm:$0xf]
        %v585 = vld [vmem:[%s573 + $0x28] sm:$0xf]
        %v586 = vld [vmem:[%s573 + $0x2c] sm:$0xf]
        %v587 = vld [vmem:[%s573 + $0x30] sm:$0xf]
        %v588 = vld [vmem:[%s573 + $0x34] sm:$0xf]
        %v589 = vld [vmem:[%s573 + $0x38] sm:$0xf]
        %v590 = vld [vmem:[%s573 + $0x3c] sm:$0xf]
        %v591 = vld [vmem:[%s573 + $0x40] sm:$0xf]
        %v592 = vld [vmem:[%s573 + $0x44] sm:$0xf]
        %v593 = vld [vmem:[%s573 + $0x48] sm:$0xf]
        %v594 = vld [vmem:[%s573 + $0x4c] sm:$0xf]
        %v595 = vld [vmem:[%s573 + $0x50] sm:$0xf]
        %v596 = vld [vmem:[%s573 + $0x54] sm:$0xf]
        %v597 = vld [vmem:[%s573 + $0x58] sm:$0xf]
        %v598 = vld [vmem:[%s573 + $0x5c] sm:$0xf]
        %v599 = vld [vmem:[%s573 + $0x60] sm:$0xf]
        %v600 = vld [vmem:[%s573 + $0x64] sm:$0xf]
        %v601 = vld [vmem:[%s573 + $0x68] sm:$0xf]
        %v602 = vld [vmem:[%s573 + $0x6c] sm:$0xf]
        %v603 = vld [vmem:[%s573 + $0x70] sm:$0xf]
        %v604 = vld [vmem:[%s573 + $0x74] sm:$0xf]
        %v605 = vld [vmem:[%s573 + $0x78] sm:$0xf]
        %v606 = vld [vmem:[%s573 + $0x7c] sm:$0xf]
        %v607 = vld [vmem:[%s1] sm:$0xf]
        %v608 = vld [vmem:[%s1 + $0x4] sm:$0xf]
        %v609 = vld [vmem:[%s1 + $0x8] sm:$0xf]
        %v610 = vld [vmem:[%s1 + $0xc] sm:$0x3]
        %v611 = vld [vmem:[%s2] sm:$0x1]
        %v613 = vlaneseq
        %v614 = vshrl.u32 %v613, 7
        %v615 = vsub.s32 0, %v614
        %v616 = vrot.slane %v611, %v615
        %v650 = vunpack.c.l.b16 %v575
        %v651 = vunpack.c.l.b16 %v576
        %v652 = vunpack.c.l.b16 %v577
        %v653 = vunpack.c.l.b16 %v578
        %v654 = vunpack.c.l.b16 %v579
        %v655 = vunpack.c.l.b16 %v580
        %v656 = vunpack.c.l.b16 %v581
        %v657 = vunpack.c.l.b16 %v582
        %v658 = vunpack.c.l.b16 %v583
        %v659 = vunpack.c.l.b16 %v584
        %v660 = vunpack.c.l.b16 %v585
        %v661 = vunpack.c.l.b16 %v586
        %v662 = vunpack.c.l.b16 %v587
        %v663 = vunpack.c.l.b16 %v588
        %v664 = vunpack.c.l.b16 %v589
        %v665 = vunpack.c.l.b16 %v590
        %v666 = vunpack.c.l.b16 %v591
        %v667 = vunpack.c.l.b16 %v592
        %v668 = vunpack.c.l.b16 %v593
        %v669 = vunpack.c.l.b16 %v594
        %v670 = vunpack.c.l.b16 %v595
        %v671 = vunpack.c.l.b16 %v596
        %v672 = vunpack.c.l.b16 %v597
        %v673 = vunpack.c.l.b16 %v598
        %v674 = vunpack.c.l.b16 %v599
        %v675 = vunpack.c.l.b16 %v600
        %v676 = vunpack.c.l.b16 %v601
        %v677 = vunpack.c.l.b16 %v602
        %v678 = vunpack.c.l.b16 %v603
        %v679 = vunpack.c.l.b16 %v604
        %v680 = vunpack.c.l.b16 %v605
        %v681 = vunpack.c.l.b16 %v606
        %v682 = vpack.c.b16 %v651, %v650
        %v683 = vpack.c.b16 %v653, %v652
        %v684 = vpack.c.b16 %v655, %v654
        %v685 = vpack.c.b16 %v657, %v656
        %v686 = vpack.c.b16 %v659, %v658
        %v687 = vpack.c.b16 %v661, %v660
        %v688 = vpack.c.b16 %v663, %v662
        %v689 = vpack.c.b16 %v665, %v664
        %v690 = vpack.c.b16 %v667, %v666
        %v691 = vpack.c.b16 %v669, %v668
        %v692 = vpack.c.b16 %v671, %v670
        %v693 = vpack.c.b16 %v673, %v672
        %v694 = vpack.c.b16 %v675, %v674
        %v695 = vpack.c.b16 %v677, %v676
        %v696 = vpack.c.b16 %v679, %v678
        %v697 = vpack.c.b16 %v681, %v680
        %v702 = vunpack.c.l.b16 %v607
        %v703 = vunpack.c.l.b16 %v608
        %v704 = vunpack.c.l.b16 %v609
        %v705 = vunpack.c.l.b16 %v610
        %v706 = vpack.c.b16 %v703, %v702
        %v707 = vpack.c.b16 %v705, %v704
        %vm709 = vcmask 220160
        %v711 = vsel %vm709, %v682, 0
        %v714 = vsel %vm709, %v683, 0
        %v717 = vsel %vm709, %v684, 0
        %v720 = vsel %vm709, %v685, 0
        %v723 = vsel %vm709, %v686, 0
        %v726 = vsel %vm709, %v687, 0
        %v729 = vsel %vm709, %v688, 0
        %v732 = vsel %vm709, %v689, 0
        %v735 = vsel %vm709, %v690, 0
        %v738 = vsel %vm709, %v691, 0
        %v741 = vsel %vm709, %v692, 0
        %v744 = vsel %vm709, %v693, 0
        %v747 = vsel %vm709, %v694, 0
        %v750 = vsel %vm709, %v695, 0
        %v753 = vsel %vm709, %v696, 0
        %v756 = vsel %vm709, %v697, 0
        %vm758 = vcmask 1044480
        %vm759 = vcmask 1045504
        %v760 = vsel %vm758, 4294967295, 65535
        %v761 = vsel %vm759, %v760, 0
        %v763 = vand.u32 %v707, %v761
        %765 = vmatprep.subr.bf16.mxu0 0
        %766 = vmatpush1.bf16.msra.mxu0 %v706
        %767 = vmatprep.subr.bf16.mxu0 0
        %768 = vmatpush1.bf16.msra.mxu0 %v763
        %769 = vmatprep.subr.bf16.mxu0 0
        %770 = vmatpush1.bf16.msra.mxu0 0
        %771 = vmatprep.subr.bf16.mxu0 0
        %772 = vmatpush1.bf16.msra.mxu0 0
        %773 = vmatprep.subr.bf16.mxu0 0
        %774 = vmatpush1.bf16.msra.mxu0 0
        %775 = vmatprep.subr.bf16.mxu0 0
        %776 = vmatpush1.bf16.msra.mxu0 0
        %777 = vmatprep.subr.bf16.mxu0 0
        %778 = vmatpush1.bf16.msra.mxu0 0
        %779 = vmatprep.subr.bf16.mxu0 0
        %780 = vmatpush1.bf16.msra.mxu0 0
        %781 = vmatprep.subr.bf16.mxu0 0
        %782 = vmatpush1.bf16.msra.mxu0 0
        %783 = vmatprep.subr.bf16.mxu0 0
        %784 = vmatpush1.bf16.msra.mxu0 0
        %785 = vmatprep.subr.bf16.mxu0 0
        %786 = vmatpush1.bf16.msra.mxu0 0
        %787 = vmatprep.subr.bf16.mxu0 0
        %788 = vmatpush1.bf16.msra.mxu0 0
        %789 = vmatprep.subr.bf16.mxu0 0
        %790 = vmatpush1.bf16.msra.mxu0 0
        %791 = vmatprep.subr.bf16.mxu0 0
        %792 = vmatpush1.bf16.msra.mxu0 0
        %793 = vmatprep.subr.bf16.mxu0 0
        %794 = vmatpush1.bf16.msra.mxu0 0
        %795 = vmatprep.subr.bf16.mxu0 0
        %796 = vmatpush1.bf16.msra.mxu0 0
        %797 = vmatprep.mubr.bf16.mxu0 0
        %798 = vmatmul.mubr.bf16.gmra.mrb[0].mxu0 %v711
        %v799 = vpop.f32.mrb[0].mxu0
        %v800 = vadd.f32 %v616, %v799
        %v801 = vpop.f32.mrb[0].mxu0
        %v802 = vpop.f32.mrb[0].mxu0
        %v803 = vadd.f32 %v616, %v802
        %v804 = vpop.f32.mrb[0].mxu0
        %805 = vmatprep.mubr.bf16.mxu0 0
        %806 = vmatmul.mubr.bf16.gmra.mrb[0].mxu0 %v714
        %v807 = vpop.f32.mrb[0].mxu0
        %v808 = vadd.f32 %v616, %v807
        %v809 = vpop.f32.mrb[0].mxu0
        %v810 = vpop.f32.mrb[0].mxu0
        %v811 = vadd.f32 %v616, %v810
        %v812 = vpop.f32.mrb[0].mxu0
        %813 = vmatprep.mubr.bf16.mxu0 0
        %814 = vmatmul.mubr.bf16.gmra.mrb[0].mxu0 %v717
        %v815 = vpop.f32.mrb[0].mxu0
        %v816 = vadd.f32 %v616, %v815
        %v817 = vpop.f32.mrb[0].mxu0
        %v818 = vpop.f32.mrb[0].mxu0
        %v819 = vadd.f32 %v616, %v818
        %v820 = vpop.f32.mrb[0].mxu0
        %821 = vmatprep.mubr.bf16.mxu0 0
        %822 = vmatmul.mubr.bf16.gmra.mrb[0].mxu0 %v720
        %v823 = vpop.f32.mrb[0].mxu0
        %v824 = vadd.f32 %v616, %v823
        %v825 = vpop.f32.mrb[0].mxu0
        %v826 = vpop.f32.mrb[0].mxu0
        %v827 = vadd.f32 %v616, %v826
        %v828 = vpop.f32.mrb[0].mxu0
        %829 = vmatprep.mubr.bf16.mxu0 0
        %830 = vmatmul.mubr.bf16.gmra.mrb[0].mxu0 %v723
        %v831 = vpop.f32.mrb[0].mxu0
        %v832 = vadd.f32 %v616, %v831
        %v833 = vpop.f32.mrb[0].mxu0
        %v834 = vpop.f32.mrb[0].mxu0
        %v835 = vadd.f32 %v616, %v834
        %v836 = vpop.f32.mrb[0].mxu0
        %837 = vmatprep.mubr.bf16.mxu0 0
        %838 = vmatmul.mubr.bf16.gmra.mrb[0].mxu0 %v726
        %v839 = vpop.f32.mrb[0].mxu0
        %v840 = vadd.f32 %v616, %v839
        %v841 = vpop.f32.mrb[0].mxu0
        %v842 = vpop.f32.mrb[0].mxu0
        %v843 = vadd.f32 %v616, %v842
        %v844 = vpop.f32.mrb[0].mxu0
        %845 = vmatprep.mubr.bf16.mxu0 0
        %846 = vmatmul.mubr.bf16.gmra.mrb[0].mxu0 %v729
        %v847 = vpop.f32.mrb[0].mxu0
        %v848 = vadd.f32 %v616, %v847
        %v849 = vpop.f32.mrb[0].mxu0
        %v850 = vpop.f32.mrb[0].mxu0
        %v851 = vadd.f32 %v616, %v850
        %v852 = vpop.f32.mrb[0].mxu0
        %853 = vmatprep.mubr.bf16.mxu0 0
        %854 = vmatmul.mubr.bf16.gmra.mrb[0].mxu0 %v732
        %v855 = vpop.f32.mrb[0].mxu0
        %v856 = vadd.f32 %v616, %v855
        %v857 = vpop.f32.mrb[0].mxu0
        %v858 = vpop.f32.mrb[0].mxu0
        %v859 = vadd.f32 %v616, %v858
        %v860 = vpop.f32.mrb[0].mxu0
        %861 = vmatprep.mubr.bf16.mxu0 0
        %862 = vmatmul.mubr.bf16.gmra.mrb[0].mxu0 %v735
        %v863 = vpop.f32.mrb[0].mxu0
        %v864 = vadd.f32 %v616, %v863
        %v865 = vpop.f32.mrb[0].mxu0
        %v866 = vpop.f32.mrb[0].mxu0
        %v867 = vadd.f32 %v616, %v866
        %v868 = vpop.f32.mrb[0].mxu0
        %869 = vmatprep.mubr.bf16.mxu0 0
        %870 = vmatmul.mubr.bf16.gmra.mrb[0].mxu0 %v738
        %v871 = vpop.f32.mrb[0].mxu0
        %v872 = vadd.f32 %v616, %v871
        %v873 = vpop.f32.mrb[0].mxu0
        %v874 = vpop.f32.mrb[0].mxu0
        %v875 = vadd.f32 %v616, %v874
        %v876 = vpop.f32.mrb[0].mxu0
        %877 = vmatprep.mubr.bf16.mxu0 0
        %878 = vmatmul.mubr.bf16.gmra.mrb[0].mxu0 %v741
        %v879 = vpop.f32.mrb[0].mxu0
        %v880 = vadd.f32 %v616, %v879
        %v881 = vpop.f32.mrb[0].mxu0
        %v882 = vpop.f32.mrb[0].mxu0
        %v883 = vadd.f32 %v616, %v882
        %v884 = vpop.f32.mrb[0].mxu0
        %885 = vmatprep.mubr.bf16.mxu0 0
        %886 = vmatmul.mubr.bf16.gmra.mrb[0].mxu0 %v744
        %v887 = vpop.f32.mrb[0].mxu0
        %v888 = vadd.f32 %v616, %v887
        %v889 = vpop.f32.mrb[0].mxu0
        %v890 = vpop.f32.mrb[0].mxu0
        %v891 = vadd.f32 %v616, %v890
        %v892 = vpop.f32.mrb[0].mxu0
        %893 = vmatprep.mubr.bf16.mxu0 0
        %894 = vmatmul.mubr.bf16.gmra.mrb[0].mxu0 %v747
        %v895 = vpop.f32.mrb[0].mxu0
        %v896 = vadd.f32 %v616, %v895
        %v897 = vpop.f32.mrb[0].mxu0
        %v898 = vpop.f32.mrb[0].mxu0
        %v899 = vadd.f32 %v616, %v898
        %v900 = vpop.f32.mrb[0].mxu0
        %901 = vmatprep.mubr.bf16.mxu0 0
        %902 = vmatmul.mubr.bf16.gmra.mrb[0].mxu0 %v750
        %v903 = vpop.f32.mrb[0].mxu0
        %v904 = vadd.f32 %v616, %v903
        %v905 = vpop.f32.mrb[0].mxu0
        %v906 = vpop.f32.mrb[0].mxu0
        %v907 = vadd.f32 %v616, %v906
        %v908 = vpop.f32.mrb[0].mxu0
        %909 = vmatprep.mubr.bf16.mxu0 0
        %910 = vmatmul.mubr.bf16.gmra.mrb[0].mxu0 %v753
        %v911 = vpop.f32.mrb[0].mxu0
        %v912 = vadd.f32 %v616, %v911
        %v913 = vpop.f32.mrb[0].mxu0
        %v914 = vpop.f32.mrb[0].mxu0
        %v915 = vadd.f32 %v616, %v914
        %v916 = vpop.f32.mrb[0].mxu0
        %917 = vmatprep.mubr.bf16.mxu0 0
        %918 = vmatmul.mubr.bf16.gmra.mrb[0].mxu0 %v756
        %v919 = vpop.f32.mrb[0].mxu0
        %v920 = vadd.f32 %v616, %v919
        %v921 = vpop.f32.mrb[0].mxu0
        %v922 = vpop.f32.mrb[0].mxu0
        %v923 = vadd.f32 %v616, %v922
        %v924 = vpop.f32.mrb[0].mxu0
        %925 = vdwg.mxu0
        %v926 = vld [vmem:[%s3] sm:$0x1]
        %v927 = vld [vmem:[%s3 + $0x1] sm:$0x1]
        %vm928 = vcmask 72704
        %v929 = vsel %vm928, %v800, 0.0
        %v930 = vsel %vm928, %v803, 0.0
        %v931 = vadd.f32 %v929, %v930
        %v932 = vsel %vm928, %v808, 0.0
        %v933 = vadd.f32 %v931, %v932
        %v934 = vsel %vm928, %v811, 0.0
        %v935 = vadd.f32 %v933, %v934
        %v936 = vsel %vm928, %v816, 0.0
        %v937 = vadd.f32 %v935, %v936
        %v938 = vsel %vm928, %v819, 0.0
        %v939 = vadd.f32 %v937, %v938
        %v940 = vsel %vm928, %v824, 0.0
        %v941 = vadd.f32 %v939, %v940
        %v942 = vsel %vm928, %v827, 0.0
        %v943 = vadd.f32 %v941, %v942
        %v944 = vsel %vm928, %v832, 0.0
        %v945 = vadd.f32 %v943, %v944
        %v946 = vsel %vm928, %v835, 0.0
        %v947 = vadd.f32 %v945, %v946
        %v948 = vsel %vm928, %v840, 0.0
        %v949 = vadd.f32 %v947, %v948
        %v950 = vsel %vm928, %v843, 0.0
        %v951 = vadd.f32 %v949, %v950
        %v952 = vsel %vm928, %v848, 0.0
        %v953 = vadd.f32 %v951, %v952
        %v954 = vsel %vm928, %v851, 0.0
        %v955 = vadd.f32 %v953, %v954
        %v956 = vsel %vm928, %v856, 0.0
        %v957 = vadd.f32 %v955, %v956
        %v958 = vsel %vm928, %v859, 0.0
        %v959 = vadd.f32 %v957, %v958
        %v960 = vsel %vm928, %v864, 0.0
        %v961 = vadd.f32 %v959, %v960
        %v962 = vsel %vm928, %v867, 0.0
        %v963 = vadd.f32 %v961, %v962
        %v964 = vsel %vm928, %v872, 0.0
        %v965 = vadd.f32 %v963, %v964
        %v966 = vsel %vm928, %v875, 0.0
        %v967 = vadd.f32 %v965, %v966
        %v968 = vsel %vm928, %v880, 0.0
        %v969 = vadd.f32 %v967, %v968
        %v970 = vsel %vm928, %v883, 0.0
        %v971 = vadd.f32 %v969, %v970
        %v972 = vsel %vm928, %v888, 0.0
        %v973 = vadd.f32 %v971, %v972
        %v974 = vsel %vm928, %v891, 0.0
        %v975 = vadd.f32 %v973, %v974
        %v976 = vsel %vm928, %v896, 0.0
        %v977 = vadd.f32 %v975, %v976
        %v978 = vsel %vm928, %v899, 0.0
        %v979 = vadd.f32 %v977, %v978
        %v980 = vsel %vm928, %v904, 0.0
        %v981 = vadd.f32 %v979, %v980
        %v982 = vsel %vm928, %v907, 0.0
        %v983 = vadd.f32 %v981, %v982
        %v984 = vsel %vm928, %v912, 0.0
        %v985 = vadd.f32 %v983, %v984
        %v986 = vsel %vm928, %v915, 0.0
        %v987 = vadd.f32 %v985, %v986
        %v988 = vsel %vm928, %v920, 0.0
        %v989 = vadd.f32 %v987, %v988
        %v990 = vsel %vm928, %v923, 0.0
        %v991 = vadd.f32 %v989, %v990
        %v992 = vrot.slane %v991, 4
        %v993 = vadd.f32 %v991, %v992
        %v994 = vrot.slane %v993, 2
        %v995 = vadd.f32 %v993, %v994
        %v996 = vrot.slane %v995, 1
        %v997 = vadd.f32 %v995, %v996
        %v998 = vmul.f32 %v800, %v800
        %v999 = vmul.f32 %v803, %v803
        %v1000 = vmul.f32 %v808, %v808
        %v1001 = vmul.f32 %v811, %v811
        %v1002 = vmul.f32 %v816, %v816
        %v1003 = vmul.f32 %v819, %v819
        %v1004 = vmul.f32 %v824, %v824
        %v1005 = vmul.f32 %v827, %v827
        %v1006 = vmul.f32 %v832, %v832
        %v1007 = vmul.f32 %v835, %v835
        %v1008 = vmul.f32 %v840, %v840
        %v1009 = vmul.f32 %v843, %v843
        %v1010 = vmul.f32 %v848, %v848
        %v1011 = vmul.f32 %v851, %v851
        %v1012 = vmul.f32 %v856, %v856
        %v1013 = vmul.f32 %v859, %v859
        %v1014 = vmul.f32 %v864, %v864
        %v1015 = vmul.f32 %v867, %v867
        %v1016 = vmul.f32 %v872, %v872
        %v1017 = vmul.f32 %v875, %v875
        %v1018 = vmul.f32 %v880, %v880
        %v1019 = vmul.f32 %v883, %v883
        %v1020 = vmul.f32 %v888, %v888
        %v1021 = vmul.f32 %v891, %v891
        %v1022 = vmul.f32 %v896, %v896
        %v1023 = vmul.f32 %v899, %v899
        %v1024 = vmul.f32 %v904, %v904
        %v1025 = vmul.f32 %v907, %v907
        %v1026 = vmul.f32 %v912, %v912
        %v1027 = vmul.f32 %v915, %v915
        %v1028 = vmul.f32 %v920, %v920
        %v1029 = vmul.f32 %v923, %v923
        %v1030 = vsel %vm928, %v998, 0.0
        %v1031 = vsel %vm928, %v999, 0.0
        %v1032 = vadd.f32 %v1030, %v1031
        %v1033 = vsel %vm928, %v1000, 0.0
        %v1034 = vadd.f32 %v1032, %v1033
        %v1035 = vsel %vm928, %v1001, 0.0
        %v1036 = vadd.f32 %v1034, %v1035
        %v1037 = vsel %vm928, %v1002, 0.0
        %v1038 = vadd.f32 %v1036, %v1037
        %v1039 = vsel %vm928, %v1003, 0.0
        %v1040 = vadd.f32 %v1038, %v1039
        %v1041 = vsel %vm928, %v1004, 0.0
        %v1042 = vadd.f32 %v1040, %v1041
        %v1043 = vsel %vm928, %v1005, 0.0
        %v1044 = vadd.f32 %v1042, %v1043
        %v1045 = vsel %vm928, %v1006, 0.0
        %v1046 = vadd.f32 %v1044, %v1045
        %v1047 = vsel %vm928, %v1007, 0.0
        %v1048 = vadd.f32 %v1046, %v1047
        %v1049 = vsel %vm928, %v1008, 0.0
        %v1050 = vadd.f32 %v1048, %v1049
        %v1051 = vsel %vm928, %v1009, 0.0
        %v1052 = vadd.f32 %v1050, %v1051
        %v1053 = vsel %vm928, %v1010, 0.0
        %v1054 = vadd.f32 %v1052, %v1053
        %v1055 = vsel %vm928, %v1011, 0.0
        %v1056 = vadd.f32 %v1054, %v1055
        %v1057 = vsel %vm928, %v1012, 0.0
        %v1058 = vadd.f32 %v1056, %v1057
        %v1059 = vsel %vm928, %v1013, 0.0
        %v1060 = vadd.f32 %v1058, %v1059
        %v1061 = vsel %vm928, %v1014, 0.0
        %v1062 = vadd.f32 %v1060, %v1061
        %v1063 = vsel %vm928, %v1015, 0.0
        %v1064 = vadd.f32 %v1062, %v1063
        %v1065 = vsel %vm928, %v1016, 0.0
        %v1066 = vadd.f32 %v1064, %v1065
        %v1067 = vsel %vm928, %v1017, 0.0
        %v1068 = vadd.f32 %v1066, %v1067
        %v1069 = vsel %vm928, %v1018, 0.0
        %v1070 = vadd.f32 %v1068, %v1069
        %v1071 = vsel %vm928, %v1019, 0.0
        %v1072 = vadd.f32 %v1070, %v1071
        %v1073 = vsel %vm928, %v1020, 0.0
        %v1074 = vadd.f32 %v1072, %v1073
        %v1075 = vsel %vm928, %v1021, 0.0
        %v1076 = vadd.f32 %v1074, %v1075
        %v1077 = vsel %vm928, %v1022, 0.0
        %v1078 = vadd.f32 %v1076, %v1077
        %v1079 = vsel %vm928, %v1023, 0.0
        %v1080 = vadd.f32 %v1078, %v1079
        %v1081 = vsel %vm928, %v1024, 0.0
        %v1082 = vadd.f32 %v1080, %v1081
        %v1083 = vsel %vm928, %v1025, 0.0
        %v1084 = vadd.f32 %v1082, %v1083
        %v1085 = vsel %vm928, %v1026, 0.0
        %v1086 = vadd.f32 %v1084, %v1085
        %v1087 = vsel %vm928, %v1027, 0.0
        %v1088 = vadd.f32 %v1086, %v1087
        %v1089 = vsel %vm928, %v1028, 0.0
        %v1090 = vadd.f32 %v1088, %v1089
        %v1091 = vsel %vm928, %v1029, 0.0
        %v1092 = vadd.f32 %v1090, %v1091
        %v1093 = vrot.slane %v1092, 4
        %v1094 = vadd.f32 %v1092, %v1093
        %v1095 = vrot.slane %v1094, 2
        %v1096 = vadd.f32 %v1094, %v1095
        %v1097 = vrot.slane %v1096, 1
        %v1098 = vadd.f32 %v1096, %v1097
        %v1099 = vsel %vm928, %v997, 0.0
        %1100 = vadd.xlane.f32.xlu0 %v1099
        %v1101 = vpop.xlane.xlu0 %1100
        %v1102 = vsel %vm928, %v1098, 0.0
        %1103 = vadd.xlane.f32.xlu0 %v1102
        %v1104 = vpop.xlane.xlu0 %1103
        %v1105 = vmul.f32 %v1101, 0.00043402778
        %v1106 = vmul.f32 %v1104, 0.00043402778
        %v1107 = vmul.f32 %v1105, %v1105
        %v1108 = vsub.f32 %v1106, %v1107
        %v1109 = vadd.f32 %v1108, 1e-05
        %v1110 = vrsqrt.pop %v1109
        %v1111 = vmul.f32 %v1110, %v926
        %v1112 = vmul.f32 %v1105, %v1111
        %v1113 = vsub.f32 %v927, %v1112
        %v1114 = vlaneseq
        %v1115 = vshrl.u32 %v1114, 7
        %v1116 = vsub.s32 0, %v1115
        %v1117 = vrot.slane %v1111, %v1116
        %v1118 = vmul.f32 %v800, %v1117
        %v1119 = vmul.f32 %v803, %v1117
        %v1120 = vmul.f32 %v808, %v1117
        %v1121 = vmul.f32 %v811, %v1117
        %v1122 = vmul.f32 %v816, %v1117
        %v1123 = vmul.f32 %v819, %v1117
        %v1124 = vmul.f32 %v824, %v1117
        %v1125 = vmul.f32 %v827, %v1117
        %v1126 = vmul.f32 %v832, %v1117
        %v1127 = vmul.f32 %v835, %v1117
        %v1128 = vmul.f32 %v840, %v1117
        %v1129 = vmul.f32 %v843, %v1117
        %v1130 = vmul.f32 %v848, %v1117
        %v1131 = vmul.f32 %v851, %v1117
        %v1132 = vmul.f32 %v856, %v1117
        %v1133 = vmul.f32 %v859, %v1117
        %v1134 = vmul.f32 %v864, %v1117
        %v1135 = vmul.f32 %v867, %v1117
        %v1136 = vmul.f32 %v872, %v1117
        %v1137 = vmul.f32 %v875, %v1117
        %v1138 = vmul.f32 %v880, %v1117
        %v1139 = vmul.f32 %v883, %v1117
        %v1140 = vmul.f32 %v888, %v1117
        %v1141 = vmul.f32 %v891, %v1117
        %v1142 = vmul.f32 %v896, %v1117
        %v1143 = vmul.f32 %v899, %v1117
        %v1144 = vmul.f32 %v904, %v1117
        %v1145 = vmul.f32 %v907, %v1117
        %v1146 = vmul.f32 %v912, %v1117
        %v1147 = vmul.f32 %v915, %v1117
        %v1148 = vmul.f32 %v920, %v1117
        %v1149 = vmul.f32 %v923, %v1117
        %v1150 = vlaneseq
        %v1151 = vshrl.u32 %v1150, 7
        %v1152 = vsub.s32 0, %v1151
        %v1153 = vrot.slane %v1113, %v1152
        %v1154 = vadd.f32 %v1118, %v1153
        %v1155 = vadd.f32 %v1119, %v1153
        %v1156 = vadd.f32 %v1120, %v1153
        %v1157 = vadd.f32 %v1121, %v1153
        %v1158 = vadd.f32 %v1122, %v1153
        %v1159 = vadd.f32 %v1123, %v1153
        %v1160 = vadd.f32 %v1124, %v1153
        %v1161 = vadd.f32 %v1125, %v1153
        %v1162 = vadd.f32 %v1126, %v1153
        %v1163 = vadd.f32 %v1127, %v1153
        %v1164 = vadd.f32 %v1128, %v1153
        %v1165 = vadd.f32 %v1129, %v1153
        %v1166 = vadd.f32 %v1130, %v1153
        %v1167 = vadd.f32 %v1131, %v1153
        %v1168 = vadd.f32 %v1132, %v1153
        %v1169 = vadd.f32 %v1133, %v1153
        %v1170 = vadd.f32 %v1134, %v1153
        %v1171 = vadd.f32 %v1135, %v1153
        %v1172 = vadd.f32 %v1136, %v1153
        %v1173 = vadd.f32 %v1137, %v1153
        %v1174 = vadd.f32 %v1138, %v1153
        %v1175 = vadd.f32 %v1139, %v1153
        %v1176 = vadd.f32 %v1140, %v1153
        %v1177 = vadd.f32 %v1141, %v1153
        %v1178 = vadd.f32 %v1142, %v1153
        %v1179 = vadd.f32 %v1143, %v1153
        %v1180 = vadd.f32 %v1144, %v1153
        %v1181 = vadd.f32 %v1145, %v1153
        %v1182 = vadd.f32 %v1146, %v1153
        %v1183 = vadd.f32 %v1147, %v1153
        %v1184 = vadd.f32 %v1148, %v1153
        %v1185 = vadd.f32 %v1149, %v1153
        %v1186 = vmax.f32 %v1154, 0.0
        %v1187 = vmax.f32 %v1155, 0.0
        %v1188 = vmax.f32 %v1156, 0.0
        %v1189 = vmax.f32 %v1157, 0.0
        %v1190 = vmax.f32 %v1158, 0.0
        %v1191 = vmax.f32 %v1159, 0.0
        %v1192 = vmax.f32 %v1160, 0.0
        %v1193 = vmax.f32 %v1161, 0.0
        %v1194 = vmax.f32 %v1162, 0.0
        %v1195 = vmax.f32 %v1163, 0.0
        %v1196 = vmax.f32 %v1164, 0.0
        %v1197 = vmax.f32 %v1165, 0.0
        %v1198 = vmax.f32 %v1166, 0.0
        %v1199 = vmax.f32 %v1167, 0.0
        %v1200 = vmax.f32 %v1168, 0.0
        %v1201 = vmax.f32 %v1169, 0.0
        %v1202 = vmax.f32 %v1170, 0.0
        %v1203 = vmax.f32 %v1171, 0.0
        %v1204 = vmax.f32 %v1172, 0.0
        %v1205 = vmax.f32 %v1173, 0.0
        %v1206 = vmax.f32 %v1174, 0.0
        %v1207 = vmax.f32 %v1175, 0.0
        %v1208 = vmax.f32 %v1176, 0.0
        %v1209 = vmax.f32 %v1177, 0.0
        %v1210 = vmax.f32 %v1178, 0.0
        %v1211 = vmax.f32 %v1179, 0.0
        %v1212 = vmax.f32 %v1180, 0.0
        %v1213 = vmax.f32 %v1181, 0.0
        %v1214 = vmax.f32 %v1182, 0.0
        %v1215 = vmax.f32 %v1183, 0.0
        %v1216 = vmax.f32 %v1184, 0.0
        %v1217 = vmax.f32 %v1185, 0.0
        %v1218 = vpack.c.bf16 %v1187, %v1186
        %v1219 = vpack.c.bf16 %v1189, %v1188
        %v1220 = vpack.c.bf16 %v1191, %v1190
        %v1221 = vpack.c.bf16 %v1193, %v1192
        %v1222 = vpack.c.bf16 %v1195, %v1194
        %v1223 = vpack.c.bf16 %v1197, %v1196
        %v1224 = vpack.c.bf16 %v1199, %v1198
        %v1225 = vpack.c.bf16 %v1201, %v1200
        %v1226 = vpack.c.bf16 %v1203, %v1202
        %v1227 = vpack.c.bf16 %v1205, %v1204
        %v1228 = vpack.c.bf16 %v1207, %v1206
        %v1229 = vpack.c.bf16 %v1209, %v1208
        %v1230 = vpack.c.bf16 %v1211, %v1210
        %v1231 = vpack.c.bf16 %v1213, %v1212
        %v1232 = vpack.c.bf16 %v1215, %v1214
        %v1233 = vpack.c.bf16 %v1217, %v1216
        %v1234 = vld [vmem:[%s9] sm:$0xf]
        %v1235 = vld [vmem:[%s9 + $0x4] sm:$0x1]
        %v1238 = vunpack.c.l.b16 %v1234
        %v1239 = vunpack.c.l.b16 %v1235
        %v1240 = vpack.c.b16 %v1239, %v1238
        %v1242 = vsel %vm928, %v1218, 0
        %v1245 = vsel %vm928, %v1219, 0
        %v1248 = vsel %vm928, %v1220, 0
        %v1251 = vsel %vm928, %v1221, 0
        %vm1253 = vcmask 1043456
        %v1254 = vsel %vm1253, 4294967295, 65535
        %v1255 = vsel %vm758, %v1254, 0
        %v1257 = vand.u32 %v1240, %v1255
        %1259 = vmatprep.subr.bf16.mxu0 0
        %1260 = vmatpush1.bf16.msra.mxu0 %v1257
        %1261 = vmatprep.subr.bf16.mxu0 0
        %1262 = vmatpush1.bf16.msra.mxu0 0
        %1263 = vmatprep.subr.bf16.mxu0 0
        %1264 = vmatpush1.bf16.msra.mxu0 0
        %1265 = vmatprep.subr.bf16.mxu0 0
        %1266 = vmatpush1.bf16.msra.mxu0 0
        %1267 = vmatprep.subr.bf16.mxu0 0
        %1268 = vmatpush1.bf16.msra.mxu0 0
        %1269 = vmatprep.subr.bf16.mxu0 0
        %1270 = vmatpush1.bf16.msra.mxu0 0
        %1271 = vmatprep.subr.bf16.mxu0 0
        %1272 = vmatpush1.bf16.msra.mxu0 0
        %1273 = vmatprep.subr.bf16.mxu0 0
        %1274 = vmatpush1.bf16.msra.mxu0 0
        %1275 = vmatprep.subr.bf16.mxu0 0
        %1276 = vmatpush1.bf16.msra.mxu0 0
        %1277 = vmatprep.subr.bf16.mxu0 0
        %1278 = vmatpush1.bf16.msra.mxu0 0
        %1279 = vmatprep.subr.bf16.mxu0 0
        %1280 = vmatpush1.bf16.msra.mxu0 0
        %1281 = vmatprep.subr.bf16.mxu0 0
        %1282 = vmatpush1.bf16.msra.mxu0 0
        %1283 = vmatprep.subr.bf16.mxu0 0
        %1284 = vmatpush1.bf16.msra.mxu0 0
        %1285 = vmatprep.subr.bf16.mxu0 0
        %1286 = vmatpush1.bf16.msra.mxu0 0
        %1287 = vmatprep.subr.bf16.mxu0 0
        %1288 = vmatpush1.bf16.msra.mxu0 0
        %1289 = vmatprep.subr.bf16.mxu0 0
        %1290 = vmatpush1.bf16.msra.mxu0 0
        %1291 = vmatprep.mubr.bf16.mxu0 0
        %1292 = vmatmul.mubr.bf16.gmra.mrb[0].mxu0 %v1242
        %v1293 = vpop.f32.mrb[0].mxu0
        %v1294 = vadd.f32 0.0, %v1293
        %v1295 = vpop.f32.mrb[0].mxu0
        %v1296 = vpop.f32.mrb[0].mxu0
        %v1297 = vadd.f32 0.0, %v1296
        %v1298 = vpop.f32.mrb[0].mxu0
        %1299 = vmatprep.mubr.bf16.mxu0 0
        %1300 = vmatmul.mubr.bf16.gmra.mrb[0].mxu0 %v1245
        %v1301 = vpop.f32.mrb[0].mxu0
        %v1302 = vadd.f32 0.0, %v1301
        %v1303 = vpop.f32.mrb[0].mxu0
        %v1304 = vpop.f32.mrb[0].mxu0
        %v1305 = vadd.f32 0.0, %v1304
        %v1306 = vpop.f32.mrb[0].mxu0
        %1307 = vmatprep.mubr.bf16.mxu0 0
        %1308 = vmatmul.mubr.bf16.gmra.mrb[0].mxu0 %v1248
        %v1309 = vpop.f32.mrb[0].mxu0
        %v1310 = vadd.f32 0.0, %v1309
        %v1311 = vpop.f32.mrb[0].mxu0
        %v1312 = vpop.f32.mrb[0].mxu0
        %v1313 = vadd.f32 0.0, %v1312
        %v1314 = vpop.f32.mrb[0].mxu0
        %1315 = vmatprep.mubr.bf16.mxu0 0
        %1316 = vmatmul.mubr.bf16.gmra.mrb[0].mxu0 %v1251
        %v1317 = vpop.f32.mrb[0].mxu0
        %v1318 = vadd.f32 0.0, %v1317
        %v1319 = vpop.f32.mrb[0].mxu0
        %v1320 = vpop.f32.mrb[0].mxu0
        %v1321 = vadd.f32 0.0, %v1320
        %v1322 = vpop.f32.mrb[0].mxu0
        %1323 = vdwg.mxu0
        %v1324 = vld [vmem:[%s4] sm:$0xf]
        %v1325 = vld [vmem:[%s4 + $0x4] sm:$0x1]
        %v1328 = vunpack.c.l.b16 %v1324
        %v1329 = vunpack.c.l.b16 %v1325
        %v1330 = vpack.c.b16 %v1329, %v1328
        %v1332 = vsel %vm928, %v1222, 0
        %v1335 = vsel %vm928, %v1223, 0
        %v1338 = vsel %vm928, %v1224, 0
        %v1341 = vsel %vm928, %v1225, 0
        %v1344 = vsel %vm928, %v1226, 0
        %v1347 = vsel %vm928, %v1227, 0
        %v1350 = vsel %vm928, %v1228, 0
        %v1353 = vsel %vm928, %v1229, 0
        %v1356 = vsel %vm928, %v1230, 0
        %v1359 = vsel %vm928, %v1231, 0
        %v1362 = vsel %vm928, %v1232, 0
        %v1365 = vsel %vm928, %v1233, 0
        %v1368 = vand.u32 %v1330, %v1255
        %1370 = vmatprep.subr.bf16.mxu0 0
        %1371 = vmatpush1.bf16.msra.mxu0 %v1368
        %1372 = vmatprep.subr.bf16.mxu0 0
        %1373 = vmatpush1.bf16.msra.mxu0 0
        %1374 = vmatprep.subr.bf16.mxu0 0
        %1375 = vmatpush1.bf16.msra.mxu0 0
        %1376 = vmatprep.subr.bf16.mxu0 0
        %1377 = vmatpush1.bf16.msra.mxu0 0
        %1378 = vmatprep.subr.bf16.mxu0 0
        %1379 = vmatpush1.bf16.msra.mxu0 0
        %1380 = vmatprep.subr.bf16.mxu0 0
        %1381 = vmatpush1.bf16.msra.mxu0 0
        %1382 = vmatprep.subr.bf16.mxu0 0
        %1383 = vmatpush1.bf16.msra.mxu0 0
        %1384 = vmatprep.subr.bf16.mxu0 0
        %1385 = vmatpush1.bf16.msra.mxu0 0
        %1386 = vmatprep.subr.bf16.mxu0 0
        %1387 = vmatpush1.bf16.msra.mxu0 0
        %1388 = vmatprep.subr.bf16.mxu0 0
        %1389 = vmatpush1.bf16.msra.mxu0 0
        %1390 = vmatprep.subr.bf16.mxu0 0
        %1391 = vmatpush1.bf16.msra.mxu0 0
        %1392 = vmatprep.subr.bf16.mxu0 0
        %1393 = vmatpush1.bf16.msra.mxu0 0
        %1394 = vmatprep.subr.bf16.mxu0 0
        %1395 = vmatpush1.bf16.msra.mxu0 0
        %1396 = vmatprep.subr.bf16.mxu0 0
        %1397 = vmatpush1.bf16.msra.mxu0 0
        %1398 = vmatprep.subr.bf16.mxu0 0
        %1399 = vmatpush1.bf16.msra.mxu0 0
        %1400 = vmatprep.subr.bf16.mxu0 0
        %1401 = vmatpush1.bf16.msra.mxu0 0
        %1402 = vmatprep.mubr.bf16.mxu0 0
        %1403 = vmatmul.mubr.bf16.gmra.mrb[0].mxu0 %v1242
        %v1404 = vpop.f32.mrb[0].mxu0
        %v1405 = vadd.f32 0.0, %v1404
        %v1406 = vpop.f32.mrb[0].mxu0
        %v1407 = vpop.f32.mrb[0].mxu0
        %v1408 = vadd.f32 0.0, %v1407
        %v1409 = vpop.f32.mrb[0].mxu0
        %1410 = vmatprep.mubr.bf16.mxu0 0
        %1411 = vmatmul.mubr.bf16.gmra.mrb[0].mxu0 %v1245
        %v1412 = vpop.f32.mrb[0].mxu0
        %v1413 = vadd.f32 0.0, %v1412
        %v1414 = vpop.f32.mrb[0].mxu0
        %v1415 = vpop.f32.mrb[0].mxu0
        %v1416 = vadd.f32 0.0, %v1415
        %v1417 = vpop.f32.mrb[0].mxu0
        %1418 = vmatprep.mubr.bf16.mxu0 0
        %1419 = vmatmul.mubr.bf16.gmra.mrb[0].mxu0 %v1248
        %v1420 = vpop.f32.mrb[0].mxu0
        %v1421 = vadd.f32 0.0, %v1420
        %v1422 = vpop.f32.mrb[0].mxu0
        %v1423 = vpop.f32.mrb[0].mxu0
        %v1424 = vadd.f32 0.0, %v1423
        %v1425 = vpop.f32.mrb[0].mxu0
        %1426 = vmatprep.mubr.bf16.mxu0 0
        %1427 = vmatmul.mubr.bf16.gmra.mrb[0].mxu0 %v1251
        %v1428 = vpop.f32.mrb[0].mxu0
        %v1429 = vadd.f32 0.0, %v1428
        %v1430 = vpop.f32.mrb[0].mxu0
        %v1431 = vpop.f32.mrb[0].mxu0
        %v1432 = vadd.f32 0.0, %v1431
        %v1433 = vpop.f32.mrb[0].mxu0
        %1434 = vmatprep.mubr.bf16.mxu0 0
        %1435 = vmatmul.mubr.bf16.gmra.mrb[0].mxu0 %v1332
        %v1436 = vpop.f32.mrb[0].mxu0
        %v1437 = vadd.f32 0.0, %v1436
        %v1438 = vpop.f32.mrb[0].mxu0
        %v1439 = vpop.f32.mrb[0].mxu0
        %v1440 = vadd.f32 0.0, %v1439
        %v1441 = vpop.f32.mrb[0].mxu0
        %1442 = vmatprep.mubr.bf16.mxu0 0
        %1443 = vmatmul.mubr.bf16.gmra.mrb[0].mxu0 %v1335
        %v1444 = vpop.f32.mrb[0].mxu0
        %v1445 = vadd.f32 0.0, %v1444
        %v1446 = vpop.f32.mrb[0].mxu0
        %v1447 = vpop.f32.mrb[0].mxu0
        %v1448 = vadd.f32 0.0, %v1447
        %v1449 = vpop.f32.mrb[0].mxu0
        %1450 = vmatprep.mubr.bf16.mxu0 0
        %1451 = vmatmul.mubr.bf16.gmra.mrb[0].mxu0 %v1338
        %v1452 = vpop.f32.mrb[0].mxu0
        %v1453 = vadd.f32 0.0, %v1452
        %v1454 = vpop.f32.mrb[0].mxu0
        %v1455 = vpop.f32.mrb[0].mxu0
        %v1456 = vadd.f32 0.0, %v1455
        %v1457 = vpop.f32.mrb[0].mxu0
        %1458 = vmatprep.mubr.bf16.mxu0 0
        %1459 = vmatmul.mubr.bf16.gmra.mrb[0].mxu0 %v1341
        %v1460 = vpop.f32.mrb[0].mxu0
        %v1461 = vadd.f32 0.0, %v1460
        %v1462 = vpop.f32.mrb[0].mxu0
        %v1463 = vpop.f32.mrb[0].mxu0
        %v1464 = vadd.f32 0.0, %v1463
        %v1465 = vpop.f32.mrb[0].mxu0
        %1466 = vmatprep.mubr.bf16.mxu0 0
        %1467 = vmatmul.mubr.bf16.gmra.mrb[0].mxu0 %v1344
        %v1468 = vpop.f32.mrb[0].mxu0
        %v1469 = vadd.f32 0.0, %v1468
        %v1470 = vpop.f32.mrb[0].mxu0
        %v1471 = vpop.f32.mrb[0].mxu0
        %v1472 = vadd.f32 0.0, %v1471
        %v1473 = vpop.f32.mrb[0].mxu0
        %1474 = vmatprep.mubr.bf16.mxu0 0
        %1475 = vmatmul.mubr.bf16.gmra.mrb[0].mxu0 %v1347
        %v1476 = vpop.f32.mrb[0].mxu0
        %v1477 = vadd.f32 0.0, %v1476
        %v1478 = vpop.f32.mrb[0].mxu0
        %v1479 = vpop.f32.mrb[0].mxu0
        %v1480 = vadd.f32 0.0, %v1479
        %v1481 = vpop.f32.mrb[0].mxu0
        %1482 = vmatprep.mubr.bf16.mxu0 0
        %1483 = vmatmul.mubr.bf16.gmra.mrb[0].mxu0 %v1350
        %v1484 = vpop.f32.mrb[0].mxu0
        %v1485 = vadd.f32 0.0, %v1484
        %v1486 = vpop.f32.mrb[0].mxu0
        %v1487 = vpop.f32.mrb[0].mxu0
        %v1488 = vadd.f32 0.0, %v1487
        %v1489 = vpop.f32.mrb[0].mxu0
        %1490 = vmatprep.mubr.bf16.mxu0 0
        %1491 = vmatmul.mubr.bf16.gmra.mrb[0].mxu0 %v1353
        %v1492 = vpop.f32.mrb[0].mxu0
        %v1493 = vadd.f32 0.0, %v1492
        %v1494 = vpop.f32.mrb[0].mxu0
        %v1495 = vpop.f32.mrb[0].mxu0
        %v1496 = vadd.f32 0.0, %v1495
        %v1497 = vpop.f32.mrb[0].mxu0
        %1498 = vmatprep.mubr.bf16.mxu0 0
        %1499 = vmatmul.mubr.bf16.gmra.mrb[0].mxu0 %v1356
        %v1500 = vpop.f32.mrb[0].mxu0
        %v1501 = vadd.f32 0.0, %v1500
        %v1502 = vpop.f32.mrb[0].mxu0
        %v1503 = vpop.f32.mrb[0].mxu0
        %v1504 = vadd.f32 0.0, %v1503
        %v1505 = vpop.f32.mrb[0].mxu0
        %1506 = vmatprep.mubr.bf16.mxu0 0
        %1507 = vmatmul.mubr.bf16.gmra.mrb[0].mxu0 %v1359
        %v1508 = vpop.f32.mrb[0].mxu0
        %v1509 = vadd.f32 0.0, %v1508
        %v1510 = vpop.f32.mrb[0].mxu0
        %v1511 = vpop.f32.mrb[0].mxu0
        %v1512 = vadd.f32 0.0, %v1511
        %v1513 = vpop.f32.mrb[0].mxu0
        %1514 = vmatprep.mubr.bf16.mxu0 0
        %1515 = vmatmul.mubr.bf16.gmra.mrb[0].mxu0 %v1362
        %v1516 = vpop.f32.mrb[0].mxu0
        %v1517 = vadd.f32 0.0, %v1516
        %v1518 = vpop.f32.mrb[0].mxu0
        %v1519 = vpop.f32.mrb[0].mxu0
        %v1520 = vadd.f32 0.0, %v1519
        %v1521 = vpop.f32.mrb[0].mxu0
        %1522 = vmatprep.mubr.bf16.mxu0 0
        %1523 = vmatmul.mubr.bf16.gmra.mrb[0].mxu0 %v1365
        %v1524 = vpop.f32.mrb[0].mxu0
        %v1525 = vadd.f32 0.0, %v1524
        %v1526 = vpop.f32.mrb[0].mxu0
        %v1527 = vpop.f32.mrb[0].mxu0
        %v1528 = vadd.f32 0.0, %v1527
        %v1529 = vpop.f32.mrb[0].mxu0
        %1530 = vdwg.mxu0
        %v1531 = vld [vmem:[%s5] sm:$0x1]
        %v1532 = vld [vmem:[%s5 + $0x1] sm:$0x1]
        %vm1533 = vcmask 130048
        %v1534 = vsel %vm1533, %v1405, 0.0
        %v1535 = vsel %vm1533, %v1408, 0.0
        %v1536 = vadd.f32 %v1534, %v1535
        %v1537 = vsel %vm1533, %v1413, 0.0
        %v1538 = vadd.f32 %v1536, %v1537
        %v1539 = vsel %vm1533, %v1416, 0.0
        %v1540 = vadd.f32 %v1538, %v1539
        %v1541 = vsel %vm1533, %v1421, 0.0
        %v1542 = vadd.f32 %v1540, %v1541
        %v1543 = vsel %vm1533, %v1424, 0.0
        %v1544 = vadd.f32 %v1542, %v1543
        %v1545 = vsel %vm1533, %v1429, 0.0
        %v1546 = vadd.f32 %v1544, %v1545
        %v1547 = vsel %vm1533, %v1432, 0.0
        %v1548 = vadd.f32 %v1546, %v1547
        %v1549 = vsel %vm1533, %v1437, 0.0
        %v1550 = vadd.f32 %v1548, %v1549
        %v1551 = vsel %vm1533, %v1440, 0.0
        %v1552 = vadd.f32 %v1550, %v1551
        %v1553 = vsel %vm1533, %v1445, 0.0
        %v1554 = vadd.f32 %v1552, %v1553
        %v1555 = vsel %vm1533, %v1448, 0.0
        %v1556 = vadd.f32 %v1554, %v1555
        %v1557 = vsel %vm1533, %v1453, 0.0
        %v1558 = vadd.f32 %v1556, %v1557
        %v1559 = vsel %vm1533, %v1456, 0.0
        %v1560 = vadd.f32 %v1558, %v1559
        %v1561 = vsel %vm1533, %v1461, 0.0
        %v1562 = vadd.f32 %v1560, %v1561
        %v1563 = vsel %vm1533, %v1464, 0.0
        %v1564 = vadd.f32 %v1562, %v1563
        %v1565 = vsel %vm1533, %v1469, 0.0
        %v1566 = vadd.f32 %v1564, %v1565
        %v1567 = vsel %vm1533, %v1472, 0.0
        %v1568 = vadd.f32 %v1566, %v1567
        %v1569 = vsel %vm1533, %v1477, 0.0
        %v1570 = vadd.f32 %v1568, %v1569
        %v1571 = vsel %vm1533, %v1480, 0.0
        %v1572 = vadd.f32 %v1570, %v1571
        %v1573 = vsel %vm1533, %v1485, 0.0
        %v1574 = vadd.f32 %v1572, %v1573
        %v1575 = vsel %vm1533, %v1488, 0.0
        %v1576 = vadd.f32 %v1574, %v1575
        %v1577 = vsel %vm1533, %v1493, 0.0
        %v1578 = vadd.f32 %v1576, %v1577
        %v1579 = vsel %vm1533, %v1496, 0.0
        %v1580 = vadd.f32 %v1578, %v1579
        %v1581 = vsel %vm1533, %v1501, 0.0
        %v1582 = vadd.f32 %v1580, %v1581
        %v1583 = vsel %vm1533, %v1504, 0.0
        %v1584 = vadd.f32 %v1582, %v1583
        %v1585 = vsel %vm1533, %v1509, 0.0
        %v1586 = vadd.f32 %v1584, %v1585
        %v1587 = vsel %vm1533, %v1512, 0.0
        %v1588 = vadd.f32 %v1586, %v1587
        %v1589 = vsel %vm1533, %v1517, 0.0
        %v1590 = vadd.f32 %v1588, %v1589
        %v1591 = vsel %vm1533, %v1520, 0.0
        %v1592 = vadd.f32 %v1590, %v1591
        %v1593 = vsel %vm1533, %v1525, 0.0
        %v1594 = vadd.f32 %v1592, %v1593
        %v1595 = vsel %vm1533, %v1528, 0.0
        %v1596 = vadd.f32 %v1594, %v1595
        %v1597 = vrot.slane %v1596, 4
        %v1598 = vadd.f32 %v1596, %v1597
        %v1599 = vrot.slane %v1598, 2
        %v1600 = vadd.f32 %v1598, %v1599
        %v1601 = vrot.slane %v1600, 1
        %v1602 = vadd.f32 %v1600, %v1601
        %v1603 = vmul.f32 %v1405, %v1405
        %v1604 = vmul.f32 %v1408, %v1408
        %v1605 = vmul.f32 %v1413, %v1413
        %v1606 = vmul.f32 %v1416, %v1416
        %v1607 = vmul.f32 %v1421, %v1421
        %v1608 = vmul.f32 %v1424, %v1424
        %v1609 = vmul.f32 %v1429, %v1429
        %v1610 = vmul.f32 %v1432, %v1432
        %v1611 = vmul.f32 %v1437, %v1437
        %v1612 = vmul.f32 %v1440, %v1440
        %v1613 = vmul.f32 %v1445, %v1445
        %v1614 = vmul.f32 %v1448, %v1448
        %v1615 = vmul.f32 %v1453, %v1453
        %v1616 = vmul.f32 %v1456, %v1456
        %v1617 = vmul.f32 %v1461, %v1461
        %v1618 = vmul.f32 %v1464, %v1464
        %v1619 = vmul.f32 %v1469, %v1469
        %v1620 = vmul.f32 %v1472, %v1472
        %v1621 = vmul.f32 %v1477, %v1477
        %v1622 = vmul.f32 %v1480, %v1480
        %v1623 = vmul.f32 %v1485, %v1485
        %v1624 = vmul.f32 %v1488, %v1488
        %v1625 = vmul.f32 %v1493, %v1493
        %v1626 = vmul.f32 %v1496, %v1496
        %v1627 = vmul.f32 %v1501, %v1501
        %v1628 = vmul.f32 %v1504, %v1504
        %v1629 = vmul.f32 %v1509, %v1509
        %v1630 = vmul.f32 %v1512, %v1512
        %v1631 = vmul.f32 %v1517, %v1517
        %v1632 = vmul.f32 %v1520, %v1520
        %v1633 = vmul.f32 %v1525, %v1525
        %v1634 = vmul.f32 %v1528, %v1528
        %v1635 = vsel %vm1533, %v1603, 0.0
        %v1636 = vsel %vm1533, %v1604, 0.0
        %v1637 = vadd.f32 %v1635, %v1636
        %v1638 = vsel %vm1533, %v1605, 0.0
        %v1639 = vadd.f32 %v1637, %v1638
        %v1640 = vsel %vm1533, %v1606, 0.0
        %v1641 = vadd.f32 %v1639, %v1640
        %v1642 = vsel %vm1533, %v1607, 0.0
        %v1643 = vadd.f32 %v1641, %v1642
        %v1644 = vsel %vm1533, %v1608, 0.0
        %v1645 = vadd.f32 %v1643, %v1644
        %v1646 = vsel %vm1533, %v1609, 0.0
        %v1647 = vadd.f32 %v1645, %v1646
        %v1648 = vsel %vm1533, %v1610, 0.0
        %v1649 = vadd.f32 %v1647, %v1648
        %v1650 = vsel %vm1533, %v1611, 0.0
        %v1651 = vadd.f32 %v1649, %v1650
        %v1652 = vsel %vm1533, %v1612, 0.0
        %v1653 = vadd.f32 %v1651, %v1652
        %v1654 = vsel %vm1533, %v1613, 0.0
        %v1655 = vadd.f32 %v1653, %v1654
        %v1656 = vsel %vm1533, %v1614, 0.0
        %v1657 = vadd.f32 %v1655, %v1656
        %v1658 = vsel %vm1533, %v1615, 0.0
        %v1659 = vadd.f32 %v1657, %v1658
        %v1660 = vsel %vm1533, %v1616, 0.0
        %v1661 = vadd.f32 %v1659, %v1660
        %v1662 = vsel %vm1533, %v1617, 0.0
        %v1663 = vadd.f32 %v1661, %v1662
        %v1664 = vsel %vm1533, %v1618, 0.0
        %v1665 = vadd.f32 %v1663, %v1664
        %v1666 = vsel %vm1533, %v1619, 0.0
        %v1667 = vadd.f32 %v1665, %v1666
        %v1668 = vsel %vm1533, %v1620, 0.0
        %v1669 = vadd.f32 %v1667, %v1668
        %v1670 = vsel %vm1533, %v1621, 0.0
        %v1671 = vadd.f32 %v1669, %v1670
        %v1672 = vsel %vm1533, %v1622, 0.0
        %v1673 = vadd.f32 %v1671, %v1672
        %v1674 = vsel %vm1533, %v1623, 0.0
        %v1675 = vadd.f32 %v1673, %v1674
        %v1676 = vsel %vm1533, %v1624, 0.0
        %v1677 = vadd.f32 %v1675, %v1676
        %v1678 = vsel %vm1533, %v1625, 0.0
        %v1679 = vadd.f32 %v1677, %v1678
        %v1680 = vsel %vm1533, %v1626, 0.0
        %v1681 = vadd.f32 %v1679, %v1680
        %v1682 = vsel %vm1533, %v1627, 0.0
        %v1683 = vadd.f32 %v1681, %v1682
        %v1684 = vsel %vm1533, %v1628, 0.0
        %v1685 = vadd.f32 %v1683, %v1684
        %v1686 = vsel %vm1533, %v1629, 0.0
        %v1687 = vadd.f32 %v1685, %v1686
        %v1688 = vsel %vm1533, %v1630, 0.0
        %v1689 = vadd.f32 %v1687, %v1688
        %v1690 = vsel %vm1533, %v1631, 0.0
        %v1691 = vadd.f32 %v1689, %v1690
        %v1692 = vsel %vm1533, %v1632, 0.0
        %v1693 = vadd.f32 %v1691, %v1692
        %v1694 = vsel %vm1533, %v1633, 0.0
        %v1695 = vadd.f32 %v1693, %v1694
        %v1696 = vsel %vm1533, %v1634, 0.0
        %v1697 = vadd.f32 %v1695, %v1696
        %v1698 = vrot.slane %v1697, 4
        %v1699 = vadd.f32 %v1697, %v1698
        %v1700 = vrot.slane %v1699, 2
        %v1701 = vadd.f32 %v1699, %v1700
        %v1702 = vrot.slane %v1701, 1
        %v1703 = vadd.f32 %v1701, %v1702
        %v1704 = vmul.f32 %v1602, 0.00390625
        %v1705 = vmul.f32 %v1703, 0.00390625
        %v1706 = vmul.f32 %v1704, %v1704
        %v1707 = vsub.f32 %v1705, %v1706
        %v1708 = vadd.f32 %v1707, 1e-05
        %v1709 = vrsqrt.pop %v1708
        %v1710 = vmul.f32 %v1709, %v1531
        %v1711 = vmul.f32 %v1704, %v1710
        %v1712 = vsub.f32 %v1532, %v1711
        %v1713 = vlaneseq
        %v1714 = vshrl.u32 %v1713, 7
        %v1715 = vsub.s32 0, %v1714
        %v1716 = vrot.slane %v1710, %v1715
        %v1717 = vmul.f32 %v1405, %v1716
        %v1718 = vmul.f32 %v1408, %v1716
        %v1719 = vmul.f32 %v1413, %v1716
        %v1720 = vmul.f32 %v1416, %v1716
        %v1721 = vmul.f32 %v1421, %v1716
        %v1722 = vmul.f32 %v1424, %v1716
        %v1723 = vmul.f32 %v1429, %v1716
        %v1724 = vmul.f32 %v1432, %v1716
        %v1725 = vmul.f32 %v1437, %v1716
        %v1726 = vmul.f32 %v1440, %v1716
        %v1727 = vmul.f32 %v1445, %v1716
        %v1728 = vmul.f32 %v1448, %v1716
        %v1729 = vmul.f32 %v1453, %v1716
        %v1730 = vmul.f32 %v1456, %v1716
        %v1731 = vmul.f32 %v1461, %v1716
        %v1732 = vmul.f32 %v1464, %v1716
        %v1733 = vmul.f32 %v1469, %v1716
        %v1734 = vmul.f32 %v1472, %v1716
        %v1735 = vmul.f32 %v1477, %v1716
        %v1736 = vmul.f32 %v1480, %v1716
        %v1737 = vmul.f32 %v1485, %v1716
        %v1738 = vmul.f32 %v1488, %v1716
        %v1739 = vmul.f32 %v1493, %v1716
        %v1740 = vmul.f32 %v1496, %v1716
        %v1741 = vmul.f32 %v1501, %v1716
        %v1742 = vmul.f32 %v1504, %v1716
        %v1743 = vmul.f32 %v1509, %v1716
        %v1744 = vmul.f32 %v1512, %v1716
        %v1745 = vmul.f32 %v1517, %v1716
        %v1746 = vmul.f32 %v1520, %v1716
        %v1747 = vmul.f32 %v1525, %v1716
        %v1748 = vmul.f32 %v1528, %v1716
        %v1749 = vlaneseq
        %v1750 = vshrl.u32 %v1749, 7
        %v1751 = vsub.s32 0, %v1750
        %v1752 = vrot.slane %v1712, %v1751
        %v1753 = vadd.f32 %v1717, %v1752
        %v1754 = vadd.f32 %v1718, %v1752
        %v1755 = vadd.f32 %v1719, %v1752
        %v1756 = vadd.f32 %v1720, %v1752
        %v1757 = vadd.f32 %v1721, %v1752
        %v1758 = vadd.f32 %v1722, %v1752
        %v1759 = vadd.f32 %v1723, %v1752
        %v1760 = vadd.f32 %v1724, %v1752
        %v1761 = vadd.f32 %v1725, %v1752
        %v1762 = vadd.f32 %v1726, %v1752
        %v1763 = vadd.f32 %v1727, %v1752
        %v1764 = vadd.f32 %v1728, %v1752
        %v1765 = vadd.f32 %v1729, %v1752
        %v1766 = vadd.f32 %v1730, %v1752
        %v1767 = vadd.f32 %v1731, %v1752
        %v1768 = vadd.f32 %v1732, %v1752
        %v1769 = vadd.f32 %v1733, %v1752
        %v1770 = vadd.f32 %v1734, %v1752
        %v1771 = vadd.f32 %v1735, %v1752
        %v1772 = vadd.f32 %v1736, %v1752
        %v1773 = vadd.f32 %v1737, %v1752
        %v1774 = vadd.f32 %v1738, %v1752
        %v1775 = vadd.f32 %v1739, %v1752
        %v1776 = vadd.f32 %v1740, %v1752
        %v1777 = vadd.f32 %v1741, %v1752
        %v1778 = vadd.f32 %v1742, %v1752
        %v1779 = vadd.f32 %v1743, %v1752
        %v1780 = vadd.f32 %v1744, %v1752
        %v1781 = vadd.f32 %v1745, %v1752
        %v1782 = vadd.f32 %v1746, %v1752
        %v1783 = vadd.f32 %v1747, %v1752
        %v1784 = vadd.f32 %v1748, %v1752
        %v1785 = vmax.f32 %v1753, 0.0
        %v1786 = vmax.f32 %v1754, 0.0
        %v1787 = vmax.f32 %v1755, 0.0
        %v1788 = vmax.f32 %v1756, 0.0
        %v1789 = vmax.f32 %v1757, 0.0
        %v1790 = vmax.f32 %v1758, 0.0
        %v1791 = vmax.f32 %v1759, 0.0
        %v1792 = vmax.f32 %v1760, 0.0
        %v1793 = vmax.f32 %v1761, 0.0
        %v1794 = vmax.f32 %v1762, 0.0
        %v1795 = vmax.f32 %v1763, 0.0
        %v1796 = vmax.f32 %v1764, 0.0
        %v1797 = vmax.f32 %v1765, 0.0
        %v1798 = vmax.f32 %v1766, 0.0
        %v1799 = vmax.f32 %v1767, 0.0
        %v1800 = vmax.f32 %v1768, 0.0
        %v1801 = vmax.f32 %v1769, 0.0
        %v1802 = vmax.f32 %v1770, 0.0
        %v1803 = vmax.f32 %v1771, 0.0
        %v1804 = vmax.f32 %v1772, 0.0
        %v1805 = vmax.f32 %v1773, 0.0
        %v1806 = vmax.f32 %v1774, 0.0
        %v1807 = vmax.f32 %v1775, 0.0
        %v1808 = vmax.f32 %v1776, 0.0
        %v1809 = vmax.f32 %v1777, 0.0
        %v1810 = vmax.f32 %v1778, 0.0
        %v1811 = vmax.f32 %v1779, 0.0
        %v1812 = vmax.f32 %v1780, 0.0
        %v1813 = vmax.f32 %v1781, 0.0
        %v1814 = vmax.f32 %v1782, 0.0
        %v1815 = vmax.f32 %v1783, 0.0
        %v1816 = vmax.f32 %v1784, 0.0
        %v1817 = vlaneseq
        %v1818 = vshrl.u32 %v1817, 7
        %v1819 = vadd.s32 %v1818, 8
        %v1820 = vadd.s32 %v1818, 16
        %v1821 = vadd.s32 %v1818, 24
        %v1822 = vadd.s32 %v1818, 32
        %v1823 = vadd.s32 %v1818, 40
        %v1824 = vadd.s32 %v1818, 48
        %v1825 = vadd.s32 %v1818, 56
        %vm1826 = vcmp.ge.s32.totalorder %v1818, 8
        %vm1827 = vcmp.ge.s32.totalorder %v1819, 8
        %vm1828 = vcmp.ge.s32.totalorder %v1820, 8
        %vm1829 = vcmp.ge.s32.totalorder %v1821, 8
        %vm1830 = vcmp.ge.s32.totalorder %v1822, 8
        %vm1831 = vcmp.ge.s32.totalorder %v1823, 8
        %vm1832 = vcmp.ge.s32.totalorder %v1824, 8
        %vm1833 = vcmp.ge.s32.totalorder %v1825, 8
        %v1834 = vand.u32 %v1818, 7
        %v1835 = vand.u32 %v1819, 7
        %v1836 = vand.u32 %v1820, 7
        %v1837 = vand.u32 %v1821, 7
        %v1838 = vand.u32 %v1822, 7
        %v1839 = vand.u32 %v1823, 7
        %v1840 = vand.u32 %v1824, 7
        %v1841 = vand.u32 %v1825, 7
        %vm1842 = vcmp.ne.s32.totalorder %v1834, 0
        %vm1843 = vcmp.ne.s32.totalorder %v1835, 0
        %vm1844 = vcmp.ne.s32.totalorder %v1836, 0
        %vm1845 = vcmp.ne.s32.totalorder %v1837, 0
        %vm1846 = vcmp.ne.s32.totalorder %v1838, 0
        %vm1847 = vcmp.ne.s32.totalorder %v1839, 0
        %vm1848 = vcmp.ne.s32.totalorder %v1840, 0
        %vm1849 = vcmp.ne.s32.totalorder %v1841, 0
        %v1850 = vrot.slane %v1809, 7
        %v1851 = vrot.slane %v1810, 7
        %v1852 = vrot.slane %v1811, 7
        %v1853 = vrot.slane %v1812, 7
        %v1854 = vrot.slane %v1813, 7
        %v1855 = vrot.slane %v1814, 7
        %v1856 = vrot.slane %v1815, 7
        %v1857 = vrot.slane %v1816, 7
        %vm1858 = vcmp.lt.s32.totalorder %v1818, 1
        %v1859 = vsel %vm1858, %v1856, %v1857
        %v1860 = vsel %vm1858, %v1855, %v1856
        %v1861 = vsel %vm1858, %v1854, %v1855
        %v1862 = vsel %vm1858, %v1853, %v1854
        %v1863 = vsel %vm1858, %v1852, %v1853
        %v1864 = vsel %vm1858, %v1851, %v1852
        %v1865 = vsel %vm1858, %v1850, %v1851
        %v1866 = vsel %vm1858, %v1857, %v1850
        %vm1867 = vmand %vm1826, %vm1842
        %vm1868 = vmand %vm1827, %vm1843
        %vm1869 = vmand %vm1828, %vm1844
        %vm1870 = vmand %vm1829, %vm1845
        %vm1871 = vmand %vm1830, %vm1846
        %vm1872 = vmand %vm1831, %vm1847
        %vm1873 = vmand %vm1832, %vm1848
        %vm1874 = vmand %vm1833, %vm1849
        %v1875 = vsel %vm1867, %v1859, 0.0
        %v1876 = vsel %vm1868, %v1866, 0.0
        %v1877 = vsel %vm1869, %v1865, 0.0
        %v1878 = vsel %vm1870, %v1864, 0.0
        %v1879 = vsel %vm1871, %v1863, 0.0
        %v1880 = vsel %vm1872, %v1862, 0.0
        %v1881 = vsel %vm1873, %v1861, 0.0
        %v1882 = vsel %vm1874, %v1860, 0.0
        %v1883 = vsel %vm1826, %v1808, 0.0
        %v1884 = vsel %vm1827, %v1801, 0.0
        %v1885 = vsel %vm1828, %v1802, 0.0
        %v1886 = vsel %vm1829, %v1803, 0.0
        %v1887 = vsel %vm1830, %v1804, 0.0
        %v1888 = vsel %vm1831, %v1805, 0.0
        %v1889 = vsel %vm1832, %v1806, 0.0
        %v1890 = vsel %vm1833, %v1807, 0.0
        %v1891 = vsel %vm1826, %v1816, 0.0
        %v1892 = vsel %vm1827, %v1809, 0.0
        %v1893 = vsel %vm1828, %v1810, 0.0
        %v1894 = vsel %vm1829, %v1811, 0.0
        %v1895 = vsel %vm1830, %v1812, 0.0
        %v1896 = vsel %vm1831, %v1813, 0.0
        %v1897 = vsel %vm1832, %v1814, 0.0
        %v1898 = vsel %vm1833, %v1815, 0.0
        %v1899 = vrot.slane %v1793, 7
        %v1900 = vrot.slane %v1794, 7
        %v1901 = vrot.slane %v1795, 7
        %v1902 = vrot.slane %v1796, 7
        %v1903 = vrot.slane %v1797, 7
        %v1904 = vrot.slane %v1798, 7
        %v1905 = vrot.slane %v1799, 7
        %v1906 = vrot.slane %v1800, 7
        %v1907 = vsel %vm1858, %v1905, %v1906
        %v1908 = vsel %vm1858, %v1904, %v1905
        %v1909 = vsel %vm1858, %v1903, %v1904
        %v1910 = vsel %vm1858, %v1902, %v1903
        %v1911 = vsel %vm1858, %v1901, %v1902
        %v1912 = vsel %vm1858, %v1900, %v1901
        %v1913 = vsel %vm1858, %v1899, %v1900
        %v1914 = vsel %vm1858, %v1906, %v1899
        %v1915 = vsel %vm1842, %v1914, 0.0
        %v1916 = vsel %vm1843, %v1913, 0.0
        %v1917 = vsel %vm1844, %v1912, 0.0
        %v1918 = vsel %vm1845, %v1911, 0.0
        %v1919 = vsel %vm1846, %v1910, 0.0
        %v1920 = vsel %vm1847, %v1909, 0.0
        %v1921 = vsel %vm1848, %v1908, 0.0
        %v1922 = vsel %vm1849, %v1907, 0.0
        %v1923 = vsel %vm1842, %v1866, 0.0
        %v1924 = vsel %vm1843, %v1865, 0.0
        %v1925 = vsel %vm1844, %v1864, 0.0
        %v1926 = vsel %vm1845, %v1863, 0.0
        %v1927 = vsel %vm1846, %v1862, 0.0
        %v1928 = vsel %vm1847, %v1861, 0.0
        %v1929 = vsel %vm1848, %v1860, 0.0
        %v1930 = vsel %vm1849, %v1859, 0.0
        %1939 = vrot.lane.b32.xlu0 %v1883, 16
        %v1940 = vpop.permute.xlu0 %1939
        %1941 = vrot.lane.b32.xlu0 %v1884, 16
        %v1942 = vpop.permute.xlu0 %1941
        %1943 = vrot.lane.b32.xlu0 %v1885, 16
        %v1944 = vpop.permute.xlu0 %1943
        %1945 = vrot.lane.b32.xlu0 %v1886, 16
        %v1946 = vpop.permute.xlu0 %1945
        %1947 = vrot.lane.b32.xlu0 %v1887, 16
        %v1948 = vpop.permute.xlu0 %1947
        %1949 = vrot.lane.b32.xlu0 %v1888, 16
        %v1950 = vpop.permute.xlu0 %1949
        %1951 = vrot.lane.b32.xlu0 %v1889, 16
        %v1952 = vpop.permute.xlu0 %1951
        %1953 = vrot.lane.b32.xlu0 %v1890, 16
        %v1954 = vpop.permute.xlu0 %1953
        %1971 = vrot.lane.b32.xlu0 %v1891, 32
        %v1972 = vpop.permute.xlu0 %1971
        %1973 = vrot.lane.b32.xlu0 %v1892, 32
        %v1974 = vpop.permute.xlu0 %1973
        %1975 = vrot.lane.b32.xlu0 %v1893, 32
        %v1976 = vpop.permute.xlu0 %1975
        %1977 = vrot.lane.b32.xlu0 %v1894, 32
        %v1978 = vpop.permute.xlu0 %1977
        %1979 = vrot.lane.b32.xlu0 %v1895, 32
        %v1980 = vpop.permute.xlu0 %1979
        %1981 = vrot.lane.b32.xlu0 %v1896, 32
        %v1982 = vpop.permute.xlu0 %1981
        %1983 = vrot.lane.b32.xlu0 %v1897, 32
        %v1984 = vpop.permute.xlu0 %1983
        %1985 = vrot.lane.b32.xlu0 %v1898, 32
        %v1986 = vpop.permute.xlu0 %1985
        %2003 = vrot.lane.b32.xlu0 %v1915, 48
        %v2004 = vpop.permute.xlu0 %2003
        %2005 = vrot.lane.b32.xlu0 %v1916, 48
        %v2006 = vpop.permute.xlu0 %2005
        %2007 = vrot.lane.b32.xlu0 %v1917, 48
        %v2008 = vpop.permute.xlu0 %2007
        %2009 = vrot.lane.b32.xlu0 %v1918, 48
        %v2010 = vpop.permute.xlu0 %2009
        %2011 = vrot.lane.b32.xlu0 %v1919, 48
        %v2012 = vpop.permute.xlu0 %2011
        %2013 = vrot.lane.b32.xlu0 %v1920, 48
        %v2014 = vpop.permute.xlu0 %2013
        %2015 = vrot.lane.b32.xlu0 %v1921, 48
        %v2016 = vpop.permute.xlu0 %2015
        %2017 = vrot.lane.b32.xlu0 %v1922, 48
        %v2018 = vpop.permute.xlu0 %2017
        %2035 = vrot.lane.b32.xlu0 %v1785, 64
        %v2036 = vpop.permute.xlu0 %2035
        %2037 = vrot.lane.b32.xlu0 %v1786, 64
        %v2038 = vpop.permute.xlu0 %2037
        %2039 = vrot.lane.b32.xlu0 %v1787, 64
        %v2040 = vpop.permute.xlu0 %2039
        %2041 = vrot.lane.b32.xlu0 %v1788, 64
        %v2042 = vpop.permute.xlu0 %2041
        %2043 = vrot.lane.b32.xlu0 %v1789, 64
        %v2044 = vpop.permute.xlu0 %2043
        %2045 = vrot.lane.b32.xlu0 %v1790, 64
        %v2046 = vpop.permute.xlu0 %2045
        %2047 = vrot.lane.b32.xlu0 %v1791, 64
        %v2048 = vpop.permute.xlu0 %2047
        %2049 = vrot.lane.b32.xlu0 %v1792, 64
        %v2050 = vpop.permute.xlu0 %2049
        %2067 = vrot.lane.b32.xlu0 %v1793, 80
        %v2068 = vpop.permute.xlu0 %2067
        %2069 = vrot.lane.b32.xlu0 %v1794, 80
        %v2070 = vpop.permute.xlu0 %2069
        %2071 = vrot.lane.b32.xlu0 %v1795, 80
        %v2072 = vpop.permute.xlu0 %2071
        %2073 = vrot.lane.b32.xlu0 %v1796, 80
        %v2074 = vpop.permute.xlu0 %2073
        %2075 = vrot.lane.b32.xlu0 %v1797, 80
        %v2076 = vpop.permute.xlu0 %2075
        %2077 = vrot.lane.b32.xlu0 %v1798, 80
        %v2078 = vpop.permute.xlu0 %2077
        %2079 = vrot.lane.b32.xlu0 %v1799, 80
        %v2080 = vpop.permute.xlu0 %2079
        %2081 = vrot.lane.b32.xlu0 %v1800, 80
        %v2082 = vpop.permute.xlu0 %2081
        %2099 = vrot.lane.b32.xlu0 %v1923, 96
        %v2100 = vpop.permute.xlu0 %2099
        %2101 = vrot.lane.b32.xlu0 %v1924, 96
        %v2102 = vpop.permute.xlu0 %2101
        %2103 = vrot.lane.b32.xlu0 %v1925, 96
        %v2104 = vpop.permute.xlu0 %2103
        %2105 = vrot.lane.b32.xlu0 %v1926, 96
        %v2106 = vpop.permute.xlu0 %2105
        %2107 = vrot.lane.b32.xlu0 %v1927, 96
        %v2108 = vpop.permute.xlu0 %2107
        %2109 = vrot.lane.b32.xlu0 %v1928, 96
        %v2110 = vpop.permute.xlu0 %2109
        %2111 = vrot.lane.b32.xlu0 %v1929, 96
        %v2112 = vpop.permute.xlu0 %2111
        %2113 = vrot.lane.b32.xlu0 %v1930, 96
        %v2114 = vpop.permute.xlu0 %2113
        %2131 = vrot.lane.b32.xlu0 %v1801, 112
        %v2132 = vpop.permute.xlu0 %2131
        %2133 = vrot.lane.b32.xlu0 %v1802, 112
        %v2134 = vpop.permute.xlu0 %2133
        %2135 = vrot.lane.b32.xlu0 %v1803, 112
        %v2136 = vpop.permute.xlu0 %2135
        %2137 = vrot.lane.b32.xlu0 %v1804, 112
        %v2138 = vpop.permute.xlu0 %2137
        %2139 = vrot.lane.b32.xlu0 %v1805, 112
        %v2140 = vpop.permute.xlu0 %2139
        %2141 = vrot.lane.b32.xlu0 %v1806, 112
        %v2142 = vpop.permute.xlu0 %2141
        %2143 = vrot.lane.b32.xlu0 %v1807, 112
        %v2144 = vpop.permute.xlu0 %2143
        %2145 = vrot.lane.b32.xlu0 %v1808, 112
        %v2146 = vpop.permute.xlu0 %2145
        %v2155 = vsel %vm1533, %v1875, %v1940
        %v2156 = vsel %vm1533, %v1876, %v1942
        %v2157 = vsel %vm1533, %v1877, %v1944
        %v2158 = vsel %vm1533, %v1878, %v1946
        %v2159 = vsel %vm1533, %v1879, %v1948
        %v2160 = vsel %vm1533, %v1880, %v1950
        %v2161 = vsel %vm1533, %v1881, %v1952
        %v2162 = vsel %vm1533, %v1882, %v1954
        %vm2163 = vcmask 261120
        %v2164 = vsel %vm2163, %v2155, %v1972
        %v2165 = vsel %vm2163, %v2156, %v1974
        %v2166 = vsel %vm2163, %v2157, %v1976
        %v2167 = vsel %vm2163, %v2158, %v1978
        %v2168 = vsel %vm2163, %v2159, %v1980
        %v2169 = vsel %vm2163, %v2160, %v1982
        %v2170 = vsel %vm2163, %v2161, %v1984
        %v2171 = vsel %vm2163, %v2162, %v1986
        %vm2172 = vcmask 392192
        %v2173 = vsel %vm2172, %v2164, %v2004
        %v2174 = vsel %vm2172, %v2165, %v2006
        %v2175 = vsel %vm2172, %v2166, %v2008
        %v2176 = vsel %vm2172, %v2167, %v2010
        %v2177 = vsel %vm2172, %v2168, %v2012
        %v2178 = vsel %vm2172, %v2169, %v2014
        %v2179 = vsel %vm2172, %v2170, %v2016
        %v2180 = vsel %vm2172, %v2171, %v2018
        %vm2181 = vcmask 523264
        %v2182 = vsel %vm2181, %v2173, %v2036
        %v2183 = vsel %vm2181, %v2174, %v2038
        %v2184 = vsel %vm2181, %v2175, %v2040
        %v2185 = vsel %vm2181, %v2176, %v2042
        %v2186 = vsel %vm2181, %v2177, %v2044
        %v2187 = vsel %vm2181, %v2178, %v2046
        %v2188 = vsel %vm2181, %v2179, %v2048
        %v2189 = vsel %vm2181, %v2180, %v2050
        %vm2190 = vcmask 654336
        %v2191 = vsel %vm2190, %v2182, %v2068
        %v2192 = vsel %vm2190, %v2183, %v2070
        %v2193 = vsel %vm2190, %v2184, %v2072
        %v2194 = vsel %vm2190, %v2185, %v2074
        %v2195 = vsel %vm2190, %v2186, %v2076
        %v2196 = vsel %vm2190, %v2187, %v2078
        %v2197 = vsel %vm2190, %v2188, %v2080
        %v2198 = vsel %vm2190, %v2189, %v2082
        %vm2199 = vcmask 785408
        %v2200 = vsel %vm2199, %v2191, %v2100
        %v2201 = vsel %vm2199, %v2192, %v2102
        %v2202 = vsel %vm2199, %v2193, %v2104
        %v2203 = vsel %vm2199, %v2194, %v2106
        %v2204 = vsel %vm2199, %v2195, %v2108
        %v2205 = vsel %vm2199, %v2196, %v2110
        %v2206 = vsel %vm2199, %v2197, %v2112
        %v2207 = vsel %vm2199, %v2198, %v2114
        %vm2208 = vcmask 916480
        %v2209 = vsel %vm2208, %v2200, %v2132
        %v2210 = vsel %vm2208, %v2201, %v2134
        %v2211 = vsel %vm2208, %v2202, %v2136
        %v2212 = vsel %vm2208, %v2203, %v2138
        %v2213 = vsel %vm2208, %v2204, %v2140
        %v2214 = vsel %vm2208, %v2205, %v2142
        %v2215 = vsel %vm2208, %v2206, %v2144
        %v2216 = vsel %vm2208, %v2207, %v2146
        %v2217 = vpack.c.bf16 %v2210, %v2209
        %v2218 = vpack.c.bf16 %v1810, %v1809
        %v2219 = vpack.c.bf16 %v2212, %v2211
        %v2220 = vpack.c.bf16 %v1812, %v1811
        %v2221 = vpack.c.bf16 %v2214, %v2213
        %v2222 = vpack.c.bf16 %v1814, %v1813
        %v2223 = vpack.c.bf16 %v2216, %v2215
        %v2224 = vpack.c.bf16 %v1816, %v1815
        %v2225 = vld [vmem:[%s6] sm:$0xf]
        %v2226 = vld [vmem:[%s6 + $0x4] sm:$0xf]
        %v2227 = vld [vmem:[%s6 + $0x8] sm:$0xf]
        %v2228 = vld [vmem:[%s6 + $0xc] sm:$0xf]
        %v2229 = vld [vmem:[%s6 + $0x10] sm:$0xf]
        %v2230 = vld [vmem:[%s6 + $0x14] sm:$0xf]
        %v2231 = vld [vmem:[%s6 + $0x18] sm:$0xf]
        %v2232 = vld [vmem:[%s6 + $0x1c] sm:$0xf]
        %v2233 = vld [vmem:[%s6 + $0x20] sm:$0xf]
        %v2234 = vld [vmem:[%s6 + $0x24] sm:$0xf]
        %v2235 = vld [vmem:[%s6 + $0x28] sm:$0xf]
        %v2236 = vld [vmem:[%s6 + $0x2c] sm:$0xf]
        %v2237 = vld [vmem:[%s6 + $0x30] sm:$0xf]
        %v2238 = vld [vmem:[%s6 + $0x34] sm:$0xf]
        %v2239 = vld [vmem:[%s6 + $0x38] sm:$0xf]
        %v2240 = vld [vmem:[%s6 + $0x3c] sm:$0xf]
        %v2241 = vld [vmem:[%s6 + $0x40] sm:$0xf]
        %v2242 = vld [vmem:[%s6 + $0x44] sm:$0xf]
        %v2261 = vunpack.c.l.b16 %v2225
        %v2262 = vunpack.c.l.b16 %v2226
        %v2263 = vunpack.c.l.b16 %v2227
        %v2264 = vunpack.c.l.b16 %v2228
        %v2265 = vunpack.c.l.b16 %v2229
        %v2266 = vunpack.c.l.b16 %v2230
        %v2267 = vunpack.c.l.b16 %v2231
        %v2268 = vunpack.c.l.b16 %v2232
        %v2269 = vunpack.c.l.b16 %v2233
        %v2270 = vunpack.c.l.b16 %v2234
        %v2271 = vunpack.c.l.b16 %v2235
        %v2272 = vunpack.c.l.b16 %v2236
        %v2273 = vunpack.c.l.b16 %v2237
        %v2274 = vunpack.c.l.b16 %v2238
        %v2275 = vunpack.c.l.b16 %v2239
        %v2276 = vunpack.c.l.b16 %v2240
        %v2277 = vunpack.c.l.b16 %v2241
        %v2278 = vunpack.c.l.b16 %v2242
        %v2279 = vpack.c.b16 %v2262, %v2261
        %v2280 = vpack.c.b16 %v2264, %v2263
        %v2281 = vpack.c.b16 %v2266, %v2265
        %v2282 = vpack.c.b16 %v2268, %v2267
        %v2283 = vpack.c.b16 %v2270, %v2269
        %v2284 = vpack.c.b16 %v2272, %v2271
        %v2285 = vpack.c.b16 %v2274, %v2273
        %v2286 = vpack.c.b16 %v2276, %v2275
        %v2287 = vpack.c.b16 %v2278, %v2277
        %v2298 = vsel %vm1533, %v2218, 0
        %v2301 = vsel %vm1533, %v2220, 0
        %v2304 = vsel %vm1533, %v2222, 0
        %v2307 = vsel %vm1533, %v2224, 0
        %2309 = vmatprep.subr.bf16.mxu0 0
        %2310 = vmatpush1.bf16.msra.mxu0 %v2279
        %2311 = vmatprep.subr.bf16.mxu0 0
        %2312 = vmatpush1.bf16.msra.mxu0 %v2280
        %2313 = vmatprep.subr.bf16.mxu0 0
        %2314 = vmatpush1.bf16.msra.mxu0 %v2281
        %2315 = vmatprep.subr.bf16.mxu0 0
        %2316 = vmatpush1.bf16.msra.mxu0 %v2282
        %2317 = vmatprep.subr.bf16.mxu0 0
        %2318 = vmatpush1.bf16.msra.mxu0 %v2283
        %2319 = vmatprep.subr.bf16.mxu0 0
        %2320 = vmatpush1.bf16.msra.mxu0 %v2284
        %2321 = vmatprep.subr.bf16.mxu0 0
        %2322 = vmatpush1.bf16.msra.mxu0 %v2285
        %2323 = vmatprep.subr.bf16.mxu0 0
        %2324 = vmatpush1.bf16.msra.mxu0 %v2286
        %2325 = vmatprep.subr.bf16.mxu0 0
        %2326 = vmatpush1.bf16.msra.mxu0 %v2287
        %2327 = vmatprep.subr.bf16.mxu0 0
        %2328 = vmatpush1.bf16.msra.mxu0 0
        %2329 = vmatprep.subr.bf16.mxu0 0
        %2330 = vmatpush1.bf16.msra.mxu0 0
        %2331 = vmatprep.subr.bf16.mxu0 0
        %2332 = vmatpush1.bf16.msra.mxu0 0
        %2333 = vmatprep.subr.bf16.mxu0 0
        %2334 = vmatpush1.bf16.msra.mxu0 0
        %2335 = vmatprep.subr.bf16.mxu0 0
        %2336 = vmatpush1.bf16.msra.mxu0 0
        %2337 = vmatprep.subr.bf16.mxu0 0
        %2338 = vmatpush1.bf16.msra.mxu0 0
        %2339 = vmatprep.subr.bf16.mxu0 0
        %2340 = vmatpush1.bf16.msra.mxu0 0
        %2341 = vmatprep.mubr.bf16.mxu0 %v2298
        %2342 = vmatmul.mubr.bf16.gmra.mrb[0].mxu0 %v2217
        %v2343 = vpop.f32.mrb[0].mxu0
        %v2344 = vadd.f32 0.0, %v2343
        %v2345 = vpop.f32.mrb[0].mxu0
        %v2346 = vpop.f32.mrb[0].mxu0
        %v2347 = vadd.f32 0.0, %v2346
        %v2348 = vpop.f32.mrb[0].mxu0
        %2349 = vmatprep.mubr.bf16.mxu0 %v2301
        %2350 = vmatmul.mubr.bf16.gmra.mrb[0].mxu0 %v2219
        %v2351 = vpop.f32.mrb[0].mxu0
        %v2352 = vadd.f32 0.0, %v2351
        %v2353 = vpop.f32.mrb[0].mxu0
        %v2354 = vpop.f32.mrb[0].mxu0
        %v2355 = vadd.f32 0.0, %v2354
        %v2356 = vpop.f32.mrb[0].mxu0
        %2357 = vmatprep.mubr.bf16.mxu0 %v2304
        %2358 = vmatmul.mubr.bf16.gmra.mrb[0].mxu0 %v2221
        %v2359 = vpop.f32.mrb[0].mxu0
        %v2360 = vadd.f32 0.0, %v2359
        %v2361 = vpop.f32.mrb[0].mxu0
        %v2362 = vpop.f32.mrb[0].mxu0
        %v2363 = vadd.f32 0.0, %v2362
        %v2364 = vpop.f32.mrb[0].mxu0
        %2365 = vmatprep.mubr.bf16.mxu0 %v2307
        %2366 = vmatmul.mubr.bf16.gmra.mrb[0].mxu0 %v2223
        %v2367 = vpop.f32.mrb[0].mxu0
        %v2368 = vadd.f32 0.0, %v2367
        %v2369 = vpop.f32.mrb[0].mxu0
        %v2370 = vpop.f32.mrb[0].mxu0
        %v2371 = vadd.f32 0.0, %v2370
        %v2372 = vpop.f32.mrb[0].mxu0
        %2373 = vdwg.mxu0
        %v2374 = vld [vmem:[%s7] sm:$0x1]
        %v2375 = vld [vmem:[%s7 + $0x1] sm:$0x1]
        %v2376 = vsel %vm1533, %v2344, 0.0
        %v2377 = vsel %vm1533, %v2347, 0.0
        %v2378 = vadd.f32 %v2376, %v2377
        %v2379 = vsel %vm1533, %v2352, 0.0
        %v2380 = vadd.f32 %v2378, %v2379
        %v2381 = vsel %vm1533, %v2355, 0.0
        %v2382 = vadd.f32 %v2380, %v2381
        %v2383 = vsel %vm1533, %v2360, 0.0
        %v2384 = vadd.f32 %v2382, %v2383
        %v2385 = vsel %vm1533, %v2363, 0.0
        %v2386 = vadd.f32 %v2384, %v2385
        %v2387 = vsel %vm1533, %v2368, 0.0
        %v2388 = vadd.f32 %v2386, %v2387
        %v2389 = vsel %vm1533, %v2371, 0.0
        %v2390 = vadd.f32 %v2388, %v2389
        %v2391 = vrot.slane %v2390, 4
        %v2392 = vadd.f32 %v2390, %v2391
        %v2393 = vrot.slane %v2392, 2
        %v2394 = vadd.f32 %v2392, %v2393
        %v2395 = vrot.slane %v2394, 1
        %v2396 = vadd.f32 %v2394, %v2395
        %v2397 = vmul.f32 %v2344, %v2344
        %v2398 = vmul.f32 %v2347, %v2347
        %v2399 = vmul.f32 %v2352, %v2352
        %v2400 = vmul.f32 %v2355, %v2355
        %v2401 = vmul.f32 %v2360, %v2360
        %v2402 = vmul.f32 %v2363, %v2363
        %v2403 = vmul.f32 %v2368, %v2368
        %v2404 = vmul.f32 %v2371, %v2371
        %v2405 = vsel %vm1533, %v2397, 0.0
        %v2406 = vsel %vm1533, %v2398, 0.0
        %v2407 = vadd.f32 %v2405, %v2406
        %v2408 = vsel %vm1533, %v2399, 0.0
        %v2409 = vadd.f32 %v2407, %v2408
        %v2410 = vsel %vm1533, %v2400, 0.0
        %v2411 = vadd.f32 %v2409, %v2410
        %v2412 = vsel %vm1533, %v2401, 0.0
        %v2413 = vadd.f32 %v2411, %v2412
        %v2414 = vsel %vm1533, %v2402, 0.0
        %v2415 = vadd.f32 %v2413, %v2414
        %v2416 = vsel %vm1533, %v2403, 0.0
        %v2417 = vadd.f32 %v2415, %v2416
        %v2418 = vsel %vm1533, %v2404, 0.0
        %v2419 = vadd.f32 %v2417, %v2418
        %v2420 = vrot.slane %v2419, 4
        %v2421 = vadd.f32 %v2419, %v2420
        %v2422 = vrot.slane %v2421, 2
        %v2423 = vadd.f32 %v2421, %v2422
        %v2424 = vrot.slane %v2423, 1
        %v2425 = vadd.f32 %v2423, %v2424
        %v2426 = vmul.f32 %v2396, 0.015625
        %v2427 = vmul.f32 %v2425, 0.015625
        %v2428 = vmul.f32 %v2426, %v2426
        %v2429 = vsub.f32 %v2427, %v2428
        %v2430 = vadd.f32 %v2429, 1e-05
        %v2431 = vrsqrt.pop %v2430
        %v2432 = vmul.f32 %v2431, %v2374
        %v2433 = vmul.f32 %v2426, %v2432
        %v2434 = vsub.f32 %v2375, %v2433
        %v2435 = vlaneseq
        %v2436 = vshrl.u32 %v2435, 7
        %v2437 = vsub.s32 0, %v2436
        %v2438 = vrot.slane %v2432, %v2437
        %v2439 = vmul.f32 %v2344, %v2438
        %v2440 = vmul.f32 %v2347, %v2438
        %v2441 = vmul.f32 %v2352, %v2438
        %v2442 = vmul.f32 %v2355, %v2438
        %v2443 = vmul.f32 %v2360, %v2438
        %v2444 = vmul.f32 %v2363, %v2438
        %v2445 = vmul.f32 %v2368, %v2438
        %v2446 = vmul.f32 %v2371, %v2438
        %v2447 = vlaneseq
        %v2448 = vshrl.u32 %v2447, 7
        %v2449 = vsub.s32 0, %v2448
        %v2450 = vrot.slane %v2434, %v2449
        %v2451 = vadd.f32 %v2439, %v2450
        %v2452 = vadd.f32 %v2440, %v2450
        %v2453 = vadd.f32 %v2441, %v2450
        %v2454 = vadd.f32 %v2442, %v2450
        %v2455 = vadd.f32 %v2443, %v2450
        %v2456 = vadd.f32 %v2444, %v2450
        %v2457 = vadd.f32 %v2445, %v2450
        %v2458 = vadd.f32 %v2446, %v2450
        %v2459 = vmax.f32 %v2451, 0.0
        %v2460 = vmax.f32 %v2452, 0.0
        %v2461 = vmax.f32 %v2453, 0.0
        %v2462 = vmax.f32 %v2454, 0.0
        %v2463 = vmax.f32 %v2455, 0.0
        %v2464 = vmax.f32 %v2456, 0.0
        %v2465 = vmax.f32 %v2457, 0.0
        %v2466 = vmax.f32 %v2458, 0.0
        %v2467 = vpack.c.bf16 %v2460, %v2459
        %v2468 = vpack.c.bf16 %v2462, %v2461
        %v2469 = vpack.c.bf16 %v2464, %v2463
        %v2470 = vpack.c.bf16 %v2466, %v2465
        %v2471 = vld [vmem:[%s8] sm:$0xf]
        %v2472 = vld [vmem:[%s8 + $0x4] sm:$0xf]
        %v2475 = vunpack.c.l.b16 %v2471
        %v2476 = vunpack.c.l.b16 %v2472
        %v2477 = vpack.c.b16 %v2476, %v2475
        %v2480 = vsel %vm1533, %v2467, 0
        %v2483 = vsel %vm1533, %v2468, 0
        %v2486 = vsel %vm1533, %v2469, 0
        %v2489 = vsel %vm1533, %v2470, 0
        %2491 = vmatprep.subr.bf16.mxu0 0
        %2492 = vmatpush1.bf16.msra.mxu0 %v2477
        %2493 = vmatprep.subr.bf16.mxu0 0
        %2494 = vmatpush1.bf16.msra.mxu0 0
        %2495 = vmatprep.subr.bf16.mxu0 0
        %2496 = vmatpush1.bf16.msra.mxu0 0
        %2497 = vmatprep.subr.bf16.mxu0 0
        %2498 = vmatpush1.bf16.msra.mxu0 0
        %2499 = vmatprep.subr.bf16.mxu0 0
        %2500 = vmatpush1.bf16.msra.mxu0 0
        %2501 = vmatprep.subr.bf16.mxu0 0
        %2502 = vmatpush1.bf16.msra.mxu0 0
        %2503 = vmatprep.subr.bf16.mxu0 0
        %2504 = vmatpush1.bf16.msra.mxu0 0
        %2505 = vmatprep.subr.bf16.mxu0 0
        %2506 = vmatpush1.bf16.msra.mxu0 0
        %2507 = vmatprep.subr.bf16.mxu0 0
        %2508 = vmatpush1.bf16.msra.mxu0 0
        %2509 = vmatprep.subr.bf16.mxu0 0
        %2510 = vmatpush1.bf16.msra.mxu0 0
        %2511 = vmatprep.subr.bf16.mxu0 0
        %2512 = vmatpush1.bf16.msra.mxu0 0
        %2513 = vmatprep.subr.bf16.mxu0 0
        %2514 = vmatpush1.bf16.msra.mxu0 0
        %2515 = vmatprep.subr.bf16.mxu0 0
        %2516 = vmatpush1.bf16.msra.mxu0 0
        %2517 = vmatprep.subr.bf16.mxu0 0
        %2518 = vmatpush1.bf16.msra.mxu0 0
        %2519 = vmatprep.subr.bf16.mxu0 0
        %2520 = vmatpush1.bf16.msra.mxu0 0
        %2521 = vmatprep.subr.bf16.mxu0 0
        %2522 = vmatpush1.bf16.msra.mxu0 0
        %2523 = vmatprep.mubr.bf16.mxu0 0
        %2524 = vmatmul.mubr.bf16.gmra.mrb[0].mxu0 %v2480
        %v2525 = vpop.f32.mrb[0].mxu0
        %v2526 = vadd.f32 %v1294, %v2525
        %v2527 = vpop.f32.mrb[0].mxu0
        %v2528 = vpop.f32.mrb[0].mxu0
        %v2529 = vadd.f32 %v1297, %v2528
        %v2530 = vpop.f32.mrb[0].mxu0
        %2531 = vmatprep.mubr.bf16.mxu0 0
        %2532 = vmatmul.mubr.bf16.gmra.mrb[0].mxu0 %v2483
        %v2533 = vpop.f32.mrb[0].mxu0
        %v2534 = vadd.f32 %v1302, %v2533
        %v2535 = vpop.f32.mrb[0].mxu0
        %v2536 = vpop.f32.mrb[0].mxu0
        %v2537 = vadd.f32 %v1305, %v2536
        %v2538 = vpop.f32.mrb[0].mxu0
        %2539 = vmatprep.mubr.bf16.mxu0 0
        %2540 = vmatmul.mubr.bf16.gmra.mrb[0].mxu0 %v2486
        %v2541 = vpop.f32.mrb[0].mxu0
        %v2542 = vadd.f32 %v1310, %v2541
        %v2543 = vpop.f32.mrb[0].mxu0
        %v2544 = vpop.f32.mrb[0].mxu0
        %v2545 = vadd.f32 %v1313, %v2544
        %v2546 = vpop.f32.mrb[0].mxu0
        %2547 = vmatprep.mubr.bf16.mxu0 0
        %2548 = vmatmul.mubr.bf16.gmra.mrb[0].mxu0 %v2489
        %v2549 = vpop.f32.mrb[0].mxu0
        %v2550 = vadd.f32 %v1318, %v2549
        %v2551 = vpop.f32.mrb[0].mxu0
        %v2552 = vpop.f32.mrb[0].mxu0
        %v2553 = vadd.f32 %v1321, %v2552
        %v2554 = vpop.f32.mrb[0].mxu0
        %2555 = vdwg.mxu0
        %v2556 = vld [vmem:[%s10] sm:$0xf]
        %v2557 = vld [vmem:[%s10 + $0x4] sm:$0xf]
        %v2558 = vld [vmem:[%s10 + $0x8] sm:$0xf]
        %v2559 = vld [vmem:[%s10 + $0xc] sm:$0xf]
        %v2560 = vld [vmem:[%s10 + $0x10] sm:$0xf]
        %v2561 = vld [vmem:[%s10 + $0x14] sm:$0xf]
        %v2562 = vld [vmem:[%s10 + $0x18] sm:$0xf]
        %v2563 = vld [vmem:[%s10 + $0x1c] sm:$0xf]
        %v2564 = vpack.c.bf16 %v2529, %v2526
        %v2565 = vpack.c.bf16 %v2537, %v2534
        %v2566 = vpack.c.bf16 %v2545, %v2542
        %v2567 = vpack.c.bf16 %v2553, %v2550
        %v2576 = vunpack.c.l.b16 %v2556
        %v2577 = vunpack.c.l.b16 %v2557
        %v2578 = vunpack.c.l.b16 %v2558
        %v2579 = vunpack.c.l.b16 %v2559
        %v2580 = vunpack.c.l.b16 %v2560
        %v2581 = vunpack.c.l.b16 %v2561
        %v2582 = vunpack.c.l.b16 %v2562
        %v2583 = vunpack.c.l.b16 %v2563
        %v2584 = vpack.c.b16 %v2577, %v2576
        %v2585 = vpack.c.b16 %v2579, %v2578
        %v2586 = vpack.c.b16 %v2581, %v2580
        %v2587 = vpack.c.b16 %v2583, %v2582
        %v2589 = vsel %vm2181, %v2584, 0
        %v2592 = vsel %vm2181, %v2585, 0
        %v2595 = vsel %vm2181, %v2586, 0
        %v2598 = vsel %vm2181, %v2587, 0
        %2600 = vmatprep.subr.bf16.mxu0 0
        %2601 = vmatpush1.bf16.msra.mxu0 %v2564
        %2602 = vmatprep.subr.bf16.mxu0 0
        %2603 = vmatpush1.bf16.msra.mxu0 %v2565
        %2604 = vmatprep.subr.bf16.mxu0 0
        %2605 = vmatpush1.bf16.msra.mxu0 %v2566
        %2606 = vmatprep.subr.bf16.mxu0 0
        %2607 = vmatpush1.bf16.msra.mxu0 %v2567
        %2608 = vmatprep.subr.bf16.mxu0 0
        %2609 = vmatpush1.bf16.msra.mxu0 0
        %2610 = vmatprep.subr.bf16.mxu0 0
        %2611 = vmatpush1.bf16.msra.mxu0 0
        %2612 = vmatprep.subr.bf16.mxu0 0
        %2613 = vmatpush1.bf16.msra.mxu0 0
        %2614 = vmatprep.subr.bf16.mxu0 0
        %2615 = vmatpush1.bf16.msra.mxu0 0
        %2616 = vmatprep.subr.bf16.mxu0 0
        %2617 = vmatpush1.bf16.msra.mxu0 0
        %2618 = vmatprep.subr.bf16.mxu0 0
        %2619 = vmatpush1.bf16.msra.mxu0 0
        %2620 = vmatprep.subr.bf16.mxu0 0
        %2621 = vmatpush1.bf16.msra.mxu0 0
        %2622 = vmatprep.subr.bf16.mxu0 0
        %2623 = vmatpush1.bf16.msra.mxu0 0
        %2624 = vmatprep.subr.bf16.mxu0 0
        %2625 = vmatpush1.bf16.msra.mxu0 0
        %2626 = vmatprep.subr.bf16.mxu0 0
        %2627 = vmatpush1.bf16.msra.mxu0 0
        %2628 = vmatprep.subr.bf16.mxu0 0
        %2629 = vmatpush1.bf16.msra.mxu0 0
        %2630 = vmatprep.subr.bf16.mxu0 0
        %2631 = vmatpush1.bf16.msra.mxu0 0
        %2632 = vmatprep.mubr.bf16.mxu0 0
        %2633 = vmatmul.mubr.bf16.gmra.mrb[0].mxu0 %v2589
        %v2634 = vpop.f32.mrb[0].mxu0
        %v2635 = vadd.f32 0.0, %v2634
        %v2636 = vpop.f32.mrb[0].mxu0
        %v2637 = vpop.f32.mrb[0].mxu0
        %v2638 = vadd.f32 0.0, %v2637
        %v2639 = vpop.f32.mrb[0].mxu0
        %2640 = vmatprep.mubr.bf16.mxu0 0
        %2641 = vmatmul.mubr.bf16.gmra.mrb[0].mxu0 %v2592
        %v2642 = vpop.f32.mrb[0].mxu0
        %v2643 = vadd.f32 0.0, %v2642
        %v2644 = vpop.f32.mrb[0].mxu0
        %v2645 = vpop.f32.mrb[0].mxu0
        %v2646 = vadd.f32 0.0, %v2645
        %v2647 = vpop.f32.mrb[0].mxu0
        %2648 = vmatprep.mubr.bf16.mxu0 0
        %2649 = vmatmul.mubr.bf16.gmra.mrb[0].mxu0 %v2595
        %v2650 = vpop.f32.mrb[0].mxu0
        %v2651 = vadd.f32 0.0, %v2650
        %v2652 = vpop.f32.mrb[0].mxu0
        %v2653 = vpop.f32.mrb[0].mxu0
        %v2654 = vadd.f32 0.0, %v2653
        %v2655 = vpop.f32.mrb[0].mxu0
        %2656 = vmatprep.mubr.bf16.mxu0 0
        %2657 = vmatmul.mubr.bf16.gmra.mrb[0].mxu0 %v2598
        %v2658 = vpop.f32.mrb[0].mxu0
        %v2659 = vadd.f32 0.0, %v2658
        %v2660 = vpop.f32.mrb[0].mxu0
        %v2661 = vpop.f32.mrb[0].mxu0
        %v2662 = vadd.f32 0.0, %v2661
        %v2663 = vpop.f32.mrb[0].mxu0
        %2664 = vdwg.mxu0
        %v2665 = vld [vmem:[%s11] sm:$0x1]
        %v2666 = vld [vmem:[%s11 + $0x1] sm:$0x1]
        %v2667 = vsel %vm2181, %v2635, 0.0
        %v2668 = vsel %vm2181, %v2638, 0.0
        %v2669 = vadd.f32 %v2667, %v2668
        %v2670 = vsel %vm2181, %v2643, 0.0
        %v2671 = vadd.f32 %v2669, %v2670
        %v2672 = vsel %vm2181, %v2646, 0.0
        %v2673 = vadd.f32 %v2671, %v2672
        %v2674 = vsel %vm2181, %v2651, 0.0
        %v2675 = vadd.f32 %v2673, %v2674
        %v2676 = vsel %vm2181, %v2654, 0.0
        %v2677 = vadd.f32 %v2675, %v2676
        %v2678 = vsel %vm2181, %v2659, 0.0
        %v2679 = vadd.f32 %v2677, %v2678
        %v2680 = vsel %vm2181, %v2662, 0.0
        %v2681 = vadd.f32 %v2679, %v2680
        %v2682 = vrot.slane %v2681, 4
        %v2683 = vadd.f32 %v2681, %v2682
        %v2684 = vrot.slane %v2683, 2
        %v2685 = vadd.f32 %v2683, %v2684
        %v2686 = vrot.slane %v2685, 1
        %v2687 = vadd.f32 %v2685, %v2686
        %v2688 = vmul.f32 %v2635, %v2635
        %v2689 = vmul.f32 %v2638, %v2638
        %v2690 = vmul.f32 %v2643, %v2643
        %v2691 = vmul.f32 %v2646, %v2646
        %v2692 = vmul.f32 %v2651, %v2651
        %v2693 = vmul.f32 %v2654, %v2654
        %v2694 = vmul.f32 %v2659, %v2659
        %v2695 = vmul.f32 %v2662, %v2662
        %v2696 = vsel %vm2181, %v2688, 0.0
        %v2697 = vsel %vm2181, %v2689, 0.0
        %v2698 = vadd.f32 %v2696, %v2697
        %v2699 = vsel %vm2181, %v2690, 0.0
        %v2700 = vadd.f32 %v2698, %v2699
        %v2701 = vsel %vm2181, %v2691, 0.0
        %v2702 = vadd.f32 %v2700, %v2701
        %v2703 = vsel %vm2181, %v2692, 0.0
        %v2704 = vadd.f32 %v2702, %v2703
        %v2705 = vsel %vm2181, %v2693, 0.0
        %v2706 = vadd.f32 %v2704, %v2705
        %v2707 = vsel %vm2181, %v2694, 0.0
        %v2708 = vadd.f32 %v2706, %v2707
        %v2709 = vsel %vm2181, %v2695, 0.0
        %v2710 = vadd.f32 %v2708, %v2709
        %v2711 = vrot.slane %v2710, 4
        %v2712 = vadd.f32 %v2710, %v2711
        %v2713 = vrot.slane %v2712, 2
        %v2714 = vadd.f32 %v2712, %v2713
        %v2715 = vrot.slane %v2714, 1
        %v2716 = vadd.f32 %v2714, %v2715
        %v2717 = vlaneseq
        %v2718 = vand.u32 %v2717, 127
        %v2719 = vand.u32 %v2718, 1
        %vm2720 = vcmp.eq.s32.totalorder %v2719, 0
        %vm2721 = vcmask 1048064
        %2722 = vrot.lane.b32.xlu0 %v2687, 64
        %v2723 = vpop.permute.xlu0 %2722
        %v2724 = vsel %vm2721, %v2723, %v2687
        %2725 = vrot.lane.b32.xlu0 %v2724, 64
        %v2726 = vpop.permute.xlu0 %2725
        %v2727 = vsel %vm2721, %v2726, %v2687
        %2729 = vrot.lane.b32.xlu0 %v2727, 127
        %v2730 = vpop.permute.xlu0 %2729
        %2732 = vrot.lane.b32.xlu0 %v2727, 65
        %v2733 = vpop.permute.xlu0 %2732
        %v2735 = vsel %vm2720, %v2730, %v2733
        %v2736 = vadd.f32 %v2687, %v2735
        %2737 = vrot.lane.b32.xlu0 %v2716, 64
        %v2738 = vpop.permute.xlu0 %2737
        %v2739 = vsel %vm2721, %v2738, %v2716
        %2740 = vrot.lane.b32.xlu0 %v2739, 64
        %v2741 = vpop.permute.xlu0 %2740
        %v2742 = vsel %vm2721, %v2741, %v2716
        %2744 = vrot.lane.b32.xlu0 %v2742, 127
        %v2745 = vpop.permute.xlu0 %2744
        %2747 = vrot.lane.b32.xlu0 %v2742, 65
        %v2748 = vpop.permute.xlu0 %2747
        %v2750 = vsel %vm2720, %v2745, %v2748
        %v2751 = vadd.f32 %v2716, %v2750
        %v2752 = vmul.f32 %v2736, 0.0078125
        %v2753 = vmul.f32 %v2751, 0.0078125
        %v2754 = vmul.f32 %v2752, %v2752
        %v2755 = vsub.f32 %v2753, %v2754
        %v2756 = vadd.f32 %v2755, 1e-05
        %v2757 = vrsqrt.pop %v2756
        %v2758 = vmul.f32 %v2757, %v2665
        %v2759 = vmul.f32 %v2752, %v2758
        %v2760 = vsub.f32 %v2666, %v2759
        %v2761 = vlaneseq
        %v2762 = vshrl.u32 %v2761, 7
        %v2763 = vsub.s32 0, %v2762
        %v2764 = vrot.slane %v2758, %v2763
        %v2765 = vmul.f32 %v2635, %v2764
        %v2766 = vmul.f32 %v2638, %v2764
        %v2767 = vmul.f32 %v2643, %v2764
        %v2768 = vmul.f32 %v2646, %v2764
        %v2769 = vmul.f32 %v2651, %v2764
        %v2770 = vmul.f32 %v2654, %v2764
        %v2771 = vmul.f32 %v2659, %v2764
        %v2772 = vmul.f32 %v2662, %v2764
        %v2773 = vlaneseq
        %v2774 = vshrl.u32 %v2773, 7
        %v2775 = vsub.s32 0, %v2774
        %v2776 = vrot.slane %v2760, %v2775
        %v2777 = vadd.f32 %v2765, %v2776
        %v2778 = vadd.f32 %v2766, %v2776
        %v2779 = vadd.f32 %v2767, %v2776
        %v2780 = vadd.f32 %v2768, %v2776
        %v2781 = vadd.f32 %v2769, %v2776
        %v2782 = vadd.f32 %v2770, %v2776
        %v2783 = vadd.f32 %v2771, %v2776
        %v2784 = vadd.f32 %v2772, %v2776
        %v2785 = vmax.f32 %v2777, 0.0
        %v2786 = vmax.f32 %v2778, 0.0
        %v2787 = vmax.f32 %v2779, 0.0
        %v2788 = vmax.f32 %v2780, 0.0
        %v2789 = vmax.f32 %v2781, 0.0
        %v2790 = vmax.f32 %v2782, 0.0
        %v2791 = vmax.f32 %v2783, 0.0
        %v2792 = vmax.f32 %v2784, 0.0
        %v2793 = vpack.c.bf16 %v2786, %v2785
        %v2794 = vpack.c.bf16 %v2788, %v2787
        %v2795 = vpack.c.bf16 %v2790, %v2789
        %v2796 = vpack.c.bf16 %v2792, %v2791
        %v2797 = vld [vmem:[%s17] sm:$0xf]
        %v2798 = vld [vmem:[%s17 + $0x4] sm:$0xf]
        %v2799 = vld [vmem:[%s17 + $0x8] sm:$0xf]
        %v2800 = vld [vmem:[%s17 + $0xc] sm:$0xf]
        %v2801 = vld [vmem:[%s17 + $0x10] sm:$0xf]
        %v2802 = vld [vmem:[%s17 + $0x14] sm:$0xf]
        %v2803 = vld [vmem:[%s17 + $0x18] sm:$0xf]
        %v2804 = vld [vmem:[%s17 + $0x1c] sm:$0xf]
        %v2813 = vunpack.c.l.b16 %v2797
        %v2814 = vunpack.c.l.b16 %v2798
        %v2815 = vunpack.c.l.b16 %v2799
        %v2816 = vunpack.c.l.b16 %v2800
        %v2817 = vunpack.c.l.b16 %v2801
        %v2818 = vunpack.c.l.b16 %v2802
        %v2819 = vunpack.c.l.b16 %v2803
        %v2820 = vunpack.c.l.b16 %v2804
        %v2821 = vpack.c.b16 %v2814, %v2813
        %v2822 = vpack.c.b16 %v2816, %v2815
        %v2823 = vpack.c.b16 %v2818, %v2817
        %v2824 = vpack.c.b16 %v2820, %v2819
        %v2830 = vsel %vm2181, %v2793, 0
        %2832 = vmatprep.subr.bf16.mxu0 0
        %2833 = vmatpush1.bf16.msra.mxu0 %v2821
        %2834 = vmatprep.subr.bf16.mxu0 0
        %2835 = vmatpush1.bf16.msra.mxu0 %v2822
        %2836 = vmatprep.subr.bf16.mxu0 0
        %2837 = vmatpush1.bf16.msra.mxu0 %v2823
        %2838 = vmatprep.subr.bf16.mxu0 0
        %2839 = vmatpush1.bf16.msra.mxu0 %v2824
        %2840 = vmatprep.subr.bf16.mxu0 0
        %2841 = vmatpush1.bf16.msra.mxu0 0
        %2842 = vmatprep.subr.bf16.mxu0 0
        %2843 = vmatpush1.bf16.msra.mxu0 0
        %2844 = vmatprep.subr.bf16.mxu0 0
        %2845 = vmatpush1.bf16.msra.mxu0 0
        %2846 = vmatprep.subr.bf16.mxu0 0
        %2847 = vmatpush1.bf16.msra.mxu0 0
        %2848 = vmatprep.subr.bf16.mxu0 0
        %2849 = vmatpush1.bf16.msra.mxu0 0
        %2850 = vmatprep.subr.bf16.mxu0 0
        %2851 = vmatpush1.bf16.msra.mxu0 0
        %2852 = vmatprep.subr.bf16.mxu0 0
        %2853 = vmatpush1.bf16.msra.mxu0 0
        %2854 = vmatprep.subr.bf16.mxu0 0
        %2855 = vmatpush1.bf16.msra.mxu0 0
        %2856 = vmatprep.subr.bf16.mxu0 0
        %2857 = vmatpush1.bf16.msra.mxu0 0
        %2858 = vmatprep.subr.bf16.mxu0 0
        %2859 = vmatpush1.bf16.msra.mxu0 0
        %2860 = vmatprep.subr.bf16.mxu0 0
        %2861 = vmatpush1.bf16.msra.mxu0 0
        %2862 = vmatprep.subr.bf16.mxu0 0
        %2863 = vmatpush1.bf16.msra.mxu0 0
        %2864 = vmatprep.mubr.bf16.mxu0 0
        %2865 = vmatmul.mubr.bf16.gmra.mrb[0].mxu0 %v2830
        %v2866 = vpop.f32.mrb[0].mxu0
        %v2867 = vadd.f32 0.0, %v2866
        %v2868 = vpop.f32.mrb[0].mxu0
        %v2869 = vpop.f32.mrb[0].mxu0
        %v2870 = vadd.f32 0.0, %v2869
        %v2871 = vpop.f32.mrb[0].mxu0
        %2872 = vdwg.mxu0
        %v2873 = vld [vmem:[%s12] sm:$0xf]
        %v2874 = vld [vmem:[%s12 + $0x4] sm:$0xf]
        %v2875 = vld [vmem:[%s12 + $0x8] sm:$0xf]
        %v2876 = vld [vmem:[%s12 + $0xc] sm:$0xf]
        %v2877 = vld [vmem:[%s12 + $0x10] sm:$0xf]
        %v2878 = vld [vmem:[%s12 + $0x14] sm:$0xf]
        %v2879 = vld [vmem:[%s12 + $0x18] sm:$0xf]
        %v2880 = vld [vmem:[%s12 + $0x1c] sm:$0xf]
        %v2889 = vunpack.c.l.b16 %v2873
        %v2890 = vunpack.c.l.b16 %v2874
        %v2891 = vunpack.c.l.b16 %v2875
        %v2892 = vunpack.c.l.b16 %v2876
        %v2893 = vunpack.c.l.b16 %v2877
        %v2894 = vunpack.c.l.b16 %v2878
        %v2895 = vunpack.c.l.b16 %v2879
        %v2896 = vunpack.c.l.b16 %v2880
        %v2897 = vpack.c.b16 %v2890, %v2889
        %v2898 = vpack.c.b16 %v2892, %v2891
        %v2899 = vpack.c.b16 %v2894, %v2893
        %v2900 = vpack.c.b16 %v2896, %v2895
        %v2906 = vsel %vm2181, %v2794, 0
        %v2909 = vsel %vm2181, %v2795, 0
        %v2912 = vsel %vm2181, %v2796, 0
        %2914 = vmatprep.subr.bf16.mxu0 0
        %2915 = vmatpush1.bf16.msra.mxu0 %v2897
        %2916 = vmatprep.subr.bf16.mxu0 0
        %2917 = vmatpush1.bf16.msra.mxu0 %v2898
        %2918 = vmatprep.subr.bf16.mxu0 0
        %2919 = vmatpush1.bf16.msra.mxu0 %v2899
        %2920 = vmatprep.subr.bf16.mxu0 0
        %2921 = vmatpush1.bf16.msra.mxu0 %v2900
        %2922 = vmatprep.subr.bf16.mxu0 0
        %2923 = vmatpush1.bf16.msra.mxu0 0
        %2924 = vmatprep.subr.bf16.mxu0 0
        %2925 = vmatpush1.bf16.msra.mxu0 0
        %2926 = vmatprep.subr.bf16.mxu0 0
        %2927 = vmatpush1.bf16.msra.mxu0 0
        %2928 = vmatprep.subr.bf16.mxu0 0
        %2929 = vmatpush1.bf16.msra.mxu0 0
        %2930 = vmatprep.subr.bf16.mxu0 0
        %2931 = vmatpush1.bf16.msra.mxu0 0
        %2932 = vmatprep.subr.bf16.mxu0 0
        %2933 = vmatpush1.bf16.msra.mxu0 0
        %2934 = vmatprep.subr.bf16.mxu0 0
        %2935 = vmatpush1.bf16.msra.mxu0 0
        %2936 = vmatprep.subr.bf16.mxu0 0
        %2937 = vmatpush1.bf16.msra.mxu0 0
        %2938 = vmatprep.subr.bf16.mxu0 0
        %2939 = vmatpush1.bf16.msra.mxu0 0
        %2940 = vmatprep.subr.bf16.mxu0 0
        %2941 = vmatpush1.bf16.msra.mxu0 0
        %2942 = vmatprep.subr.bf16.mxu0 0
        %2943 = vmatpush1.bf16.msra.mxu0 0
        %2944 = vmatprep.subr.bf16.mxu0 0
        %2945 = vmatpush1.bf16.msra.mxu0 0
        %2946 = vmatprep.mubr.bf16.mxu0 0
        %2947 = vmatmul.mubr.bf16.gmra.mrb[0].mxu0 %v2830
        %v2948 = vpop.f32.mrb[0].mxu0
        %v2949 = vadd.f32 0.0, %v2948
        %v2950 = vpop.f32.mrb[0].mxu0
        %v2951 = vpop.f32.mrb[0].mxu0
        %v2952 = vadd.f32 0.0, %v2951
        %v2953 = vpop.f32.mrb[0].mxu0
        %2954 = vmatprep.mubr.bf16.mxu0 0
        %2955 = vmatmul.mubr.bf16.gmra.mrb[0].mxu0 %v2906
        %v2956 = vpop.f32.mrb[0].mxu0
        %v2957 = vadd.f32 0.0, %v2956
        %v2958 = vpop.f32.mrb[0].mxu0
        %v2959 = vpop.f32.mrb[0].mxu0
        %v2960 = vadd.f32 0.0, %v2959
        %v2961 = vpop.f32.mrb[0].mxu0
        %2962 = vmatprep.mubr.bf16.mxu0 0
        %2963 = vmatmul.mubr.bf16.gmra.mrb[0].mxu0 %v2909
        %v2964 = vpop.f32.mrb[0].mxu0
        %v2965 = vadd.f32 0.0, %v2964
        %v2966 = vpop.f32.mrb[0].mxu0
        %v2967 = vpop.f32.mrb[0].mxu0
        %v2968 = vadd.f32 0.0, %v2967
        %v2969 = vpop.f32.mrb[0].mxu0
        %2970 = vmatprep.mubr.bf16.mxu0 0
        %2971 = vmatmul.mubr.bf16.gmra.mrb[0].mxu0 %v2912
        %v2972 = vpop.f32.mrb[0].mxu0
        %v2973 = vadd.f32 0.0, %v2972
        %v2974 = vpop.f32.mrb[0].mxu0
        %v2975 = vpop.f32.mrb[0].mxu0
        %v2976 = vadd.f32 0.0, %v2975
        %v2977 = vpop.f32.mrb[0].mxu0
        %2978 = vdwg.mxu0
        %v2979 = vld [vmem:[%s13] sm:$0x1]
        %v2980 = vld [vmem:[%s13 + $0x1] sm:$0x1]
        %v2981 = vsel %vm2163, %v2949, 0.0
        %v2982 = vsel %vm2163, %v2952, 0.0
        %v2983 = vadd.f32 %v2981, %v2982
        %v2984 = vsel %vm2163, %v2957, 0.0
        %v2985 = vadd.f32 %v2983, %v2984
        %v2986 = vsel %vm2163, %v2960, 0.0
        %v2987 = vadd.f32 %v2985, %v2986
        %v2988 = vsel %vm2163, %v2965, 0.0
        %v2989 = vadd.f32 %v2987, %v2988
        %v2990 = vsel %vm2163, %v2968, 0.0
        %v2991 = vadd.f32 %v2989, %v2990
        %v2992 = vsel %vm2163, %v2973, 0.0
        %v2993 = vadd.f32 %v2991, %v2992
        %v2994 = vsel %vm2163, %v2976, 0.0
        %v2995 = vadd.f32 %v2993, %v2994
        %v2996 = vrot.slane %v2995, 4
        %v2997 = vadd.f32 %v2995, %v2996
        %v2998 = vrot.slane %v2997, 2
        %v2999 = vadd.f32 %v2997, %v2998
        %v3000 = vrot.slane %v2999, 1
        %v3001 = vadd.f32 %v2999, %v3000
        %v3002 = vmul.f32 %v2949, %v2949
        %v3003 = vmul.f32 %v2952, %v2952
        %v3004 = vmul.f32 %v2957, %v2957
        %v3005 = vmul.f32 %v2960, %v2960
        %v3006 = vmul.f32 %v2965, %v2965
        %v3007 = vmul.f32 %v2968, %v2968
        %v3008 = vmul.f32 %v2973, %v2973
        %v3009 = vmul.f32 %v2976, %v2976
        %v3010 = vsel %vm2163, %v3002, 0.0
        %v3011 = vsel %vm2163, %v3003, 0.0
        %v3012 = vadd.f32 %v3010, %v3011
        %v3013 = vsel %vm2163, %v3004, 0.0
        %v3014 = vadd.f32 %v3012, %v3013
        %v3015 = vsel %vm2163, %v3005, 0.0
        %v3016 = vadd.f32 %v3014, %v3015
        %v3017 = vsel %vm2163, %v3006, 0.0
        %v3018 = vadd.f32 %v3016, %v3017
        %v3019 = vsel %vm2163, %v3007, 0.0
        %v3020 = vadd.f32 %v3018, %v3019
        %v3021 = vsel %vm2163, %v3008, 0.0
        %v3022 = vadd.f32 %v3020, %v3021
        %v3023 = vsel %vm2163, %v3009, 0.0
        %v3024 = vadd.f32 %v3022, %v3023
        %v3025 = vrot.slane %v3024, 4
        %v3026 = vadd.f32 %v3024, %v3025
        %v3027 = vrot.slane %v3026, 2
        %v3028 = vadd.f32 %v3026, %v3027
        %v3029 = vrot.slane %v3028, 1
        %v3030 = vadd.f32 %v3028, %v3029
        %v3031 = vmul.f32 %v3001, 0.015625
        %v3032 = vmul.f32 %v3030, 0.015625
        %v3033 = vmul.f32 %v3031, %v3031
        %v3034 = vsub.f32 %v3032, %v3033
        %v3035 = vadd.f32 %v3034, 1e-05
        %v3036 = vrsqrt.pop %v3035
        %v3037 = vmul.f32 %v3036, %v2979
        %v3038 = vmul.f32 %v3031, %v3037
        %v3039 = vsub.f32 %v2980, %v3038
        %v3040 = vlaneseq
        %v3041 = vshrl.u32 %v3040, 7
        %v3042 = vsub.s32 0, %v3041
        %v3043 = vrot.slane %v3037, %v3042
        %v3044 = vmul.f32 %v2949, %v3043
        %v3045 = vmul.f32 %v2952, %v3043
        %v3046 = vmul.f32 %v2957, %v3043
        %v3047 = vmul.f32 %v2960, %v3043
        %v3048 = vmul.f32 %v2965, %v3043
        %v3049 = vmul.f32 %v2968, %v3043
        %v3050 = vmul.f32 %v2973, %v3043
        %v3051 = vmul.f32 %v2976, %v3043
        %v3052 = vlaneseq
        %v3053 = vshrl.u32 %v3052, 7
        %v3054 = vsub.s32 0, %v3053
        %v3055 = vrot.slane %v3039, %v3054
        %v3056 = vadd.f32 %v3044, %v3055
        %v3057 = vadd.f32 %v3045, %v3055
        %v3058 = vadd.f32 %v3046, %v3055
        %v3059 = vadd.f32 %v3047, %v3055
        %v3060 = vadd.f32 %v3048, %v3055
        %v3061 = vadd.f32 %v3049, %v3055
        %v3062 = vadd.f32 %v3050, %v3055
        %v3063 = vadd.f32 %v3051, %v3055
        %v3064 = vmax.f32 %v3056, 0.0
        %v3065 = vmax.f32 %v3057, 0.0
        %v3066 = vmax.f32 %v3058, 0.0
        %v3067 = vmax.f32 %v3059, 0.0
        %v3068 = vmax.f32 %v3060, 0.0
        %v3069 = vmax.f32 %v3061, 0.0
        %v3070 = vmax.f32 %v3062, 0.0
        %v3071 = vmax.f32 %v3063, 0.0
        %vm3072 = vcmp.ge.s32.totalorder %v1818, 4
        %vm3073 = vcmp.ge.s32.totalorder %v1819, 4
        %v3074 = vand.u32 %v1818, 3
        %v3075 = vand.u32 %v1819, 3
        %vm3076 = vcmp.ne.s32.totalorder %v3074, 0
        %vm3077 = vcmp.ne.s32.totalorder %v3075, 0
        %v3078 = vrot.slane %v3070, 3
        %v3079 = vrot.slane %v3071, 3
        %vm3080 = vcmp.lt.s32.totalorder %v1818, 5
        %v3081 = vsel %vm3080, %v3078, %v3079
        %v3082 = vsel %vm3080, %v3079, %v3078
        %vm3083 = vmand %vm3072, %vm3076
        %vm3084 = vmand %vm3073, %vm3077
        %v3085 = vsel %vm3083, %v3082, 0.0
        %v3086 = vsel %vm3084, %v3081, 0.0
        %v3087 = vrot.slane %v3068, 4
        %v3088 = vrot.slane %v3069, 4
        %vm3089 = vcmp.lt.s32.totalorder %v1818, 4
        %v3090 = vsel %vm3089, %v3087, %v3088
        %v3091 = vsel %vm3089, %v3088, %v3087
        %v3092 = vsel %vm3072, %v3091, 0.0
        %v3093 = vsel %vm3073, %v3090, 0.0
        %v3094 = vrot.slane %v3070, 4
        %v3095 = vrot.slane %v3071, 4
        %v3096 = vsel %vm3089, %v3094, %v3095
        %v3097 = vsel %vm3089, %v3095, %v3094
        %v3098 = vsel %vm3072, %v3097, 0.0
        %v3099 = vsel %vm3073, %v3096, 0.0
        %v3100 = vrot.slane %v3066, 7
        %v3101 = vrot.slane %v3067, 7
        %v3102 = vsel %vm1858, %v3100, %v3101
        %v3103 = vsel %vm1858, %v3101, %v3100
        %v3104 = vsel %vm3076, %v3103, 0.0
        %v3105 = vsel %vm3077, %v3102, 0.0
        %v3106 = vrot.slane %v3070, 7
        %v3107 = vrot.slane %v3071, 7
        %v3108 = vsel %vm1858, %v3106, %v3107
        %v3109 = vsel %vm1858, %v3107, %v3106
        %v3110 = vsel %vm3076, %v3109, 0.0
        %v3111 = vsel %vm3077, %v3108, 0.0
        %3114 = vrot.lane.b32.xlu0 %v3092, 32
        %v3115 = vpop.permute.xlu0 %3114
        %3116 = vrot.lane.b32.xlu0 %v3093, 32
        %v3117 = vpop.permute.xlu0 %3116
        %3122 = vrot.lane.b32.xlu0 %v3098, 64
        %v3123 = vpop.permute.xlu0 %3122
        %3124 = vrot.lane.b32.xlu0 %v3099, 64
        %v3125 = vpop.permute.xlu0 %3124
        %3130 = vrot.lane.b32.xlu0 %v3104, 96
        %v3131 = vpop.permute.xlu0 %3130
        %3132 = vrot.lane.b32.xlu0 %v3105, 96
        %v3133 = vpop.permute.xlu0 %3132
        %3138 = vrot.lane.b32.xlu0 %v3066, 32
        %v3139 = vpop.permute.xlu0 %3138
        %3140 = vrot.lane.b32.xlu0 %v3067, 32
        %v3141 = vpop.permute.xlu0 %3140
        %3146 = vrot.lane.b32.xlu0 %v3110, 64
        %v3147 = vpop.permute.xlu0 %3146
        %3148 = vrot.lane.b32.xlu0 %v3111, 64
        %v3149 = vpop.permute.xlu0 %3148
        %3154 = vrot.lane.b32.xlu0 %v3068, 96
        %v3155 = vpop.permute.xlu0 %3154
        %3156 = vrot.lane.b32.xlu0 %v3069, 96
        %v3157 = vpop.permute.xlu0 %3156
        %v3160 = vsel %vm2163, %v3085, %v3115
        %v3161 = vsel %vm2163, %v3086, %v3117
        %v3162 = vsel %vm2181, %v3160, %v3123
        %v3163 = vsel %vm2181, %v3161, %v3125
        %v3164 = vsel %vm2199, %v3162, %v3131
        %v3165 = vsel %vm2199, %v3163, %v3133
        %v3166 = vsel %vm2163, %v3064, %v3139
        %v3167 = vsel %vm2163, %v3065, %v3141
        %v3168 = vsel %vm2181, %v3166, %v3147
        %v3169 = vsel %vm2181, %v3167, %v3149
        %v3170 = vsel %vm2199, %v3168, %v3155
        %v3171 = vsel %vm2199, %v3169, %v3157
        %v3172 = vpack.c.bf16 %v3165, %v3164
        %v3173 = vpack.c.bf16 %v3171, %v3170
        %v3174 = vpack.c.bf16 %v3071, %v3070
        %v3175 = vld [vmem:[%s14] sm:$0xf]
        %v3176 = vld [vmem:[%s14 + $0x4] sm:$0xf]
        %v3177 = vld [vmem:[%s14 + $0x8] sm:$0xf]
        %v3178 = vld [vmem:[%s14 + $0xc] sm:$0xf]
        %v3179 = vld [vmem:[%s14 + $0x10] sm:$0xf]
        %v3180 = vld [vmem:[%s14 + $0x14] sm:$0xf]
        %v3181 = vld [vmem:[%s14 + $0x18] sm:$0xf]
        %v3182 = vld [vmem:[%s14 + $0x1c] sm:$0xf]
        %v3183 = vld [vmem:[%s14 + $0x20] sm:$0xf]
        %v3184 = vld [vmem:[%s14 + $0x24] sm:$0xf]
        %v3185 = vld [vmem:[%s14 + $0x28] sm:$0xf]
        %v3186 = vld [vmem:[%s14 + $0x2c] sm:$0xf]
        %v3187 = vld [vmem:[%s14 + $0x30] sm:$0xf]
        %v3188 = vld [vmem:[%s14 + $0x34] sm:$0xf]
        %v3189 = vld [vmem:[%s14 + $0x38] sm:$0xf]
        %v3190 = vld [vmem:[%s14 + $0x3c] sm:$0xf]
        %v3191 = vld [vmem:[%s14 + $0x40] sm:$0xf]
        %v3192 = vld [vmem:[%s14 + $0x44] sm:$0xf]
        %v3193 = vld [vmem:[%s14 + $0x48] sm:$0xf]
        %v3194 = vld [vmem:[%s14 + $0x4c] sm:$0xf]
        %v3195 = vld [vmem:[%s14 + $0x50] sm:$0xf]
        %v3196 = vld [vmem:[%s14 + $0x54] sm:$0xf]
        %v3197 = vld [vmem:[%s14 + $0x58] sm:$0xf]
        %v3198 = vld [vmem:[%s14 + $0x5c] sm:$0xf]
        %v3199 = vld [vmem:[%s14 + $0x60] sm:$0xf]
        %v3200 = vld [vmem:[%s14 + $0x64] sm:$0xf]
        %v3201 = vld [vmem:[%s14 + $0x68] sm:$0xf]
        %v3202 = vld [vmem:[%s14 + $0x6c] sm:$0xf]
        %v3203 = vld [vmem:[%s14 + $0x70] sm:$0xf]
        %v3204 = vld [vmem:[%s14 + $0x74] sm:$0xf]
        %v3205 = vld [vmem:[%s14 + $0x78] sm:$0xf]
        %v3206 = vld [vmem:[%s14 + $0x7c] sm:$0xf]
        %v3207 = vld [vmem:[%s14 + $0x80] sm:$0xf]
        %v3208 = vld [vmem:[%s14 + $0x84] sm:$0xf]
        %v3209 = vld [vmem:[%s14 + $0x88] sm:$0xf]
        %v3210 = vld [vmem:[%s14 + $0x8c] sm:$0xf]
        %v3247 = vunpack.c.l.b16 %v3175
        %v3248 = vunpack.c.l.b16 %v3176
        %v3249 = vunpack.c.l.b16 %v3177
        %v3250 = vunpack.c.l.b16 %v3178
        %v3251 = vunpack.c.l.b16 %v3179
        %v3252 = vunpack.c.l.b16 %v3180
        %v3253 = vunpack.c.l.b16 %v3181
        %v3254 = vunpack.c.l.b16 %v3182
        %v3255 = vunpack.c.l.b16 %v3183
        %v3256 = vunpack.c.l.b16 %v3184
        %v3257 = vunpack.c.l.b16 %v3185
        %v3258 = vunpack.c.l.b16 %v3186
        %v3259 = vunpack.c.l.b16 %v3187
        %v3260 = vunpack.c.l.b16 %v3188
        %v3261 = vunpack.c.l.b16 %v3189
        %v3262 = vunpack.c.l.b16 %v3190
        %v3263 = vunpack.c.l.b16 %v3191
        %v3264 = vunpack.c.l.b16 %v3192
        %v3265 = vunpack.c.l.b16 %v3193
        %v3266 = vunpack.c.l.b16 %v3194
        %v3267 = vunpack.c.l.b16 %v3195
        %v3268 = vunpack.c.l.b16 %v3196
        %v3269 = vunpack.c.l.b16 %v3197
        %v3270 = vunpack.c.l.b16 %v3198
        %v3271 = vunpack.c.l.b16 %v3199
        %v3272 = vunpack.c.l.b16 %v3200
        %v3273 = vunpack.c.l.b16 %v3201
        %v3274 = vunpack.c.l.b16 %v3202
        %v3275 = vunpack.c.l.b16 %v3203
        %v3276 = vunpack.c.l.b16 %v3204
        %v3277 = vunpack.c.l.b16 %v3205
        %v3278 = vunpack.c.l.b16 %v3206
        %v3279 = vunpack.c.l.b16 %v3207
        %v3280 = vunpack.c.l.b16 %v3208
        %v3281 = vunpack.c.l.b16 %v3209
        %v3282 = vunpack.c.l.b16 %v3210
        %v3283 = vpack.c.b16 %v3248, %v3247
        %v3284 = vpack.c.b16 %v3250, %v3249
        %v3285 = vpack.c.b16 %v3252, %v3251
        %v3286 = vpack.c.b16 %v3254, %v3253
        %v3287 = vpack.c.b16 %v3256, %v3255
        %v3288 = vpack.c.b16 %v3258, %v3257
        %v3289 = vpack.c.b16 %v3260, %v3259
        %v3290 = vpack.c.b16 %v3262, %v3261
        %v3291 = vpack.c.b16 %v3264, %v3263
        %v3292 = vpack.c.b16 %v3266, %v3265
        %v3293 = vpack.c.b16 %v3268, %v3267
        %v3294 = vpack.c.b16 %v3270, %v3269
        %v3295 = vpack.c.b16 %v3272, %v3271
        %v3296 = vpack.c.b16 %v3274, %v3273
        %v3297 = vpack.c.b16 %v3276, %v3275
        %v3298 = vpack.c.b16 %v3278, %v3277
        %v3299 = vpack.c.b16 %v3280, %v3279
        %v3300 = vpack.c.b16 %v3282, %v3281
        %v3320 = vsel %vm2163, %v3174, 0
        %3322 = vmatprep.subr.bf16.mxu0 0
        %3323 = vmatpush1.bf16.msra.mxu0 %v3283
        %3324 = vmatprep.subr.bf16.mxu0 0
        %3325 = vmatpush1.bf16.msra.mxu0 %v3284
        %3326 = vmatprep.subr.bf16.mxu0 0
        %3327 = vmatpush1.bf16.msra.mxu0 %v3285
        %3328 = vmatprep.subr.bf16.mxu0 0
        %3329 = vmatpush1.bf16.msra.mxu0 %v3286
        %3330 = vmatprep.subr.bf16.mxu0 0
        %3331 = vmatpush1.bf16.msra.mxu0 %v3287
        %3332 = vmatprep.subr.bf16.mxu0 0
        %3333 = vmatpush1.bf16.msra.mxu0 %v3288
        %3334 = vmatprep.subr.bf16.mxu0 0
        %3335 = vmatpush1.bf16.msra.mxu0 %v3289
        %3336 = vmatprep.subr.bf16.mxu0 0
        %3337 = vmatpush1.bf16.msra.mxu0 %v3290
        %3338 = vmatprep.subr.bf16.mxu0 0
        %3339 = vmatpush1.bf16.msra.mxu0 %v3291
        %3340 = vmatprep.subr.bf16.mxu0 0
        %3341 = vmatpush1.bf16.msra.mxu0 %v3292
        %3342 = vmatprep.subr.bf16.mxu0 0
        %3343 = vmatpush1.bf16.msra.mxu0 %v3293
        %3344 = vmatprep.subr.bf16.mxu0 0
        %3345 = vmatpush1.bf16.msra.mxu0 %v3294
        %3346 = vmatprep.subr.bf16.mxu0 0
        %3347 = vmatpush1.bf16.msra.mxu0 %v3295
        %3348 = vmatprep.subr.bf16.mxu0 0
        %3349 = vmatpush1.bf16.msra.mxu0 %v3296
        %3350 = vmatprep.subr.bf16.mxu0 0
        %3351 = vmatpush1.bf16.msra.mxu0 %v3297
        %3352 = vmatprep.subr.bf16.mxu0 0
        %3353 = vmatpush1.bf16.msra.mxu0 %v3298
        %3354 = vmatprep.mubr.bf16.mxu0 %v3173
        %3355 = vmatmul.mubr.bf16.gmra.mrb[0].mxu0 %v3172
        %v3356 = vpop.f32.mrb[0].mxu0
        %v3357 = vadd.f32 0.0, %v3356
        %v3358 = vpop.f32.mrb[0].mxu0
        %v3359 = vpop.f32.mrb[0].mxu0
        %v3360 = vadd.f32 0.0, %v3359
        %v3361 = vpop.f32.mrb[0].mxu0
        %3362 = vdwg.mxu0
        %3363 = vmatprep.subr.bf16.mxu0 0
        %3364 = vmatpush1.bf16.msra.mxu0 %v3299
        %3365 = vmatprep.subr.bf16.mxu0 0
        %3366 = vmatpush1.bf16.msra.mxu0 %v3300
        %3367 = vmatprep.subr.bf16.mxu0 0
        %3368 = vmatpush1.bf16.msra.mxu0 0
        %3369 = vmatprep.subr.bf16.mxu0 0
        %3370 = vmatpush1.bf16.msra.mxu0 0
        %3371 = vmatprep.subr.bf16.mxu0 0
        %3372 = vmatpush1.bf16.msra.mxu0 0
        %3373 = vmatprep.subr.bf16.mxu0 0
        %3374 = vmatpush1.bf16.msra.mxu0 0
        %3375 = vmatprep.subr.bf16.mxu0 0
        %3376 = vmatpush1.bf16.msra.mxu0 0
        %3377 = vmatprep.subr.bf16.mxu0 0
        %3378 = vmatpush1.bf16.msra.mxu0 0
        %3379 = vmatprep.subr.bf16.mxu0 0
        %3380 = vmatpush1.bf16.msra.mxu0 0
        %3381 = vmatprep.subr.bf16.mxu0 0
        %3382 = vmatpush1.bf16.msra.mxu0 0
        %3383 = vmatprep.subr.bf16.mxu0 0
        %3384 = vmatpush1.bf16.msra.mxu0 0
        %3385 = vmatprep.subr.bf16.mxu0 0
        %3386 = vmatpush1.bf16.msra.mxu0 0
        %3387 = vmatprep.subr.bf16.mxu0 0
        %3388 = vmatpush1.bf16.msra.mxu0 0
        %3389 = vmatprep.subr.bf16.mxu0 0
        %3390 = vmatpush1.bf16.msra.mxu0 0
        %3391 = vmatprep.subr.bf16.mxu0 0
        %3392 = vmatpush1.bf16.msra.mxu0 0
        %3393 = vmatprep.subr.bf16.mxu0 0
        %3394 = vmatpush1.bf16.msra.mxu0 0
        %3395 = vmatprep.mubr.bf16.mxu0 0
        %3396 = vmatmul.mubr.bf16.gmra.mrb[0].mxu0 %v3320
        %v3397 = vpop.f32.mrb[0].mxu0
        %v3398 = vadd.f32 %v3357, %v3397
        %v3399 = vpop.f32.mrb[0].mxu0
        %v3400 = vpop.f32.mrb[0].mxu0
        %v3401 = vadd.f32 %v3360, %v3400
        %v3402 = vpop.f32.mrb[0].mxu0
        %3403 = vdwg.mxu0
        %v3404 = vld [vmem:[%s15] sm:$0x1]
        %v3405 = vld [vmem:[%s15 + $0x1] sm:$0x1]
        %v3406 = vsel %vm2163, %v3398, 0.0
        %v3407 = vsel %vm2163, %v3401, 0.0
        %v3408 = vadd.f32 %v3406, %v3407
        %v3409 = vrot.slane %v3408, 4
        %v3410 = vadd.f32 %v3408, %v3409
        %v3411 = vrot.slane %v3410, 2
        %v3412 = vadd.f32 %v3410, %v3411
        %v3413 = vrot.slane %v3412, 1
        %v3414 = vadd.f32 %v3412, %v3413
        %v3415 = vmul.f32 %v3398, %v3398
        %v3416 = vmul.f32 %v3401, %v3401
        %v3417 = vsel %vm2163, %v3415, 0.0
        %v3418 = vsel %vm2163, %v3416, 0.0
        %v3419 = vadd.f32 %v3417, %v3418
        %v3420 = vrot.slane %v3419, 4
        %v3421 = vadd.f32 %v3419, %v3420
        %v3422 = vrot.slane %v3421, 2
        %v3423 = vadd.f32 %v3421, %v3422
        %v3424 = vrot.slane %v3423, 1
        %v3425 = vadd.f32 %v3423, %v3424
        %v3426 = vmul.f32 %v3414, 0.0625
        %v3427 = vmul.f32 %v3425, 0.0625
        %v3428 = vmul.f32 %v3426, %v3426
        %v3429 = vsub.f32 %v3427, %v3428
        %v3430 = vadd.f32 %v3429, 1e-05
        %v3431 = vrsqrt.pop %v3430
        %v3432 = vmul.f32 %v3431, %v3404
        %v3433 = vmul.f32 %v3426, %v3432
        %v3434 = vsub.f32 %v3405, %v3433
        %v3435 = vlaneseq
        %v3436 = vshrl.u32 %v3435, 7
        %v3437 = vsub.s32 0, %v3436
        %v3438 = vrot.slane %v3432, %v3437
        %v3439 = vmul.f32 %v3398, %v3438
        %v3440 = vmul.f32 %v3401, %v3438
        %v3441 = vlaneseq
        %v3442 = vshrl.u32 %v3441, 7
        %v3443 = vsub.s32 0, %v3442
        %v3444 = vrot.slane %v3434, %v3443
        %v3445 = vadd.f32 %v3439, %v3444
        %v3446 = vadd.f32 %v3440, %v3444
        %v3447 = vmax.f32 %v3445, 0.0
        %v3448 = vmax.f32 %v3446, 0.0
        %v3449 = vpack.c.bf16 %v3448, %v3447
        %v3450 = vld [vmem:[%s16] sm:$0xf]
        %v3451 = vld [vmem:[%s16 + $0x4] sm:$0xf]
        %v3452 = vld [vmem:[%s16 + $0x8] sm:$0xf]
        %v3453 = vld [vmem:[%s16 + $0xc] sm:$0xf]
        %v3458 = vunpack.c.l.b16 %v3450
        %v3459 = vunpack.c.l.b16 %v3451
        %v3460 = vunpack.c.l.b16 %v3452
        %v3461 = vunpack.c.l.b16 %v3453
        %v3462 = vpack.c.b16 %v3459, %v3458
        %v3463 = vpack.c.b16 %v3461, %v3460
        %v3467 = vsel %vm2163, %v3449, 0
        %3469 = vmatprep.subr.bf16.mxu0 0
        %3470 = vmatpush1.bf16.msra.mxu0 %v3462
        %3471 = vmatprep.subr.bf16.mxu0 0
        %3472 = vmatpush1.bf16.msra.mxu0 %v3463
        %3473 = vmatprep.subr.bf16.mxu0 0
        %3474 = vmatpush1.bf16.msra.mxu0 0
        %3475 = vmatprep.subr.bf16.mxu0 0
        %3476 = vmatpush1.bf16.msra.mxu0 0
        %3477 = vmatprep.subr.bf16.mxu0 0
        %3478 = vmatpush1.bf16.msra.mxu0 0
        %3479 = vmatprep.subr.bf16.mxu0 0
        %3480 = vmatpush1.bf16.msra.mxu0 0
        %3481 = vmatprep.subr.bf16.mxu0 0
        %3482 = vmatpush1.bf16.msra.mxu0 0
        %3483 = vmatprep.subr.bf16.mxu0 0
        %3484 = vmatpush1.bf16.msra.mxu0 0
        %3485 = vmatprep.subr.bf16.mxu0 0
        %3486 = vmatpush1.bf16.msra.mxu0 0
        %3487 = vmatprep.subr.bf16.mxu0 0
        %3488 = vmatpush1.bf16.msra.mxu0 0
        %3489 = vmatprep.subr.bf16.mxu0 0
        %3490 = vmatpush1.bf16.msra.mxu0 0
        %3491 = vmatprep.subr.bf16.mxu0 0
        %3492 = vmatpush1.bf16.msra.mxu0 0
        %3493 = vmatprep.subr.bf16.mxu0 0
        %3494 = vmatpush1.bf16.msra.mxu0 0
        %3495 = vmatprep.subr.bf16.mxu0 0
        %3496 = vmatpush1.bf16.msra.mxu0 0
        %3497 = vmatprep.subr.bf16.mxu0 0
        %3498 = vmatpush1.bf16.msra.mxu0 0
        %3499 = vmatprep.subr.bf16.mxu0 0
        %3500 = vmatpush1.bf16.msra.mxu0 0
        %3501 = vmatprep.mubr.bf16.mxu0 0
        %3502 = vmatmul.mubr.bf16.gmra.mrb[0].mxu0 %v3467
        %v3503 = vpop.f32.mrb[0].mxu0
        %v3504 = vadd.f32 %v2867, %v3503
        %v3505 = vpop.f32.mrb[0].mxu0
        %v3506 = vpop.f32.mrb[0].mxu0
        %v3507 = vadd.f32 %v2870, %v3506
        %v3508 = vpop.f32.mrb[0].mxu0
        %3509 = vdwg.mxu0
        %3510 = vst [vmem:[%s568] sm:$0xff] %v3504
        %3511 = vst [vmem:[%s568 + $0x8] sm:$0xff] %v3507
        %s3512 = sand.u32 %s423, 1
        %s3513 = scalar_lea.sflag [#allocation3], %s3512
        %s3514 = sand.u32 %s423, 1
        %s3515 = smul.addr %s3514, 16
        %s3516 = scalar_lea.vmem [#allocation2], %s3515
        // Predicated region
        $region93: #{intra_frame_residual.1} parent=91 // pred_check
          %p3517 = pneg %p433
        $region94: #{intra_frame_residual.1} parent=91 // pred_check_branch
          %3519 = sbr.rel (%p3517) target = $region96
        $region95: #{intra_frame_residual.1} parent=91 // pred_region
          %s3521 = ssub.s32 256, 256
          %3522 = vsyncadd %s3513, %s3521
          %s3523 = smul.addr %s32, 2
          %s3524 = smul.addr %s3523, 128
          %s3525 = scalar_lea.hbm %s18, %s3524
          %s3526 = sshll.u32 %s3516, 4
          %s3527 = int_to_ptr.vmem [resolvable:$true] %s3526
          %3532 = dma.vmem_to_hbm [thread:$0]  %s3527, 256, %s3525, %s3513, 128, 128, 8
        $region96: #{intra_frame_residual.1} parent=91 // pred_fallthru
          _
      $region92: #{intra_frame_residual.1} parent=5 // pred_fallthru
        _
      %p3533 = scmp.le.s32.totalorder 2, %s27
      // Predicated region
      $region97: #{intra_frame_residual.1} parent=5 // pred_check
        %p3534 = pneg %p3533
      $region98: #{intra_frame_residual.1} parent=5 // pred_check_branch
        %3536 = sbr.rel (%p3534) target = $region100
      $region99: #{intra_frame_residual.1} parent=5 // pred_region
        %s3537 = ssub.s32 %s27, 2
        // Predicated region
        $region101: #{intra_frame_residual.1} parent=99 // pred_check
          %p3538 = pneg %p439
        $region102: #{intra_frame_residual.1} parent=99 // pred_check_branch
          %3540 = sbr.rel (%p3538) target = $region104
        $region103: #{intra_frame_residual.1} parent=99 // pred_region
          %s3541 = sand.u32 %s424, 1
          %s3542 = scalar_lea.sflag [#allocation3], %s3541
          %s3543 = sand.u32 %s424, 1
          %s3544 = smul.addr %s3543, 16
          %s3545 = scalar_lea.vmem [#allocation2], %s3544
          %3546 = dma.done %s3542, 256
        $region104: #{intra_frame_residual.1} parent=99 // pred_fallthru
          _
      $region100: #{intra_frame_residual.1} parent=5 // pred_fallthru
        _
    $region6: #{intra_frame_residual.1} parent=1 // loop_footer
      %s31 = sadd.s32 1, %s27
    $region7: #{intra_frame_residual.1} parent=1 // loop_footer_branch
      %26 = sbr.rel target = $region3
    $region8: #{intra_frame_residual.1} parent=1 // loop_exit
      _
    %3547 = vsyncpa [#allocation3], 1
    %s3548 = scalar_lea.sflag [#allocation3], 1
    %3549 = vsyncpa %s3548, 1

</llo_original>
